<compile_context>
chip_gen: v7x
topology: tpu7x:2x2x1
jax: 0.10.0
libtpu: 0.0.40
codegen_flags: <defaults>
</compile_context>

<pallas_src>
import jax
import jax.numpy as jnp
from jax.experimental import pallas as pl
from jax.experimental.pallas import tpu as pltpu


def _round_up(x, m):
    return ((x + m - 1) // m) * m


def _build_band_weight(conv_w, w_in):
    """conv_w: (Cout, Cin, k, k) -> single-row band weight (k*W*Cin, Wo*Cout).

    Row index  = (kh * W + w_off) * Cin + c
    Col index  = j * Cout + co
    value      = conv_w[co, c, kh, w_off - j]  if 0 <= w_off - j < k else 0.
    """
    cout, cin, k, _ = conv_w.shape
    wo = w_in - k + 1
    wb = jnp.zeros((k, w_in, cin, wo, cout), jnp.float32)
    for dw in range(k):
        s = jnp.eye(w_in, wo, k=-dw, dtype=jnp.float32)       # s[j+dw, j] = 1
        wb = wb + jnp.einsum("wj,fcd->dwcjf", s, conv_w[:, :, :, dw])
    return wb.reshape(k * w_in * cin, wo * cout)


def _build_paired_band_weight(conv_w, w_in):
    """Two conv output rows per matmul: ((k+1)*W*Cin, 2*Wo*Cout).

    The paired band for output rows (2i, 2i+1) is the obs lane slice
    [2i*W*C, (2i+4)*W*C): its first 3*W*C rows feed output row 2i (left half
    of the weight) and its last 3*W*C rows feed output row 2i+1 (right half).
    """
    cout, cin, k, _ = conv_w.shape
    wb = _build_band_weight(conv_w, w_in)                      # (k*W*C, row_f)
    row_stride = w_in * cin
    row_f = wb.shape[1]
    zer = jnp.zeros((row_stride, row_f), jnp.float32)
    top = jnp.concatenate([wb, zer], axis=0)                   # -> out row 2i
    bot = jnp.concatenate([zer, wb], axis=0)                   # -> out row 2i+1
    return jnp.concatenate([top, bot], axis=1)                 # ((k+1)*W*C, 2*row_f)


def _make_actor_kernel(block_n, h_in, w_in, c_in, cout, hidden, k, a_dim, slab_w):
    ho, wo = h_in - k + 1, w_in - k + 1
    pair_k = (k + 1) * w_in * c_in         # lanes covered by one paired band
    pair_stride = 2 * w_in * c_in          # lane stride between paired bands (=128 here)
    two_row_f = 2 * wo * cout              # conv features per row pair
    n_pairs = ho // 2
    hd = hidden
    bf16 = jnp.bfloat16

    def kernel(x_ref, wband_ref, bband_ref, w1_ref, b1_ref, w2_ref, b2_ref,
               wg_ref, bg_ref, h0_ref, m_ref, gamma_ref, beta_ref,
               wa_ref, ba_ref, out_ref):
        # ---- CNNBase: conv (row-pair band matmuls) fused with fc1 ----
        wband = wband_ref[...]                                           # bf16
        bband = jnp.broadcast_to(bband_ref[...], (block_n, two_row_f))   # hoisted
        acc = jnp.zeros((block_n, hidden), jnp.float32)
        # Static unroll: every slice start is a static multiple of 128 lanes
        # (448 sublanes for w1), so loads stay vreg-aligned; trip count is 7.
        for i in range(n_pairs):
            band = x_ref[:, pl.ds(i * pair_stride, pair_k)]              # (bn, 256) bf16
            conv = jnp.dot(band, wband, preferred_element_type=jnp.float32)
            conv = jnp.maximum(conv + bband, 0.0).astype(bf16)           # (bn, 2*row_f)
            w1_i = w1_ref[pl.ds(i * two_row_f, two_row_f), :]            # (2*row_f, h) bf16
            acc = acc + jnp.dot(conv, w1_i, preferred_element_type=jnp.float32)
        x1 = jnp.maximum(acc + b1_ref[...], 0.0)
        x2 = jnp.maximum(
            jnp.dot(x1.astype(bf16), w2_ref[...], preferred_element_type=jnp.float32)
            + b2_ref[...], 0.0)                                          # (bn, hidden)

        # ---- RNNLayer: masked hidden state + GRU cell (ONE fused gate matmul) ----
        h = h0_ref[...] * m_ref[...]
        xh = jnp.concatenate([x2.astype(bf16), h.astype(bf16)], axis=-1)  # (bn, 2h)
        g = jnp.dot(xh, wg_ref[...], preferred_element_type=jnp.float32) + bg_ref[...]
        r = jax.nn.sigmoid(g[:, 0:hd])
        z = jax.nn.sigmoid(g[:, hd:2 * hd])
        nn_ = jnp.tanh(g[:, 2 * hd:3 * hd] + r * g[:, 3 * hd:4 * hd])
        h_new = (1.0 - z) * nn_ + z * h

        # ---- LayerNorm (two-pass, eps matches PyTorch 1e-5) ----
        mu = jnp.mean(h_new, axis=-1, keepdims=True)
        xc = h_new - mu
        var = jnp.mean(xc * xc, axis=-1, keepdims=True)
        xn = xc * jax.lax.rsqrt(var + 1e-5) * gamma_ref[...] + beta_ref[...]

        # ---- ACTLayer: logits -> mode (argmax) + log-prob of chosen action ----
        logits = (jnp.dot(xn.astype(bf16), wa_ref[...],
                          preferred_element_type=jnp.float32) + ba_ref[...])
        mx = jnp.max(logits, axis=-1, keepdims=True)
        lse = jnp.log(jnp.sum(jnp.exp(logits - mx), axis=-1, keepdims=True)) + mx
        logp_all = logits - lse
        idx = jax.lax.broadcasted_iota(jnp.int32, logits.shape, 1)
        action = jnp.min(jnp.where(logits == mx, idx, a_dim),
                         axis=-1, keepdims=True)                 # lowest argmax index
        logp = jnp.sum(jnp.where(idx == action, logp_all, 0.0),
                       axis=-1, keepdims=True)

        # ---- single lane-dense output slab: [h_new | logp | action | 0-pad] ----
        pad = jnp.zeros((block_n, slab_w - hidden - 2), jnp.float32)
        out_ref[...] = jnp.concatenate(
            [h_new, logp, action.astype(jnp.float32), pad], axis=-1)

    return kernel


def r_actor_forward(params, obs, rnn_states, masks, block_n=None):
    """obs: (N,C,H,W) f32, rnn_states: (N,1,hidden) f32, masks: (N,1) f32."""
    n, c, h, w = obs.shape
    hidden = params["w2"].shape[0]
    cout, _, k, _ = params["conv_w"].shape
    ho, wo = h - k + 1, w - k + 1
    assert ho % 2 == 0, "row-paired conv path requires an even conv output height"
    # TODO(synk): handle odd conv output height (single tail row).
    a_dim = params["wa"].shape[1]
    pair_k = (k + 1) * w * c
    two_row_f = 2 * wo * cout
    slab_w = _round_up(hidden + 2, 128)
    hd = hidden
    bf16 = jnp.bfloat16
    r1 = lambda v: v.reshape(1, -1)

    # ---- weight prep: bf16 MXU operands, biases / LN params stay f32 ----
    w_band = _build_paired_band_weight(params["conv_w"], w).astype(bf16)
    b_band = jnp.tile(params["conv_b"], 2 * wo).reshape(1, two_row_f)
    w1 = params["w1"].astype(bf16)
    w2 = params["w2"].astype(bf16)
    wa = params["wa"].astype(bf16)
    zer = jnp.zeros((hd, hd), jnp.float32)
    w_g = jnp.concatenate(
        [jnp.concatenate([params["w_ir"], params["w_iz"], params["w_in"], zer], axis=1),
         jnp.concatenate([params["w_hr"], params["w_hz"], zer, params["w_hn"]], axis=1)],
        axis=0).astype(bf16)                                    # (2h, 4h): r|z|gi_n|gh_n
    b_g = jnp.concatenate([params["b_ir"] + params["b_hr"],
                           params["b_iz"] + params["b_hz"],
                           params["b_in"], params["b_hn"]]).reshape(1, -1)

    # obs NCHW -> flattened NHWC rows (bf16): each row-pair conv band is one
    # contiguous, 128-lane-aligned slice of width 4*W*C (no im2col duplication).
    x_flat = jnp.transpose(obs, (0, 2, 3, 1)).reshape(n, h * w * c).astype(bf16)
    h0 = rnn_states[:, 0, :]

    # ---- batch tiling: prefer >=2 grid steps (v7x megacore), cap at 512 rows ----
    if block_n is None:
        block_n = 8 if n <= 8 else min(512, _round_up((n + 1) // 2, 8))
    n_pad = _round_up(n, block_n)
    if n_pad != n:
        pad = n_pad - n
        x_flat = jnp.pad(x_flat, ((0, pad), (0, 0)))
        h0 = jnp.pad(h0, ((0, pad), (0, 0)))
        masks_p = jnp.pad(masks, ((0, pad), (0, 0)))
    else:
        masks_p = masks
    grid = (n_pad // block_n,)

    kernel = _make_actor_kernel(block_n, h, w, c, cout, hidden, k, a_dim, slab_w)

    row_spec = lambda d: pl.BlockSpec((block_n, d), lambda i: (i, 0))
    full_spec = lambda a: pl.BlockSpec(a.shape, lambda i: (0, 0))   # resident weights

    weight_args = (w_band, b_band, w1, r1(params["b1"]), w2, r1(params["b2"]),
                   w_g, b_g)
    tail_args = (r1(params["ln_g"]), r1(params["ln_b"]), wa, r1(params["ba"]))
    inputs = (x_flat,) + weight_args + (h0, masks_p) + tail_args
    in_specs = ([row_spec(h * w * c)]
                + [full_spec(a) for a in weight_args]
                + [row_spec(hidden), row_spec(1)]
                + [full_spec(a) for a in tail_args])

    out_shape = jax.ShapeDtypeStruct((n_pad, slab_w), jnp.float32)
    out_specs = row_spec(slab_w)

    per_sample_flops = 2 * ((ho // 2) * (pair_k * two_row_f + two_row_f * hidden)
                            + hidden * hidden + 2 * hidden * 4 * hidden
                            + hidden * a_dim)
    bytes_accessed = (sum(int(a.size) * a.dtype.itemsize for a in inputs)
                      + n_pad * slab_w * 4)
    cost = pl.CostEstimate(flops=int(n_pad * per_sample_flops),
                           transcendentals=int(n_pad * (3 * hidden + a_dim + 2)),
                           bytes_accessed=int(bytes_accessed))

    slab = pl.pallas_call(
        kernel,
        out_shape=out_shape,
        grid_spec=pltpu.PrefetchScalarGridSpec(
            num_scalar_prefetch=0, grid=grid,
            in_specs=in_specs, out_specs=out_specs),
        compiler_params=pltpu.CompilerParams(
            dimension_semantics=("parallel",),
            # < 8 MiB used even at block_n=512 in bf16; 32 MiB leaves ample
            # headroom on every generation (incl. v7x's 64 MiB physical VMEM).
            vmem_limit_bytes=32 * 1024 * 1024),
        cost_estimate=cost,
    )(*inputs)

    slab = slab[:n]
    h_new = slab[:, :hidden]
    logp = slab[:, hidden:hidden + 1]
    actions = slab[:, hidden + 1:hidden + 2].astype(jnp.int32)
    return actions, logp, h_new.reshape(n, 1, hidden)


def init_params(key, c_in=4, h=16, w=16, hidden=32, action_dim=5):
    cout = hidden // 2
    ho, wo = h - 2, w - 2
    flat_dim = ho * wo * cout
    ks = jax.random.split(key, 16)
    g = lambda k, shape, s=0.1: (s * jax.random.normal(k, shape)).astype(jnp.float32)
    z = lambda shape: jnp.zeros(shape, jnp.float32)
    return {
        "conv_w": g(ks[0], (cout, c_in, 3, 3)), "conv_b": z((cout,)),
        "w1": g(ks[1], (flat_dim, hidden), 0.02), "b1": z((hidden,)),
        "w2": g(ks[2], (hidden, hidden)), "b2": z((hidden,)),
        "w_ir": g(ks[3], (hidden, hidden)), "w_iz": g(ks[4], (hidden, hidden)),
        "w_in": g(ks[5], (hidden, hidden)),
        "w_hr": g(ks[6], (hidden, hidden)), "w_hz": g(ks[7], (hidden, hidden)),
        "w_hn": g(ks[8], (hidden, hidden)),
        "b_ir": z((hidden,)), "b_iz": z((hidden,)), "b_in": z((hidden,)),
        "b_hr": z((hidden,)), "b_hz": z((hidden,)), "b_hn": z((hidden,)),
        "ln_g": jnp.ones((hidden,), jnp.float32), "ln_b": z((hidden,)),
        "wa": g(ks[9], (hidden, action_dim)), "ba": z((action_dim,)),
    }


def _reference_forward(params, obs, rnn_states, masks):
    """Independent pure-JAX reference mirroring the kernel's matmul precision
    (bf16 operands, f32 accumulation; LayerNorm/softmax in f32)."""
    bf16 = jnp.bfloat16
    bdot = lambda a, b: jnp.dot(a.astype(bf16), b.astype(bf16),
                                preferred_element_type=jnp.float32)
    n = obs.shape[0]
    hidden = params["w2"].shape[0]
    x = jnp.transpose(obs, (0, 2, 3, 1))                              # NHWC
    w_hwio = jnp.transpose(params["conv_w"], (2, 3, 1, 0))
    conv = jax.lax.conv_general_dilated(
        x.astype(bf16), w_hwio.astype(bf16), (1, 1), "VALID",
        dimension_numbers=("NHWC", "HWIO", "NHWC"),
        preferred_element_type=jnp.float32)
    conv = jnp.maximum(conv + params["conv_b"], 0.0)
    flat = conv.reshape(n, -1)                                        # (i, j, co) order
    x1 = jnp.maximum(bdot(flat, params["w1"]) + params["b1"], 0.0)
    x2 = jnp.maximum(bdot(x1, params["w2"]) + params["b2"], 0.0)
    hh = rnn_states[:, 0, :] * masks
    r = jax.nn.sigmoid(bdot(x2, params["w_ir"]) + params["b_ir"]
                       + bdot(hh, params["w_hr"]) + params["b_hr"])
    z = jax.nn.sigmoid(bdot(x2, params["w_iz"]) + params["b_iz"]
                       + bdot(hh, params["w_hz"]) + params["b_hz"])
    nn_ = jnp.tanh(bdot(x2, params["w_in"]) + params["b_in"]
                   + r * (bdot(hh, params["w_hn"]) + params["b_hn"]))
    h_new = (1.0 - z) * nn_ + z * hh
    mu = jnp.mean(h_new, axis=-1, keepdims=True)
    var = jnp.mean((h_new - mu) ** 2, axis=-1, keepdims=True)
    xn = (h_new - mu) * jax.lax.rsqrt(var + 1e-5) * params["ln_g"] + params["ln_b"]
    logits = bdot(xn, params["wa"]) + params["ba"]
    logp_all = jax.nn.log_softmax(logits, axis=-1)
    action = jnp.argmax(logits, axis=-1)[:, None].astype(jnp.int32)
    logp = jnp.take_along_axis(logp_all, action, axis=-1)
    return action, logp, h_new.reshape(n, 1, hidden)


if __name__ == "__main__":
    key = jax.random.PRNGKey(0)
    k_obs, k_h, k_p = jax.random.split(key, 3)

    N, C, H, W, HIDDEN, A = 2, 4, 16, 16, 32, 5
    obs = jax.random.normal(k_obs, (N, C, H, W), dtype=jnp.float32)
    rnn_states = jax.random.normal(k_h, (N, 1, HIDDEN), dtype=jnp.float32)
    masks = jnp.array([[1.0], [0.0]], dtype=jnp.float32)          # second env resets

    params = init_params(k_p, c_in=C, h=H, w=W, hidden=HIDDEN, action_dim=A)

    actions, action_log_probs, new_rnn_states = r_actor_forward(
        params, obs, rnn_states, masks)
    jax.block_until_ready((actions, action_log_probs, new_rnn_states))

    assert actions.shape == (N, 1) and actions.dtype == jnp.int32
    assert action_log_probs.shape == (N, 1)
    assert new_rnn_states.shape == (N, 1, HIDDEN)
    assert bool(jnp.all(jnp.isfinite(action_log_probs)))
    assert bool(jnp.all(jnp.isfinite(new_rnn_states)))

    # cross-check against an independent pure-JAX reference (same precision)
    ref_a, ref_lp, ref_h = _reference_forward(params, obs, rnn_states, masks)
    assert bool(jnp.array_equal(actions, ref_a))
    assert bool(jnp.allclose(action_log_probs, ref_lp, atol=2e-3, rtol=2e-3))
    assert bool(jnp.allclose(new_rnn_states, ref_h, atol=2e-3, rtol=2e-3))

    print("KERNEL_OK")
</pallas_src>

<mosaic_0001>
module attributes {stable_mosaic.version = 11 : i64} {
  func.func @kernel(%arg0: i32, %arg1: memref<8x1024xbf16, #tpu.memory_space<vmem>>, %arg2: memref<256x448xbf16, #tpu.memory_space<vmem>>, %arg3: memref<1x448xf32, #tpu.memory_space<vmem>>, %arg4: memref<3136x32xbf16, #tpu.memory_space<vmem>>, %arg5: memref<1x32xf32, #tpu.memory_space<vmem>>, %arg6: memref<32x32xbf16, #tpu.memory_space<vmem>>, %arg7: memref<1x32xf32, #tpu.memory_space<vmem>>, %arg8: memref<64x128xbf16, #tpu.memory_space<vmem>>, %arg9: memref<1x128xf32, #tpu.memory_space<vmem>>, %arg10: memref<8x32xf32, #tpu.memory_space<vmem>>, %arg11: memref<8x1xf32, #tpu.memory_space<vmem>>, %arg12: memref<1x32xf32, #tpu.memory_space<vmem>>, %arg13: memref<1x32xf32, #tpu.memory_space<vmem>>, %arg14: memref<32x5xbf16, #tpu.memory_space<vmem>>, %arg15: memref<1x5xf32, #tpu.memory_space<vmem>>, %arg16: memref<8x128xf32, #tpu.memory_space<vmem>>) attributes {dimension_semantics = [#tpu.dimension_semantics<parallel>], iteration_bounds = array<i64: 1>, scalar_prefetch = 0 : i64, scratch_operands = 0 : i64, tpu.core_type = #tpu.core_type<tc>, window_params = [{transform_indices = @transform_0, window_bounds = array<i64: 8, 1024>}, {pipeline_mode = #tpu.pipeline_mode<synchronous>, transform_indices = @transform_1, window_bounds = array<i64: 256, 448>}, {pipeline_mode = #tpu.pipeline_mode<synchronous>, transform_indices = @transform_2, window_bounds = array<i64: 1, 448>}, {pipeline_mode = #tpu.pipeline_mode<synchronous>, transform_indices = @transform_3, window_bounds = array<i64: 3136, 32>}, {pipeline_mode = #tpu.pipeline_mode<synchronous>, transform_indices = @transform_4, window_bounds = array<i64: 1, 32>}, {pipeline_mode = #tpu.pipeline_mode<synchronous>, transform_indices = @transform_5, window_bounds = array<i64: 32, 32>}, {pipeline_mode = #tpu.pipeline_mode<synchronous>, transform_indices = @transform_6, window_bounds = array<i64: 1, 32>}, {pipeline_mode = #tpu.pipeline_mode<synchronous>, transform_indices = @transform_7, window_bounds = array<i64: 64, 128>}, {pipeline_mode = #tpu.pipeline_mode<synchronous>, transform_indices = @transform_8, window_bounds = array<i64: 1, 128>}, {transform_indices = @transform_9, window_bounds = array<i64: 8, 32>}, {transform_indices = @transform_10, window_bounds = array<i64: 8, 1>}, {pipeline_mode = #tpu.pipeline_mode<synchronous>, transform_indices = @transform_11, window_bounds = array<i64: 1, 32>}, {pipeline_mode = #tpu.pipeline_mode<synchronous>, transform_indices = @transform_12, window_bounds = array<i64: 1, 32>}, {pipeline_mode = #tpu.pipeline_mode<synchronous>, transform_indices = @transform_13, window_bounds = array<i64: 32, 5>}, {pipeline_mode = #tpu.pipeline_mode<synchronous>, transform_indices = @transform_14, window_bounds = array<i64: 1, 5>}, {transform_indices = @transform_15, window_bounds = array<i64: 8, 128>}]} {
    %c0 = arith.constant 0 : index
    %c0_0 = arith.constant 0 : index
    %0 = vector.load %arg2[%c0, %c0_0] : memref<256x448xbf16, #tpu.memory_space<vmem>>, vector<256x448xbf16>
    %c0_1 = arith.constant 0 : index
    %c0_2 = arith.constant 0 : index
    %1 = vector.load %arg3[%c0_1, %c0_2] : memref<1x448xf32, #tpu.memory_space<vmem>>, vector<1x448xf32>
    %2 = vector.shape_cast %1 : vector<1x448xf32> to vector<1x448xf32>
    %3 = vector.broadcast %2 : vector<1x448xf32> to vector<8x448xf32>
    %cst = arith.constant 0.000000e+00 : f32
    %4 = vector.broadcast %cst : f32 to vector<8x32xf32>
    %c0_3 = arith.constant 0 : index
    %c0_4 = arith.constant 0 : index
    %5 = vector.load %arg1[%c0_3, %c0_4] : memref<8x1024xbf16, #tpu.memory_space<vmem>>, vector<8x256xbf16>
    %cst_5 = arith.constant dense<0.000000e+00> : vector<8x448xf32>
    %6 = tpu.matmul %5, %0, %cst_5 {dimension_numbers = #tpu.dot_dimension_numbers<[1], [0], [0], [1], [0, 0, 1, 1], [], []>} : vector<8x256xbf16>, vector<256x448xbf16>, vector<8x448xf32> -> vector<8x448xf32>
    %7 = arith.addf %6, %3 : vector<8x448xf32>
    %cst_6 = arith.constant 0.000000e+00 : f32
    %8 = vector.broadcast %cst_6 : f32 to vector<8x448xf32>
    %9 = arith.maximumf %7, %8 : vector<8x448xf32>
    %10 = arith.truncf %9 : vector<8x448xf32> to vector<8x448xbf16>
    %c0_7 = arith.constant 0 : index
    %c0_8 = arith.constant 0 : index
    %11 = vector.load %arg4[%c0_7, %c0_8] : memref<3136x32xbf16, #tpu.memory_space<vmem>>, vector<448x32xbf16>
    %cst_9 = arith.constant dense<0.000000e+00> : vector<8x32xf32>
    %12 = tpu.matmul %10, %11, %cst_9 {dimension_numbers = #tpu.dot_dimension_numbers<[1], [0], [0], [1], [0, 0, 1, 1], [], []>} : vector<8x448xbf16>, vector<448x32xbf16>, vector<8x32xf32> -> vector<8x32xf32>
    %13 = arith.addf %4, %12 : vector<8x32xf32>
    %c0_10 = arith.constant 0 : index
    %c128 = arith.constant 128 : index
    %14 = vector.load %arg1[%c0_10, %c128] : memref<8x1024xbf16, #tpu.memory_space<vmem>>, vector<8x256xbf16>
    %cst_11 = arith.constant dense<0.000000e+00> : vector<8x448xf32>
    %15 = tpu.matmul %14, %0, %cst_11 {dimension_numbers = #tpu.dot_dimension_numbers<[1], [0], [0], [1], [0, 0, 1, 1], [], []>} : vector<8x256xbf16>, vector<256x448xbf16>, vector<8x448xf32> -> vector<8x448xf32>
    %16 = arith.addf %15, %3 : vector<8x448xf32>
    %cst_12 = arith.constant 0.000000e+00 : f32
    %17 = vector.broadcast %cst_12 : f32 to vector<8x448xf32>
    %18 = arith.maximumf %16, %17 : vector<8x448xf32>
    %19 = arith.truncf %18 : vector<8x448xf32> to vector<8x448xbf16>
    %c448 = arith.constant 448 : index
    %c0_13 = arith.constant 0 : index
    %20 = vector.load %arg4[%c448, %c0_13] : memref<3136x32xbf16, #tpu.memory_space<vmem>>, vector<448x32xbf16>
    %cst_14 = arith.constant dense<0.000000e+00> : vector<8x32xf32>
    %21 = tpu.matmul %19, %20, %cst_14 {dimension_numbers = #tpu.dot_dimension_numbers<[1], [0], [0], [1], [0, 0, 1, 1], [], []>} : vector<8x448xbf16>, vector<448x32xbf16>, vector<8x32xf32> -> vector<8x32xf32>
    %22 = arith.addf %13, %21 : vector<8x32xf32>
    %c0_15 = arith.constant 0 : index
    %c256 = arith.constant 256 : index
    %23 = vector.load %arg1[%c0_15, %c256] : memref<8x1024xbf16, #tpu.memory_space<vmem>>, vector<8x256xbf16>
    %cst_16 = arith.constant dense<0.000000e+00> : vector<8x448xf32>
    %24 = tpu.matmul %23, %0, %cst_16 {dimension_numbers = #tpu.dot_dimension_numbers<[1], [0], [0], [1], [0, 0, 1, 1], [], []>} : vector<8x256xbf16>, vector<256x448xbf16>, vector<8x448xf32> -> vector<8x448xf32>
    %25 = arith.addf %24, %3 : vector<8x448xf32>
    %cst_17 = arith.constant 0.000000e+00 : f32
    %26 = vector.broadcast %cst_17 : f32 to vector<8x448xf32>
    %27 = arith.maximumf %25, %26 : vector<8x448xf32>
    %28 = arith.truncf %27 : vector<8x448xf32> to vector<8x448xbf16>
    %c896 = arith.constant 896 : index
    %c0_18 = arith.constant 0 : index
    %29 = vector.load %arg4[%c896, %c0_18] : memref<3136x32xbf16, #tpu.memory_space<vmem>>, vector<448x32xbf16>
    %cst_19 = arith.constant dense<0.000000e+00> : vector<8x32xf32>
    %30 = tpu.matmul %28, %29, %cst_19 {dimension_numbers = #tpu.dot_dimension_numbers<[1], [0], [0], [1], [0, 0, 1, 1], [], []>} : vector<8x448xbf16>, vector<448x32xbf16>, vector<8x32xf32> -> vector<8x32xf32>
    %31 = arith.addf %22, %30 : vector<8x32xf32>
    %c0_20 = arith.constant 0 : index
    %c384 = arith.constant 384 : index
    %32 = vector.load %arg1[%c0_20, %c384] : memref<8x1024xbf16, #tpu.memory_space<vmem>>, vector<8x256xbf16>
    %cst_21 = arith.constant dense<0.000000e+00> : vector<8x448xf32>
    %33 = tpu.matmul %32, %0, %cst_21 {dimension_numbers = #tpu.dot_dimension_numbers<[1], [0], [0], [1], [0, 0, 1, 1], [], []>} : vector<8x256xbf16>, vector<256x448xbf16>, vector<8x448xf32> -> vector<8x448xf32>
    %34 = arith.addf %33, %3 : vector<8x448xf32>
    %cst_22 = arith.constant 0.000000e+00 : f32
    %35 = vector.broadcast %cst_22 : f32 to vector<8x448xf32>
    %36 = arith.maximumf %34, %35 : vector<8x448xf32>
    %37 = arith.truncf %36 : vector<8x448xf32> to vector<8x448xbf16>
    %c1344 = arith.constant 1344 : index
    %c0_23 = arith.constant 0 : index
    %38 = vector.load %arg4[%c1344, %c0_23] : memref<3136x32xbf16, #tpu.memory_space<vmem>>, vector<448x32xbf16>
    %cst_24 = arith.constant dense<0.000000e+00> : vector<8x32xf32>
    %39 = tpu.matmul %37, %38, %cst_24 {dimension_numbers = #tpu.dot_dimension_numbers<[1], [0], [0], [1], [0, 0, 1, 1], [], []>} : vector<8x448xbf16>, vector<448x32xbf16>, vector<8x32xf32> -> vector<8x32xf32>
    %40 = arith.addf %31, %39 : vector<8x32xf32>
    %c0_25 = arith.constant 0 : index
    %c512 = arith.constant 512 : index
    %41 = vector.load %arg1[%c0_25, %c512] : memref<8x1024xbf16, #tpu.memory_space<vmem>>, vector<8x256xbf16>
    %cst_26 = arith.constant dense<0.000000e+00> : vector<8x448xf32>
    %42 = tpu.matmul %41, %0, %cst_26 {dimension_numbers = #tpu.dot_dimension_numbers<[1], [0], [0], [1], [0, 0, 1, 1], [], []>} : vector<8x256xbf16>, vector<256x448xbf16>, vector<8x448xf32> -> vector<8x448xf32>
    %43 = arith.addf %42, %3 : vector<8x448xf32>
    %cst_27 = arith.constant 0.000000e+00 : f32
    %44 = vector.broadcast %cst_27 : f32 to vector<8x448xf32>
    %45 = arith.maximumf %43, %44 : vector<8x448xf32>
    %46 = arith.truncf %45 : vector<8x448xf32> to vector<8x448xbf16>
    %c1792 = arith.constant 1792 : index
    %c0_28 = arith.constant 0 : index
    %47 = vector.load %arg4[%c1792, %c0_28] : memref<3136x32xbf16, #tpu.memory_space<vmem>>, vector<448x32xbf16>
    %cst_29 = arith.constant dense<0.000000e+00> : vector<8x32xf32>
    %48 = tpu.matmul %46, %47, %cst_29 {dimension_numbers = #tpu.dot_dimension_numbers<[1], [0], [0], [1], [0, 0, 1, 1], [], []>} : vector<8x448xbf16>, vector<448x32xbf16>, vector<8x32xf32> -> vector<8x32xf32>
    %49 = arith.addf %40, %48 : vector<8x32xf32>
    %c0_30 = arith.constant 0 : index
    %c640 = arith.constant 640 : index
    %50 = vector.load %arg1[%c0_30, %c640] : memref<8x1024xbf16, #tpu.memory_space<vmem>>, vector<8x256xbf16>
    %cst_31 = arith.constant dense<0.000000e+00> : vector<8x448xf32>
    %51 = tpu.matmul %50, %0, %cst_31 {dimension_numbers = #tpu.dot_dimension_numbers<[1], [0], [0], [1], [0, 0, 1, 1], [], []>} : vector<8x256xbf16>, vector<256x448xbf16>, vector<8x448xf32> -> vector<8x448xf32>
    %52 = arith.addf %51, %3 : vector<8x448xf32>
    %cst_32 = arith.constant 0.000000e+00 : f32
    %53 = vector.broadcast %cst_32 : f32 to vector<8x448xf32>
    %54 = arith.maximumf %52, %53 : vector<8x448xf32>
    %55 = arith.truncf %54 : vector<8x448xf32> to vector<8x448xbf16>
    %c2240 = arith.constant 2240 : index
    %c0_33 = arith.constant 0 : index
    %56 = vector.load %arg4[%c2240, %c0_33] : memref<3136x32xbf16, #tpu.memory_space<vmem>>, vector<448x32xbf16>
    %cst_34 = arith.constant dense<0.000000e+00> : vector<8x32xf32>
    %57 = tpu.matmul %55, %56, %cst_34 {dimension_numbers = #tpu.dot_dimension_numbers<[1], [0], [0], [1], [0, 0, 1, 1], [], []>} : vector<8x448xbf16>, vector<448x32xbf16>, vector<8x32xf32> -> vector<8x32xf32>
    %58 = arith.addf %49, %57 : vector<8x32xf32>
    %c0_35 = arith.constant 0 : index
    %c768 = arith.constant 768 : index
    %59 = vector.load %arg1[%c0_35, %c768] : memref<8x1024xbf16, #tpu.memory_space<vmem>>, vector<8x256xbf16>
    %cst_36 = arith.constant dense<0.000000e+00> : vector<8x448xf32>
    %60 = tpu.matmul %59, %0, %cst_36 {dimension_numbers = #tpu.dot_dimension_numbers<[1], [0], [0], [1], [0, 0, 1, 1], [], []>} : vector<8x256xbf16>, vector<256x448xbf16>, vector<8x448xf32> -> vector<8x448xf32>
    %61 = arith.addf %60, %3 : vector<8x448xf32>
    %cst_37 = arith.constant 0.000000e+00 : f32
    %62 = vector.broadcast %cst_37 : f32 to vector<8x448xf32>
    %63 = arith.maximumf %61, %62 : vector<8x448xf32>
    %64 = arith.truncf %63 : vector<8x448xf32> to vector<8x448xbf16>
    %c2688 = arith.constant 2688 : index
    %c0_38 = arith.constant 0 : index
    %65 = vector.load %arg4[%c2688, %c0_38] : memref<3136x32xbf16, #tpu.memory_space<vmem>>, vector<448x32xbf16>
    %cst_39 = arith.constant dense<0.000000e+00> : vector<8x32xf32>
    %66 = tpu.matmul %64, %65, %cst_39 {dimension_numbers = #tpu.dot_dimension_numbers<[1], [0], [0], [1], [0, 0, 1, 1], [], []>} : vector<8x448xbf16>, vector<448x32xbf16>, vector<8x32xf32> -> vector<8x32xf32>
    %67 = arith.addf %58, %66 : vector<8x32xf32>
    %c0_40 = arith.constant 0 : index
    %c0_41 = arith.constant 0 : index
    %68 = vector.load %arg5[%c0_40, %c0_41] : memref<1x32xf32, #tpu.memory_space<vmem>>, vector<1x32xf32>
    %69 = vector.broadcast %68 : vector<1x32xf32> to vector<8x32xf32>
    %70 = arith.addf %67, %69 : vector<8x32xf32>
    %cst_42 = arith.constant 0.000000e+00 : f32
    %71 = vector.broadcast %cst_42 : f32 to vector<8x32xf32>
    %72 = arith.maximumf %70, %71 : vector<8x32xf32>
    %73 = arith.truncf %72 : vector<8x32xf32> to vector<8x32xbf16>
    %c0_43 = arith.constant 0 : index
    %c0_44 = arith.constant 0 : index
    %74 = vector.load %arg6[%c0_43, %c0_44] : memref<32x32xbf16, #tpu.memory_space<vmem>>, vector<32x32xbf16>
    %cst_45 = arith.constant dense<0.000000e+00> : vector<8x32xf32>
    %75 = tpu.matmul %73, %74, %cst_45 {dimension_numbers = #tpu.dot_dimension_numbers<[1], [0], [0], [1], [0, 0, 1, 1], [], []>} : vector<8x32xbf16>, vector<32x32xbf16>, vector<8x32xf32> -> vector<8x32xf32>
    %c0_46 = arith.constant 0 : index
    %c0_47 = arith.constant 0 : index
    %76 = vector.load %arg7[%c0_46, %c0_47] : memref<1x32xf32, #tpu.memory_space<vmem>>, vector<1x32xf32>
    %77 = vector.broadcast %76 : vector<1x32xf32> to vector<8x32xf32>
    %78 = arith.addf %75, %77 : vector<8x32xf32>
    %cst_48 = arith.constant 0.000000e+00 : f32
    %79 = vector.broadcast %cst_48 : f32 to vector<8x32xf32>
    %80 = arith.maximumf %78, %79 : vector<8x32xf32>
    %c0_49 = arith.constant 0 : index
    %c0_50 = arith.constant 0 : index
    %81 = vector.load %arg10[%c0_49, %c0_50] : memref<8x32xf32, #tpu.memory_space<vmem>>, vector<8x32xf32>
    %c0_51 = arith.constant 0 : index
    %c0_52 = arith.constant 0 : index
    %82 = vector.load %arg11[%c0_51, %c0_52] : memref<8x1xf32, #tpu.memory_space<vmem>>, vector<8x1xf32>
    %83 = vector.broadcast %82 : vector<8x1xf32> to vector<8x32xf32>
    %84 = arith.mulf %81, %83 : vector<8x32xf32>
    %85 = arith.truncf %80 : vector<8x32xf32> to vector<8x32xbf16>
    %86 = arith.truncf %84 : vector<8x32xf32> to vector<8x32xbf16>
    %87 = tpu.concatenate %85, %86 in 1 : vector<8x32xbf16>, vector<8x32xbf16> -> vector<8x64xbf16>
    %c0_53 = arith.constant 0 : index
    %c0_54 = arith.constant 0 : index
    %88 = vector.load %arg8[%c0_53, %c0_54] : memref<64x128xbf16, #tpu.memory_space<vmem>>, vector<64x128xbf16>
    %cst_55 = arith.constant dense<0.000000e+00> : vector<8x128xf32>
    %89 = tpu.matmul %87, %88, %cst_55 {dimension_numbers = #tpu.dot_dimension_numbers<[1], [0], [0], [1], [0, 0, 1, 1], [], []>} : vector<8x64xbf16>, vector<64x128xbf16>, vector<8x128xf32> -> vector<8x128xf32>
    %c0_56 = arith.constant 0 : index
    %c0_57 = arith.constant 0 : index
    %90 = vector.load %arg9[%c0_56, %c0_57] : memref<1x128xf32, #tpu.memory_space<vmem>>, vector<1x128xf32>
    %91 = vector.broadcast %90 : vector<1x128xf32> to vector<8x128xf32>
    %92 = arith.addf %89, %91 : vector<8x128xf32>
    %93 = vector.extract_strided_slice %92 {offsets = [0, 0], sizes = [8, 32], strides = [1, 1]} : vector<8x128xf32> to vector<8x32xf32>
    %94 = arith.negf %93 : vector<8x32xf32>
    %95 = math.exp %94 : vector<8x32xf32>
    %cst_58 = arith.constant 1.000000e+00 : f32
    %96 = vector.broadcast %cst_58 : f32 to vector<8x32xf32>
    %97 = arith.addf %96, %95 : vector<8x32xf32>
    %98 = arith.divf %96, %97 : vector<8x32xf32>
    %99 = vector.extract_strided_slice %92 {offsets = [0, 32], sizes = [8, 32], strides = [1, 1]} : vector<8x128xf32> to vector<8x32xf32>
    %100 = arith.negf %99 : vector<8x32xf32>
    %101 = math.exp %100 : vector<8x32xf32>
    %cst_59 = arith.constant 1.000000e+00 : f32
    %102 = vector.broadcast %cst_59 : f32 to vector<8x32xf32>
    %103 = arith.addf %102, %101 : vector<8x32xf32>
    %104 = arith.divf %102, %103 : vector<8x32xf32>
    %105 = vector.extract_strided_slice %92 {offsets = [0, 64], sizes = [8, 32], strides = [1, 1]} : vector<8x128xf32> to vector<8x32xf32>
    %106 = vector.extract_strided_slice %92 {offsets = [0, 96], sizes = [8, 32], strides = [1, 1]} : vector<8x128xf32> to vector<8x32xf32>
    %107 = arith.mulf %98, %106 : vector<8x32xf32>
    %108 = arith.addf %105, %107 : vector<8x32xf32>
    %109 = math.tanh %108 : vector<8x32xf32>
    %cst_60 = arith.constant 1.000000e+00 : f32
    %110 = vector.broadcast %cst_60 : f32 to vector<8x32xf32>
    %111 = arith.subf %110, %104 : vector<8x32xf32>
    %112 = arith.mulf %111, %109 : vector<8x32xf32>
    %113 = arith.mulf %104, %84 : vector<8x32xf32>
    %114 = arith.addf %112, %113 : vector<8x32xf32>
    %cst_61 = arith.constant dense<0.000000e+00> : vector<8xf32>
    %115 = vector.multi_reduction <add>, %114, %cst_61 [1] : vector<8x32xf32> to vector<8xf32>
    %116 = vector.shape_cast %115 : vector<8xf32> to vector<8x1xf32>
    %cst_62 = arith.constant 3.200000e+01 : f32
    %117 = vector.broadcast %cst_62 : f32 to vector<8x1xf32>
    %118 = arith.divf %116, %117 : vector<8x1xf32>
    %119 = vector.broadcast %118 : vector<8x1xf32> to vector<8x32xf32>
    %120 = arith.subf %114, %119 : vector<8x32xf32>
    %121 = arith.mulf %120, %120 : vector<8x32xf32>
    %cst_63 = arith.constant dense<0.000000e+00> : vector<8xf32>
    %122 = vector.multi_reduction <add>, %121, %cst_63 [1] : vector<8x32xf32> to vector<8xf32>
    %123 = vector.shape_cast %122 : vector<8xf32> to vector<8x1xf32>
    %cst_64 = arith.constant 3.200000e+01 : f32
    %124 = vector.broadcast %cst_64 : f32 to vector<8x1xf32>
    %125 = arith.divf %123, %124 : vector<8x1xf32>
    %cst_65 = arith.constant 9.99999974E-6 : f32
    %126 = vector.broadcast %cst_65 : f32 to vector<8x1xf32>
    %127 = arith.addf %125, %126 : vector<8x1xf32>
    %128 = math.rsqrt %127 : vector<8x1xf32>
    %129 = vector.broadcast %128 : vector<8x1xf32> to vector<8x32xf32>
    %130 = arith.mulf %120, %129 : vector<8x32xf32>
    %c0_66 = arith.constant 0 : index
    %c0_67 = arith.constant 0 : index
    %131 = vector.load %arg12[%c0_66, %c0_67] : memref<1x32xf32, #tpu.memory_space<vmem>>, vector<1x32xf32>
    %132 = vector.broadcast %131 : vector<1x32xf32> to vector<8x32xf32>
    %133 = arith.mulf %130, %132 : vector<8x32xf32>
    %c0_68 = arith.constant 0 : index
    %c0_69 = arith.constant 0 : index
    %134 = vector.load %arg13[%c0_68, %c0_69] : memref<1x32xf32, #tpu.memory_space<vmem>>, vector<1x32xf32>
    %135 = vector.broadcast %134 : vector<1x32xf32> to vector<8x32xf32>
    %136 = arith.addf %133, %135 : vector<8x32xf32>
    %137 = arith.truncf %136 : vector<8x32xf32> to vector<8x32xbf16>
    %c0_70 = arith.constant 0 : index
    %c0_71 = arith.constant 0 : index
    %138 = vector.load %arg14[%c0_70, %c0_71] : memref<32x5xbf16, #tpu.memory_space<vmem>>, vector<32x5xbf16>
    %cst_72 = arith.constant dense<0.000000e+00> : vector<8x5xf32>
    %139 = tpu.matmul %137, %138, %cst_72 {dimension_numbers = #tpu.dot_dimension_numbers<[1], [0], [0], [1], [0, 0, 1, 1], [], []>} : vector<8x32xbf16>, vector<32x5xbf16>, vector<8x5xf32> -> vector<8x5xf32>
    %c0_73 = arith.constant 0 : index
    %c0_74 = arith.constant 0 : index
    %140 = vector.load %arg15[%c0_73, %c0_74] : memref<1x5xf32, #tpu.memory_space<vmem>>, vector<1x5xf32>
    %141 = vector.broadcast %140 : vector<1x5xf32> to vector<8x5xf32>
    %142 = arith.addf %139, %141 : vector<8x5xf32>
    %cst_75 = arith.constant dense<0xFF800000> : vector<8xf32>
    %143 = vector.multi_reduction <maximumf>, %142, %cst_75 [1] : vector<8x5xf32> to vector<8xf32>
    %144 = vector.shape_cast %143 : vector<8xf32> to vector<8x1xf32>
    %145 = vector.broadcast %144 : vector<8x1xf32> to vector<8x5xf32>
    %146 = arith.subf %142, %145 : vector<8x5xf32>
    %147 = math.exp %146 : vector<8x5xf32>
    %cst_76 = arith.constant dense<0.000000e+00> : vector<8xf32>
    %148 = vector.multi_reduction <add>, %147, %cst_76 [1] : vector<8x5xf32> to vector<8xf32>
    %149 = vector.shape_cast %148 : vector<8xf32> to vector<8x1xf32>
    %150 = math.log %149 : vector<8x1xf32>
    %151 = arith.addf %150, %144 : vector<8x1xf32>
    %152 = vector.broadcast %151 : vector<8x1xf32> to vector<8x5xf32>
    %153 = arith.subf %142, %152 : vector<8x5xf32>
    %154 = tpu.iota {dimensions = array<i32: 1>} : vector<8x5xi32>
    %155 = vector.broadcast %144 : vector<8x1xf32> to vector<8x5xf32>
    %156 = arith.cmpf oeq, %142, %155 : vector<8x5xf32>
    %c5_i32 = arith.constant 5 : i32
    %157 = vector.broadcast %c5_i32 : i32 to vector<8x5xi32>
    %158 = arith.select %156, %154, %157 : vector<8x5xi1>, vector<8x5xi32>
    %cst_77 = arith.constant dense<2147483647> : vector<8xi32>
    %159 = vector.multi_reduction <minsi>, %158, %cst_77 [1] : vector<8x5xi32> to vector<8xi32>
    %160 = vector.shape_cast %159 : vector<8xi32> to vector<8x1xi32>
    %161 = vector.broadcast %160 : vector<8x1xi32> to vector<8x5xi32>
    %162 = arith.cmpi eq, %154, %161 : vector<8x5xi32>
    %cst_78 = arith.constant 0.000000e+00 : f32
    %163 = vector.broadcast %cst_78 : f32 to vector<8x5xf32>
    %164 = arith.select %162, %153, %163 : vector<8x5xi1>, vector<8x5xf32>
    %cst_79 = arith.constant dense<0.000000e+00> : vector<8xf32>
    %165 = vector.multi_reduction <add>, %164, %cst_79 [1] : vector<8x5xf32> to vector<8xf32>
    %166 = vector.shape_cast %165 : vector<8xf32> to vector<8x1xf32>
    %cst_80 = arith.constant 0.000000e+00 : f32
    %167 = vector.broadcast %cst_80 : f32 to vector<8x94xf32>
    %168 = arith.sitofp %160 : vector<8x1xi32> to vector<8x1xf32>
    %169 = tpu.concatenate %114, %166, %168, %167 in 1 : vector<8x32xf32>, vector<8x1xf32>, vector<8x1xf32>, vector<8x94xf32> -> vector<8x128xf32>
    %c0_81 = arith.constant 0 : index
    %c0_82 = arith.constant 0 : index
    %170 = vector.load %arg16[%c0_81, %c0_82] : memref<8x128xf32, #tpu.memory_space<vmem>>, vector<8x128xf32>
    tpu.vector_store %arg16[%c0_81, %c0_82], %169 {strides = array<i32>} : memref<8x128xf32, #tpu.memory_space<vmem>>, vector<8x128xf32>,
    return
  }
  func.func @transform_0(%arg0: i32) -> (i32, i32) {
    %c0_i32 = arith.constant 0 : i32
    %c0_i32_0 = arith.constant 0 : i32
    return %arg0, %c0_i32 : i32, i32
  }
  func.func @transform_1(%arg0: i32) -> (i32, i32) {
    %c0_i32 = arith.constant 0 : i32
    %c0_i32_0 = arith.constant 0 : i32
    %c0_i32_1 = arith.constant 0 : i32
    return %c0_i32, %c0_i32_0 : i32, i32
  }
  func.func @transform_2(%arg0: i32) -> (i32, i32) {
    %c0_i32 = arith.constant 0 : i32
    %c0_i32_0 = arith.constant 0 : i32
    %c0_i32_1 = arith.constant 0 : i32
    return %c0_i32, %c0_i32_0 : i32, i32
  }
  func.func @transform_3(%arg0: i32) -> (i32, i32) {
    %c0_i32 = arith.constant 0 : i32
    %c0_i32_0 = arith.constant 0 : i32
    %c0_i32_1 = arith.constant 0 : i32
    return %c0_i32, %c0_i32_0 : i32, i32
  }
  func.func @transform_4(%arg0: i32) -> (i32, i32) {
    %c0_i32 = arith.constant 0 : i32
    %c0_i32_0 = arith.constant 0 : i32
    %c0_i32_1 = arith.constant 0 : i32
    return %c0_i32, %c0_i32_0 : i32, i32
  }
  func.func @transform_5(%arg0: i32) -> (i32, i32) {
    %c0_i32 = arith.constant 0 : i32
    %c0_i32_0 = arith.constant 0 : i32
    %c0_i32_1 = arith.constant 0 : i32
    return %c0_i32, %c0_i32_0 : i32, i32
  }
  func.func @transform_6(%arg0: i32) -> (i32, i32) {
    %c0_i32 = arith.constant 0 : i32
    %c0_i32_0 = arith.constant 0 : i32
    %c0_i32_1 = arith.constant 0 : i32
    return %c0_i32, %c0_i32_0 : i32, i32
  }
  func.func @transform_7(%arg0: i32) -> (i32, i32) {
    %c0_i32 = arith.constant 0 : i32
    %c0_i32_0 = arith.constant 0 : i32
    %c0_i32_1 = arith.constant 0 : i32
    return %c0_i32, %c0_i32_0 : i32, i32
  }
  func.func @transform_8(%arg0: i32) -> (i32, i32) {
    %c0_i32 = arith.constant 0 : i32
    %c0_i32_0 = arith.constant 0 : i32
    %c0_i32_1 = arith.constant 0 : i32
    return %c0_i32, %c0_i32_0 : i32, i32
  }
  func.func @transform_9(%arg0: i32) -> (i32, i32) {
    %c0_i32 = arith.constant 0 : i32
    %c0_i32_0 = arith.constant 0 : i32
    return %arg0, %c0_i32 : i32, i32
  }
  func.func @transform_10(%arg0: i32) -> (i32, i32) {
    %c0_i32 = arith.constant 0 : i32
    %c0_i32_0 = arith.constant 0 : i32
    return %arg0, %c0_i32 : i32, i32
  }
  func.func @transform_11(%arg0: i32) -> (i32, i32) {
    %c0_i32 = arith.constant 0 : i32
    %c0_i32_0 = arith.constant 0 : i32
    %c0_i32_1 = arith.constant 0 : i32
    return %c0_i32, %c0_i32_0 : i32, i32
  }
  func.func @transform_12(%arg0: i32) -> (i32, i32) {
    %c0_i32 = arith.constant 0 : i32
    %c0_i32_0 = arith.constant 0 : i32
    %c0_i32_1 = arith.constant 0 : i32
    return %c0_i32, %c0_i32_0 : i32, i32
  }
  func.func @transform_13(%arg0: i32) -> (i32, i32) {
    %c0_i32 = arith.constant 0 : i32
    %c0_i32_0 = arith.constant 0 : i32
    %c0_i32_1 = arith.constant 0 : i32
    return %c0_i32, %c0_i32_0 : i32, i32
  }
  func.func @transform_14(%arg0: i32) -> (i32, i32) {
    %c0_i32 = arith.constant 0 : i32
    %c0_i32_0 = arith.constant 0 : i32
    %c0_i32_1 = arith.constant 0 : i32
    return %c0_i32, %c0_i32_0 : i32, i32
  }
  func.func @transform_15(%arg0: i32) -> (i32, i32) {
    %c0_i32 = arith.constant 0 : i32
    %c0_i32_0 = arith.constant 0 : i32
    return %arg0, %c0_i32 : i32, i32
  }
}

</mosaic_0001>

<llo_original>
// kernel: tpu_custom_call.1
$region0: #{tpu_custom_call.1}
  #allocation0 [shape = 'u32[]', space=smem, size = 0x4, offset = 0x4, fixed_abs, tag = 'smem constant byte address 0x4 - core index']
  #allocation1 [shape = 'u32[144,128]{1,0:T(1,128)}', space=vmem, size = 0x12000, scoped, tag = 'internal scratch']
  %s0 = inlined_call_operand.vmem [shape: bf16[8,1024], index: 0, kind: input, shape index: {}]
  %s1 = inlined_call_operand.vmem [shape: bf16[256,448], index: 1, kind: input, shape index: {}]
  %s2 = inlined_call_operand.vmem [shape: f32[1,448], index: 2, kind: input, shape index: {}]
  %s3 = inlined_call_operand.vmem [shape: bf16[3136,32], index: 3, kind: input, shape index: {}]
  %s4 = inlined_call_operand.vmem [shape: f32[1,32], index: 4, kind: input, shape index: {}]
  %s5 = inlined_call_operand.vmem [shape: bf16[32,32], index: 5, kind: input, shape index: {}]
  %s6 = inlined_call_operand.vmem [shape: f32[1,32], index: 6, kind: input, shape index: {}]
  %s7 = inlined_call_operand.vmem [shape: bf16[64,128], index: 7, kind: input, shape index: {}]
  %s8 = inlined_call_operand.vmem [shape: f32[1,128], index: 8, kind: input, shape index: {}]
  %s9 = inlined_call_operand.vmem [shape: f32[8,32], index: 9, kind: input, shape index: {}]
  %s10 = inlined_call_operand.vmem [shape: f32[8,1], index: 10, kind: input, shape index: {}]
  %s11 = inlined_call_operand.vmem [shape: f32[1,32], index: 11, kind: input, shape index: {}]
  %s12 = inlined_call_operand.vmem [shape: f32[1,32], index: 12, kind: input, shape index: {}]
  %s13 = inlined_call_operand.vmem [shape: bf16[32,5], index: 13, kind: input, shape index: {}]
  %s14 = inlined_call_operand.vmem [shape: f32[1,5], index: 14, kind: input, shape index: {}]
  %s15 = inlined_call_operand.hbm [shape: f32[8,128], index: 15, kind: output, shape index: {}]
  %s16 = sld [smem:[#allocation0]]
  $region70: #{tpu_custom_call.1} parent=0
    _
  %s18 = ssub.s32 1, %s16
  %s19 = scalar_select 0, %s18, %s16
  $region1: #{tpu_custom_call.1} parent=0
    #allocation2 [shape = 'u8[4096]{0}', space=vmem, size = 0x1000, scoped, tag = 'output window, operand 0, single buffered']
    #allocation3 [shape = 's32[1]{0}', space=sflag, size = 0x4, scoped, tag = 'scoped memory for tpu_custom_call.1']
    %20 = vsyncpa [#allocation3], 0
    // Predicated region
    $region2: #{tpu_custom_call.1} parent=1 // pred_check
      _
    $region3: #{tpu_custom_call.1} parent=1 // pred_check_branch
      %22 = sbr.rel (0) target = $region5
    $region4: #{tpu_custom_call.1} parent=1 // pred_region
      _
    $region5: #{tpu_custom_call.1} parent=1 // pred_fallthru
      _
    // Predicated region
    $region6: #{tpu_custom_call.1} parent=1 // pred_check
      _
    $region7: #{tpu_custom_call.1} parent=1 // pred_check_branch
      %24 = sbr.rel (0) target = $region9
    $region8: #{tpu_custom_call.1} parent=1 // pred_region
      _
    $region9: #{tpu_custom_call.1} parent=1 // pred_fallthru
      _
    // Predicated region
    $region10: #{tpu_custom_call.1} parent=1 // pred_check
      _
    $region11: #{tpu_custom_call.1} parent=1 // pred_check_branch
      %26 = sbr.rel (0) target = $region13
    $region12: #{tpu_custom_call.1} parent=1 // pred_region
      _
    $region13: #{tpu_custom_call.1} parent=1 // pred_fallthru
      _
    // Predicated region
    $region14: #{tpu_custom_call.1} parent=1 // pred_check
      _
    $region15: #{tpu_custom_call.1} parent=1 // pred_check_branch
      %28 = sbr.rel (0) target = $region17
    $region16: #{tpu_custom_call.1} parent=1 // pred_region
      _
    $region17: #{tpu_custom_call.1} parent=1 // pred_fallthru
      _
    // Predicated region
    $region18: #{tpu_custom_call.1} parent=1 // pred_check
      _
    $region19: #{tpu_custom_call.1} parent=1 // pred_check_branch
      %30 = sbr.rel (0) target = $region21
    $region20: #{tpu_custom_call.1} parent=1 // pred_region
      _
    $region21: #{tpu_custom_call.1} parent=1 // pred_fallthru
      _
    // Predicated region
    $region22: #{tpu_custom_call.1} parent=1 // pred_check
      _
    $region23: #{tpu_custom_call.1} parent=1 // pred_check_branch
      %32 = sbr.rel (0) target = $region25
    $region24: #{tpu_custom_call.1} parent=1 // pred_region
      _
    $region25: #{tpu_custom_call.1} parent=1 // pred_fallthru
      _
    // Predicated region
    $region26: #{tpu_custom_call.1} parent=1 // pred_check
      _
    $region27: #{tpu_custom_call.1} parent=1 // pred_check_branch
      %34 = sbr.rel (0) target = $region29
    $region28: #{tpu_custom_call.1} parent=1 // pred_region
      _
    $region29: #{tpu_custom_call.1} parent=1 // pred_fallthru
      _
    // Predicated region
    $region30: #{tpu_custom_call.1} parent=1 // pred_check
      _
    $region31: #{tpu_custom_call.1} parent=1 // pred_check_branch
      %36 = sbr.rel (0) target = $region33
    $region32: #{tpu_custom_call.1} parent=1 // pred_region
      _
    $region33: #{tpu_custom_call.1} parent=1 // pred_fallthru
      _
    // Predicated region
    $region34: #{tpu_custom_call.1} parent=1 // pred_check
      _
    $region35: #{tpu_custom_call.1} parent=1 // pred_check_branch
      %38 = sbr.rel (0) target = $region37
    $region36: #{tpu_custom_call.1} parent=1 // pred_region
      _
    $region37: #{tpu_custom_call.1} parent=1 // pred_fallthru
      _
    // Predicated region
    $region38: #{tpu_custom_call.1} parent=1 // pred_check
      _
    $region39: #{tpu_custom_call.1} parent=1 // pred_check_branch
      %40 = sbr.rel (0) target = $region41
    $region40: #{tpu_custom_call.1} parent=1 // pred_region
      _
    $region41: #{tpu_custom_call.1} parent=1 // pred_fallthru
      _
    // Predicated region
    $region42: #{tpu_custom_call.1} parent=1 // pred_check
      _
    $region43: #{tpu_custom_call.1} parent=1 // pred_check_branch
      %42 = sbr.rel (0) target = $region45
    $region44: #{tpu_custom_call.1} parent=1 // pred_region
      _
    $region45: #{tpu_custom_call.1} parent=1 // pred_fallthru
      _
    // Predicated region
    $region46: #{tpu_custom_call.1} parent=1 // pred_check
      _
    $region47: #{tpu_custom_call.1} parent=1 // pred_check_branch
      %44 = sbr.rel (0) target = $region49
    $region48: #{tpu_custom_call.1} parent=1 // pred_region
      _
    $region49: #{tpu_custom_call.1} parent=1 // pred_fallthru
      _
    // Predicated region
    $region50: #{tpu_custom_call.1} parent=1 // pred_check
      _
    $region51: #{tpu_custom_call.1} parent=1 // pred_check_branch
      %46 = sbr.rel (0) target = $region53
    $region52: #{tpu_custom_call.1} parent=1 // pred_region
      _
    $region53: #{tpu_custom_call.1} parent=1 // pred_fallthru
      _
    // Predicated region
    $region54: #{tpu_custom_call.1} parent=1 // pred_check
      _
    $region55: #{tpu_custom_call.1} parent=1 // pred_check_branch
      %48 = sbr.rel (0) target = $region57
    $region56: #{tpu_custom_call.1} parent=1 // pred_region
      _
    $region57: #{tpu_custom_call.1} parent=1 // pred_fallthru
      _
    // Predicated region
    $region58: #{tpu_custom_call.1} parent=1 // pred_check
      _
    $region59: #{tpu_custom_call.1} parent=1 // pred_check_branch
      %50 = sbr.rel (0) target = $region61
    $region60: #{tpu_custom_call.1} parent=1 // pred_region
      _
    $region61: #{tpu_custom_call.1} parent=1 // pred_fallthru
      _
    %v52 = vld [vmem:[%s1] sm:$0xff]
    %v53 = vld [vmem:[%s1 + $0x8] sm:$0xff]
    %v54 = vld [vmem:[%s1 + $0x10] sm:$0xff]
    %v55 = vld [vmem:[%s1 + $0x18] sm:$0xff]
    %v56 = vld [vmem:[%s1 + $0x20] sm:$0xff]
    %v57 = vld [vmem:[%s1 + $0x28] sm:$0xff]
    %v58 = vld [vmem:[%s1 + $0x30] sm:$0xff]
    %v59 = vld [vmem:[%s1 + $0x38] sm:$0xff]
    %v60 = vld [vmem:[%s1 + $0x40] sm:$0xff]
    %v61 = vld [vmem:[%s1 + $0x48] sm:$0xff]
    %v62 = vld [vmem:[%s1 + $0x50] sm:$0xff]
    %v63 = vld [vmem:[%s1 + $0x58] sm:$0xff]
    %v64 = vld [vmem:[%s1 + $0x60] sm:$0xff]
    %v65 = vld [vmem:[%s1 + $0x68] sm:$0xff]
    %v66 = vld [vmem:[%s1 + $0x70] sm:$0xff]
    %v67 = vld [vmem:[%s1 + $0x78] sm:$0xff]
    %v68 = vld [vmem:[%s1 + $0x80] sm:$0xff]
    %v69 = vld [vmem:[%s1 + $0x88] sm:$0xff]
    %v70 = vld [vmem:[%s1 + $0x90] sm:$0xff]
    %v71 = vld [vmem:[%s1 + $0x98] sm:$0xff]
    %v72 = vld [vmem:[%s1 + $0xa0] sm:$0xff]
    %v73 = vld [vmem:[%s1 + $0xa8] sm:$0xff]
    %v74 = vld [vmem:[%s1 + $0xb0] sm:$0xff]
    %v75 = vld [vmem:[%s1 + $0xb8] sm:$0xff]
    %v76 = vld [vmem:[%s1 + $0xc0] sm:$0xff]
    %v77 = vld [vmem:[%s1 + $0xc8] sm:$0xff]
    %v78 = vld [vmem:[%s1 + $0xd0] sm:$0xff]
    %v79 = vld [vmem:[%s1 + $0xd8] sm:$0xff]
    %v80 = vld [vmem:[%s1 + $0xe0] sm:$0xff]
    %v81 = vld [vmem:[%s1 + $0xe8] sm:$0xff]
    %v82 = vld [vmem:[%s1 + $0xf0] sm:$0xff]
    %v83 = vld [vmem:[%s1 + $0xf8] sm:$0xff]
    %v84 = vld [vmem:[%s1 + $0x100] sm:$0xff]
    %v85 = vld [vmem:[%s1 + $0x108] sm:$0xff]
    %v86 = vld [vmem:[%s1 + $0x110] sm:$0xff]
    %v87 = vld [vmem:[%s1 + $0x118] sm:$0xff]
    %v88 = vld [vmem:[%s1 + $0x120] sm:$0xff]
    %v89 = vld [vmem:[%s1 + $0x128] sm:$0xff]
    %v90 = vld [vmem:[%s1 + $0x130] sm:$0xff]
    %v91 = vld [vmem:[%s1 + $0x138] sm:$0xff]
    %v92 = vld [vmem:[%s1 + $0x140] sm:$0xff]
    %v93 = vld [vmem:[%s1 + $0x148] sm:$0xff]
    %v94 = vld [vmem:[%s1 + $0x150] sm:$0xff]
    %v95 = vld [vmem:[%s1 + $0x158] sm:$0xff]
    %v96 = vld [vmem:[%s1 + $0x160] sm:$0xff]
    %v97 = vld [vmem:[%s1 + $0x168] sm:$0xff]
    %v98 = vld [vmem:[%s1 + $0x170] sm:$0xff]
    %v99 = vld [vmem:[%s1 + $0x178] sm:$0xff]
    %v100 = vld [vmem:[%s1 + $0x180] sm:$0xff]
    %v101 = vld [vmem:[%s1 + $0x188] sm:$0xff]
    %v102 = vld [vmem:[%s1 + $0x190] sm:$0xff]
    %v103 = vld [vmem:[%s1 + $0x198] sm:$0xff]
    %v104 = vld [vmem:[%s1 + $0x1a0] sm:$0xff]
    %v105 = vld [vmem:[%s1 + $0x1a8] sm:$0xff]
    %v106 = vld [vmem:[%s1 + $0x1b0] sm:$0xff]
    %v107 = vld [vmem:[%s1 + $0x1b8] sm:$0xff]
    %v108 = vld [vmem:[%s1 + $0x1c0] sm:$0xff]
    %v109 = vld [vmem:[%s1 + $0x1c8] sm:$0xff]
    %v110 = vld [vmem:[%s1 + $0x1d0] sm:$0xff]
    %v111 = vld [vmem:[%s1 + $0x1d8] sm:$0xff]
    %v112 = vld [vmem:[%s1 + $0x1e0] sm:$0xff]
    %v113 = vld [vmem:[%s1 + $0x1e8] sm:$0xff]
    %v114 = vld [vmem:[%s1 + $0x1f0] sm:$0xff]
    %v115 = vld [vmem:[%s1 + $0x1f8] sm:$0xff]
    %v116 = vld [vmem:[%s2] sm:$0xf]
    %v118 = vlaneseq
    %v119 = vshrl.u32 %v118, 7
    %v120 = vsub.s32 0, %v119
    %v121 = vrot.slane %v116, %v120
    %v122 = vlaneseq
    %v123 = vshrl.u32 %v122, 7
    %v124 = vsub.s32 1, %v123
    %v125 = vrot.slane %v116, %v124
    %v126 = vlaneseq
    %v127 = vshrl.u32 %v126, 7
    %v128 = vsub.s32 2, %v127
    %v129 = vrot.slane %v116, %v128
    %v130 = vlaneseq
    %v131 = vshrl.u32 %v130, 7
    %v132 = vsub.s32 3, %v131
    %v133 = vrot.slane %v116, %v132
    %v138 = vld [vmem:[%s0] sm:$0xff]
    %v140 = vunpack.c.l.b16 %v138
    %v141 = vunpack.c.h.b16 %v138
    %v142 = vpack.c.b16 %v140, %v140
    %v143 = vpack.c.b16 %v141, %v141
    %v210 = vunpack.c.l.b16 %v52
    %v211 = vunpack.c.h.b16 %v52
    %v212 = vunpack.c.l.b16 %v53
    %v213 = vunpack.c.h.b16 %v53
    %v214 = vunpack.c.l.b16 %v54
    %v215 = vunpack.c.h.b16 %v54
    %v216 = vunpack.c.l.b16 %v55
    %v217 = vunpack.c.h.b16 %v55
    %v218 = vunpack.c.l.b16 %v56
    %v219 = vunpack.c.h.b16 %v56
    %v220 = vunpack.c.l.b16 %v57
    %v221 = vunpack.c.h.b16 %v57
    %v222 = vunpack.c.l.b16 %v58
    %v223 = vunpack.c.h.b16 %v58
    %v224 = vunpack.c.l.b16 %v59
    %v225 = vunpack.c.h.b16 %v59
    %v226 = vunpack.c.l.b16 %v60
    %v227 = vunpack.c.h.b16 %v60
    %v228 = vunpack.c.l.b16 %v61
    %v229 = vunpack.c.h.b16 %v61
    %v230 = vunpack.c.l.b16 %v62
    %v231 = vunpack.c.h.b16 %v62
    %v232 = vunpack.c.l.b16 %v63
    %v233 = vunpack.c.h.b16 %v63
    %v234 = vunpack.c.l.b16 %v64
    %v235 = vunpack.c.h.b16 %v64
    %v236 = vunpack.c.l.b16 %v65
    %v237 = vunpack.c.h.b16 %v65
    %v238 = vunpack.c.l.b16 %v66
    %v239 = vunpack.c.h.b16 %v66
    %v240 = vunpack.c.l.b16 %v67
    %v241 = vunpack.c.h.b16 %v67
    %v242 = vunpack.c.l.b16 %v68
    %v243 = vunpack.c.h.b16 %v68
    %v244 = vunpack.c.l.b16 %v69
    %v245 = vunpack.c.h.b16 %v69
    %v246 = vunpack.c.l.b16 %v70
    %v247 = vunpack.c.h.b16 %v70
    %v248 = vunpack.c.l.b16 %v71
    %v249 = vunpack.c.h.b16 %v71
    %v250 = vunpack.c.l.b16 %v72
    %v251 = vunpack.c.h.b16 %v72
    %v252 = vunpack.c.l.b16 %v73
    %v253 = vunpack.c.h.b16 %v73
    %v254 = vunpack.c.l.b16 %v74
    %v255 = vunpack.c.h.b16 %v74
    %v256 = vunpack.c.l.b16 %v75
    %v257 = vunpack.c.h.b16 %v75
    %v258 = vunpack.c.l.b16 %v76
    %v259 = vunpack.c.h.b16 %v76
    %v260 = vunpack.c.l.b16 %v77
    %v261 = vunpack.c.h.b16 %v77
    %v262 = vunpack.c.l.b16 %v78
    %v263 = vunpack.c.h.b16 %v78
    %v264 = vunpack.c.l.b16 %v79
    %v265 = vunpack.c.h.b16 %v79
    %v266 = vunpack.c.l.b16 %v80
    %v267 = vunpack.c.h.b16 %v80
    %v268 = vunpack.c.l.b16 %v81
    %v269 = vunpack.c.h.b16 %v81
    %v270 = vunpack.c.l.b16 %v82
    %v271 = vunpack.c.h.b16 %v82
    %v272 = vunpack.c.l.b16 %v83
    %v273 = vunpack.c.h.b16 %v83
    %v274 = vunpack.c.l.b16 %v84
    %v275 = vunpack.c.h.b16 %v84
    %v276 = vunpack.c.l.b16 %v85
    %v277 = vunpack.c.h.b16 %v85
    %v278 = vunpack.c.l.b16 %v86
    %v279 = vunpack.c.h.b16 %v86
    %v280 = vunpack.c.l.b16 %v87
    %v281 = vunpack.c.h.b16 %v87
    %v282 = vunpack.c.l.b16 %v88
    %v283 = vunpack.c.h.b16 %v88
    %v284 = vunpack.c.l.b16 %v89
    %v285 = vunpack.c.h.b16 %v89
    %v286 = vunpack.c.l.b16 %v90
    %v287 = vunpack.c.h.b16 %v90
    %v288 = vunpack.c.l.b16 %v91
    %v289 = vunpack.c.h.b16 %v91
    %v290 = vunpack.c.l.b16 %v92
    %v291 = vunpack.c.h.b16 %v92
    %v292 = vunpack.c.l.b16 %v93
    %v293 = vunpack.c.h.b16 %v93
    %v294 = vunpack.c.l.b16 %v94
    %v295 = vunpack.c.h.b16 %v94
    %v296 = vunpack.c.l.b16 %v95
    %v297 = vunpack.c.h.b16 %v95
    %v298 = vunpack.c.l.b16 %v96
    %v299 = vunpack.c.h.b16 %v96
    %v300 = vunpack.c.l.b16 %v97
    %v301 = vunpack.c.h.b16 %v97
    %v302 = vunpack.c.l.b16 %v98
    %v303 = vunpack.c.h.b16 %v98
    %v304 = vunpack.c.l.b16 %v99
    %v305 = vunpack.c.h.b16 %v99
    %v306 = vunpack.c.l.b16 %v100
    %v307 = vunpack.c.h.b16 %v100
    %v308 = vunpack.c.l.b16 %v101
    %v309 = vunpack.c.h.b16 %v101
    %v310 = vunpack.c.l.b16 %v102
    %v311 = vunpack.c.h.b16 %v102
    %v312 = vunpack.c.l.b16 %v103
    %v313 = vunpack.c.h.b16 %v103
    %v314 = vunpack.c.l.b16 %v104
    %v315 = vunpack.c.h.b16 %v104
    %v316 = vunpack.c.l.b16 %v105
    %v317 = vunpack.c.h.b16 %v105
    %v318 = vunpack.c.l.b16 %v106
    %v319 = vunpack.c.h.b16 %v106
    %v320 = vunpack.c.l.b16 %v107
    %v321 = vunpack.c.h.b16 %v107
    %v322 = vunpack.c.l.b16 %v108
    %v323 = vunpack.c.h.b16 %v108
    %v324 = vunpack.c.l.b16 %v109
    %v325 = vunpack.c.h.b16 %v109
    %v326 = vunpack.c.l.b16 %v110
    %v327 = vunpack.c.h.b16 %v110
    %v328 = vunpack.c.l.b16 %v111
    %v329 = vunpack.c.h.b16 %v111
    %v330 = vunpack.c.l.b16 %v112
    %v331 = vunpack.c.h.b16 %v112
    %v332 = vunpack.c.l.b16 %v113
    %v333 = vunpack.c.h.b16 %v113
    %v334 = vunpack.c.l.b16 %v114
    %v335 = vunpack.c.h.b16 %v114
    %v336 = vunpack.c.l.b16 %v115
    %v337 = vunpack.c.h.b16 %v115
    %v338 = vpack.c.b16 %v214, %v210
    %v339 = vpack.c.b16 %v215, %v211
    %v340 = vpack.c.b16 %v216, %v212
    %v341 = vpack.c.b16 %v217, %v213
    %v342 = vpack.c.b16 %v222, %v218
    %v343 = vpack.c.b16 %v223, %v219
    %v344 = vpack.c.b16 %v224, %v220
    %v345 = vpack.c.b16 %v225, %v221
    %v346 = vpack.c.b16 %v230, %v226
    %v347 = vpack.c.b16 %v231, %v227
    %v348 = vpack.c.b16 %v232, %v228
    %v349 = vpack.c.b16 %v233, %v229
    %v350 = vpack.c.b16 %v238, %v234
    %v351 = vpack.c.b16 %v239, %v235
    %v352 = vpack.c.b16 %v240, %v236
    %v353 = vpack.c.b16 %v241, %v237
    %v354 = vpack.c.b16 %v246, %v242
    %v355 = vpack.c.b16 %v247, %v243
    %v356 = vpack.c.b16 %v248, %v244
    %v357 = vpack.c.b16 %v249, %v245
    %v358 = vpack.c.b16 %v254, %v250
    %v359 = vpack.c.b16 %v255, %v251
    %v360 = vpack.c.b16 %v256, %v252
    %v361 = vpack.c.b16 %v257, %v253
    %v362 = vpack.c.b16 %v262, %v258
    %v363 = vpack.c.b16 %v263, %v259
    %v364 = vpack.c.b16 %v264, %v260
    %v365 = vpack.c.b16 %v265, %v261
    %v366 = vpack.c.b16 %v270, %v266
    %v367 = vpack.c.b16 %v271, %v267
    %v368 = vpack.c.b16 %v272, %v268
    %v369 = vpack.c.b16 %v273, %v269
    %v370 = vpack.c.b16 %v278, %v274
    %v371 = vpack.c.b16 %v279, %v275
    %v372 = vpack.c.b16 %v280, %v276
    %v373 = vpack.c.b16 %v281, %v277
    %v374 = vpack.c.b16 %v286, %v282
    %v375 = vpack.c.b16 %v287, %v283
    %v376 = vpack.c.b16 %v288, %v284
    %v377 = vpack.c.b16 %v289, %v285
    %v378 = vpack.c.b16 %v294, %v290
    %v379 = vpack.c.b16 %v295, %v291
    %v380 = vpack.c.b16 %v296, %v292
    %v381 = vpack.c.b16 %v297, %v293
    %v382 = vpack.c.b16 %v302, %v298
    %v383 = vpack.c.b16 %v303, %v299
    %v384 = vpack.c.b16 %v304, %v300
    %v385 = vpack.c.b16 %v305, %v301
    %v386 = vpack.c.b16 %v310, %v306
    %v387 = vpack.c.b16 %v311, %v307
    %v388 = vpack.c.b16 %v312, %v308
    %v389 = vpack.c.b16 %v313, %v309
    %v390 = vpack.c.b16 %v318, %v314
    %v391 = vpack.c.b16 %v319, %v315
    %v392 = vpack.c.b16 %v320, %v316
    %v393 = vpack.c.b16 %v321, %v317
    %v394 = vpack.c.b16 %v326, %v322
    %v395 = vpack.c.b16 %v327, %v323
    %v396 = vpack.c.b16 %v328, %v324
    %v397 = vpack.c.b16 %v329, %v325
    %v398 = vpack.c.b16 %v334, %v330
    %v399 = vpack.c.b16 %v335, %v331
    %v400 = vpack.c.b16 %v336, %v332
    %v401 = vpack.c.b16 %v337, %v333
    %466 = vmatprep.subr.bf16.mxu0 %v339
    %467 = vmatpush1.bf16.msra.mxu0 %v338
    %468 = vmatprep.subr.bf16.mxu0 %v343
    %469 = vmatpush1.bf16.msra.mxu0 %v342
    %470 = vmatprep.subr.bf16.mxu0 %v347
    %471 = vmatpush1.bf16.msra.mxu0 %v346
    %472 = vmatprep.subr.bf16.mxu0 %v351
    %473 = vmatpush1.bf16.msra.mxu0 %v350
    %474 = vmatprep.subr.bf16.mxu0 %v355
    %475 = vmatpush1.bf16.msra.mxu0 %v354
    %476 = vmatprep.subr.bf16.mxu0 %v359
    %477 = vmatpush1.bf16.msra.mxu0 %v358
    %478 = vmatprep.subr.bf16.mxu0 %v363
    %479 = vmatpush1.bf16.msra.mxu0 %v362
    %480 = vmatprep.subr.bf16.mxu0 %v367
    %481 = vmatpush1.bf16.msra.mxu0 %v366
    %482 = vmatprep.subr.bf16.mxu0 %v371
    %483 = vmatpush1.bf16.msra.mxu0 %v370
    %484 = vmatprep.subr.bf16.mxu0 %v375
    %485 = vmatpush1.bf16.msra.mxu0 %v374
    %486 = vmatprep.subr.bf16.mxu0 %v379
    %487 = vmatpush1.bf16.msra.mxu0 %v378
    %488 = vmatprep.subr.bf16.mxu0 %v383
    %489 = vmatpush1.bf16.msra.mxu0 %v382
    %490 = vmatprep.subr.bf16.mxu0 %v387
    %491 = vmatpush1.bf16.msra.mxu0 %v386
    %492 = vmatprep.subr.bf16.mxu0 %v391
    %493 = vmatpush1.bf16.msra.mxu0 %v390
    %494 = vmatprep.subr.bf16.mxu0 %v395
    %495 = vmatpush1.bf16.msra.mxu0 %v394
    %496 = vmatprep.subr.bf16.mxu0 %v399
    %497 = vmatpush1.bf16.msra.mxu0 %v398
    %498 = vmatprep.mubr.bf16.mxu0 %v143
    %499 = vmatmul.mubr.bf16.gmra.mrb[0].mxu0 %v142
    %v500 = vpop.f32.mrb[0].mxu0
    %v501 = vadd.f32 %v121, %v500
    %v502 = vpop.f32.mrb[0].mxu0
    %v503 = vadd.f32 %v125, %v502
    %v504 = vpop.f32.mrb[0].mxu0
    %v505 = vpop.f32.mrb[0].mxu0
    %506 = vdwg.mxu0
    %507 = vmatprep.subr.bf16.mxu0 %v341
    %508 = vmatpush1.bf16.msra.mxu0 %v340
    %509 = vmatprep.subr.bf16.mxu0 %v345
    %510 = vmatpush1.bf16.msra.mxu0 %v344
    %511 = vmatprep.subr.bf16.mxu0 %v349
    %512 = vmatpush1.bf16.msra.mxu0 %v348
    %513 = vmatprep.subr.bf16.mxu0 %v353
    %514 = vmatpush1.bf16.msra.mxu0 %v352
    %515 = vmatprep.subr.bf16.mxu0 %v357
    %516 = vmatpush1.bf16.msra.mxu0 %v356
    %517 = vmatprep.subr.bf16.mxu0 %v361
    %518 = vmatpush1.bf16.msra.mxu0 %v360
    %519 = vmatprep.subr.bf16.mxu0 %v365
    %520 = vmatpush1.bf16.msra.mxu0 %v364
    %521 = vmatprep.subr.bf16.mxu0 %v369
    %522 = vmatpush1.bf16.msra.mxu0 %v368
    %523 = vmatprep.subr.bf16.mxu0 %v373
    %524 = vmatpush1.bf16.msra.mxu0 %v372
    %525 = vmatprep.subr.bf16.mxu0 %v377
    %526 = vmatpush1.bf16.msra.mxu0 %v376
    %527 = vmatprep.subr.bf16.mxu0 %v381
    %528 = vmatpush1.bf16.msra.mxu0 %v380
    %529 = vmatprep.subr.bf16.mxu0 %v385
    %530 = vmatpush1.bf16.msra.mxu0 %v384
    %531 = vmatprep.subr.bf16.mxu0 %v389
    %532 = vmatpush1.bf16.msra.mxu0 %v388
    %533 = vmatprep.subr.bf16.mxu0 %v393
    %534 = vmatpush1.bf16.msra.mxu0 %v392
    %535 = vmatprep.subr.bf16.mxu0 %v397
    %536 = vmatpush1.bf16.msra.mxu0 %v396
    %537 = vmatprep.subr.bf16.mxu0 %v401
    %538 = vmatpush1.bf16.msra.mxu0 %v400
    %539 = vmatprep.mubr.bf16.mxu0 %v143
    %540 = vmatmul.mubr.bf16.gmra.mrb[0].mxu0 %v142
    %v541 = vpop.f32.mrb[0].mxu0
    %v542 = vadd.f32 %v129, %v541
    %v543 = vpop.f32.mrb[0].mxu0
    %v544 = vadd.f32 %v133, %v543
    %v545 = vpop.f32.mrb[0].mxu0
    %v546 = vpop.f32.mrb[0].mxu0
    %547 = vdwg.mxu0
    %v548 = vmax.f32 %v501, 0.0
    %v549 = vmax.f32 %v503, 0.0
    %v550 = vmax.f32 %v542, 0.0
    %v551 = vmax.f32 %v544, 0.0
    %v552 = vpack.c.bf16 %v548, %v548
    %v553 = vpack.c.bf16 %v549, %v549
    %v554 = vpack.c.bf16 %v550, %v550
    %v555 = vpack.c.bf16 %v551, %v551
    %v556 = vld [vmem:[%s3] sm:$0xf]
    %v557 = vld [vmem:[%s3 + $0x4] sm:$0xf]
    %v558 = vld [vmem:[%s3 + $0x8] sm:$0xf]
    %v559 = vld [vmem:[%s3 + $0xc] sm:$0xf]
    %v560 = vld [vmem:[%s3 + $0x10] sm:$0xf]
    %v561 = vld [vmem:[%s3 + $0x14] sm:$0xf]
    %v562 = vld [vmem:[%s3 + $0x18] sm:$0xf]
    %v563 = vld [vmem:[%s3 + $0x1c] sm:$0xf]
    %v564 = vld [vmem:[%s3 + $0x20] sm:$0xf]
    %v565 = vld [vmem:[%s3 + $0x24] sm:$0xf]
    %v566 = vld [vmem:[%s3 + $0x28] sm:$0xf]
    %v567 = vld [vmem:[%s3 + $0x2c] sm:$0xf]
    %v568 = vld [vmem:[%s3 + $0x30] sm:$0xf]
    %v569 = vld [vmem:[%s3 + $0x34] sm:$0xf]
    %v570 = vld [vmem:[%s3 + $0x38] sm:$0xf]
    %v571 = vld [vmem:[%s3 + $0x3c] sm:$0xf]
    %v572 = vld [vmem:[%s3 + $0x40] sm:$0xf]
    %v573 = vld [vmem:[%s3 + $0x44] sm:$0xf]
    %v574 = vld [vmem:[%s3 + $0x48] sm:$0xf]
    %v575 = vld [vmem:[%s3 + $0x4c] sm:$0xf]
    %v576 = vld [vmem:[%s3 + $0x50] sm:$0xf]
    %v577 = vld [vmem:[%s3 + $0x54] sm:$0xf]
    %v578 = vld [vmem:[%s3 + $0x58] sm:$0xf]
    %v579 = vld [vmem:[%s3 + $0x5c] sm:$0xf]
    %v580 = vld [vmem:[%s3 + $0x60] sm:$0xf]
    %v581 = vld [vmem:[%s3 + $0x64] sm:$0xf]
    %v582 = vld [vmem:[%s3 + $0x68] sm:$0xf]
    %v583 = vld [vmem:[%s3 + $0x6c] sm:$0xf]
    %v584 = vld [vmem:[%s3 + $0x70] sm:$0xf]
    %v585 = vld [vmem:[%s3 + $0x74] sm:$0xf]
    %v586 = vld [vmem:[%s3 + $0x78] sm:$0xf]
    %v587 = vld [vmem:[%s3 + $0x7c] sm:$0xf]
    %v588 = vld [vmem:[%s3 + $0x80] sm:$0xf]
    %v589 = vld [vmem:[%s3 + $0x84] sm:$0xf]
    %v590 = vld [vmem:[%s3 + $0x88] sm:$0xf]
    %v591 = vld [vmem:[%s3 + $0x8c] sm:$0xf]
    %v592 = vld [vmem:[%s3 + $0x90] sm:$0xf]
    %v593 = vld [vmem:[%s3 + $0x94] sm:$0xf]
    %v594 = vld [vmem:[%s3 + $0x98] sm:$0xf]
    %v595 = vld [vmem:[%s3 + $0x9c] sm:$0xf]
    %v596 = vld [vmem:[%s3 + $0xa0] sm:$0xf]
    %v597 = vld [vmem:[%s3 + $0xa4] sm:$0xf]
    %v598 = vld [vmem:[%s3 + $0xa8] sm:$0xf]
    %v599 = vld [vmem:[%s3 + $0xac] sm:$0xf]
    %v600 = vld [vmem:[%s3 + $0xb0] sm:$0xf]
    %v601 = vld [vmem:[%s3 + $0xb4] sm:$0xf]
    %v602 = vld [vmem:[%s3 + $0xb8] sm:$0xf]
    %v603 = vld [vmem:[%s3 + $0xbc] sm:$0xf]
    %v604 = vld [vmem:[%s3 + $0xc0] sm:$0xf]
    %v605 = vld [vmem:[%s3 + $0xc4] sm:$0xf]
    %v606 = vld [vmem:[%s3 + $0xc8] sm:$0xf]
    %v607 = vld [vmem:[%s3 + $0xcc] sm:$0xf]
    %v608 = vld [vmem:[%s3 + $0xd0] sm:$0xf]
    %v609 = vld [vmem:[%s3 + $0xd4] sm:$0xf]
    %v610 = vld [vmem:[%s3 + $0xd8] sm:$0xf]
    %v611 = vld [vmem:[%s3 + $0xdc] sm:$0xf]
    %v612 = vld [vmem:[%s0 + $0x4] sm:$0xff]
    %v614 = vunpack.c.l.b16 %v612
    %v615 = vunpack.c.h.b16 %v612
    %v616 = vpack.c.b16 %v614, %v614
    %v617 = vpack.c.b16 %v615, %v615
    %620 = vmatprep.subr.bf16.mxu0 %v339
    %621 = vmatpush1.bf16.msra.mxu0 %v338
    %622 = vmatprep.subr.bf16.mxu0 %v343
    %623 = vmatpush1.bf16.msra.mxu0 %v342
    %624 = vmatprep.subr.bf16.mxu0 %v347
    %625 = vmatpush1.bf16.msra.mxu0 %v346
    %626 = vmatprep.subr.bf16.mxu0 %v351
    %627 = vmatpush1.bf16.msra.mxu0 %v350
    %628 = vmatprep.subr.bf16.mxu0 %v355
    %629 = vmatpush1.bf16.msra.mxu0 %v354
    %630 = vmatprep.subr.bf16.mxu0 %v359
    %631 = vmatpush1.bf16.msra.mxu0 %v358
    %632 = vmatprep.subr.bf16.mxu0 %v363
    %633 = vmatpush1.bf16.msra.mxu0 %v362
    %634 = vmatprep.subr.bf16.mxu0 %v367
    %635 = vmatpush1.bf16.msra.mxu0 %v366
    %636 = vmatprep.subr.bf16.mxu0 %v371
    %637 = vmatpush1.bf16.msra.mxu0 %v370
    %638 = vmatprep.subr.bf16.mxu0 %v375
    %639 = vmatpush1.bf16.msra.mxu0 %v374
    %640 = vmatprep.subr.bf16.mxu0 %v379
    %641 = vmatpush1.bf16.msra.mxu0 %v378
    %642 = vmatprep.subr.bf16.mxu0 %v383
    %643 = vmatpush1.bf16.msra.mxu0 %v382
    %644 = vmatprep.subr.bf16.mxu0 %v387
    %645 = vmatpush1.bf16.msra.mxu0 %v386
    %646 = vmatprep.subr.bf16.mxu0 %v391
    %647 = vmatpush1.bf16.msra.mxu0 %v390
    %648 = vmatprep.subr.bf16.mxu0 %v395
    %649 = vmatpush1.bf16.msra.mxu0 %v394
    %650 = vmatprep.subr.bf16.mxu0 %v399
    %651 = vmatpush1.bf16.msra.mxu0 %v398
    %652 = vmatprep.mubr.bf16.mxu0 %v617
    %653 = vmatmul.mubr.bf16.gmra.mrb[0].mxu0 %v616
    %v654 = vpop.f32.mrb[0].mxu0
    %v655 = vadd.f32 %v121, %v654
    %v656 = vpop.f32.mrb[0].mxu0
    %v657 = vadd.f32 %v125, %v656
    %v658 = vpop.f32.mrb[0].mxu0
    %v659 = vpop.f32.mrb[0].mxu0
    %660 = vdwg.mxu0
    %661 = vmatprep.subr.bf16.mxu0 %v341
    %662 = vmatpush1.bf16.msra.mxu0 %v340
    %663 = vmatprep.subr.bf16.mxu0 %v345
    %664 = vmatpush1.bf16.msra.mxu0 %v344
    %665 = vmatprep.subr.bf16.mxu0 %v349
    %666 = vmatpush1.bf16.msra.mxu0 %v348
    %667 = vmatprep.subr.bf16.mxu0 %v353
    %668 = vmatpush1.bf16.msra.mxu0 %v352
    %669 = vmatprep.subr.bf16.mxu0 %v357
    %670 = vmatpush1.bf16.msra.mxu0 %v356
    %671 = vmatprep.subr.bf16.mxu0 %v361
    %672 = vmatpush1.bf16.msra.mxu0 %v360
    %673 = vmatprep.subr.bf16.mxu0 %v365
    %674 = vmatpush1.bf16.msra.mxu0 %v364
    %675 = vmatprep.subr.bf16.mxu0 %v369
    %676 = vmatpush1.bf16.msra.mxu0 %v368
    %677 = vmatprep.subr.bf16.mxu0 %v373
    %678 = vmatpush1.bf16.msra.mxu0 %v372
    %679 = vmatprep.subr.bf16.mxu0 %v377
    %680 = vmatpush1.bf16.msra.mxu0 %v376
    %681 = vmatprep.subr.bf16.mxu0 %v381
    %682 = vmatpush1.bf16.msra.mxu0 %v380
    %683 = vmatprep.subr.bf16.mxu0 %v385
    %684 = vmatpush1.bf16.msra.mxu0 %v384
    %685 = vmatprep.subr.bf16.mxu0 %v389
    %686 = vmatpush1.bf16.msra.mxu0 %v388
    %687 = vmatprep.subr.bf16.mxu0 %v393
    %688 = vmatpush1.bf16.msra.mxu0 %v392
    %689 = vmatprep.subr.bf16.mxu0 %v397
    %690 = vmatpush1.bf16.msra.mxu0 %v396
    %691 = vmatprep.subr.bf16.mxu0 %v401
    %692 = vmatpush1.bf16.msra.mxu0 %v400
    %693 = vmatprep.mubr.bf16.mxu0 %v617
    %694 = vmatmul.mubr.bf16.gmra.mrb[0].mxu0 %v616
    %v695 = vpop.f32.mrb[0].mxu0
    %v696 = vadd.f32 %v129, %v695
    %v697 = vpop.f32.mrb[0].mxu0
    %v698 = vadd.f32 %v133, %v697
    %v699 = vpop.f32.mrb[0].mxu0
    %v700 = vpop.f32.mrb[0].mxu0
    %701 = vdwg.mxu0
    %v702 = vmax.f32 %v655, 0.0
    %v703 = vmax.f32 %v657, 0.0
    %v704 = vmax.f32 %v696, 0.0
    %v705 = vmax.f32 %v698, 0.0
    %v706 = vpack.c.bf16 %v702, %v702
    %v707 = vpack.c.bf16 %v703, %v703
    %v708 = vpack.c.bf16 %v704, %v704
    %v709 = vpack.c.bf16 %v705, %v705
    %v710 = vld [vmem:[%s3 + $0xe0] sm:$0xf]
    %v711 = vld [vmem:[%s3 + $0xe4] sm:$0xf]
    %v712 = vld [vmem:[%s3 + $0xe8] sm:$0xf]
    %v713 = vld [vmem:[%s3 + $0xec] sm:$0xf]
    %v714 = vld [vmem:[%s3 + $0xf0] sm:$0xf]
    %v715 = vld [vmem:[%s3 + $0xf4] sm:$0xf]
    %v716 = vld [vmem:[%s3 + $0xf8] sm:$0xf]
    %v717 = vld [vmem:[%s3 + $0xfc] sm:$0xf]
    %v718 = vld [vmem:[%s3 + $0x100] sm:$0xf]
    %v719 = vld [vmem:[%s3 + $0x104] sm:$0xf]
    %v720 = vld [vmem:[%s3 + $0x108] sm:$0xf]
    %v721 = vld [vmem:[%s3 + $0x10c] sm:$0xf]
    %v722 = vld [vmem:[%s3 + $0x110] sm:$0xf]
    %v723 = vld [vmem:[%s3 + $0x114] sm:$0xf]
    %v724 = vld [vmem:[%s3 + $0x118] sm:$0xf]
    %v725 = vld [vmem:[%s3 + $0x11c] sm:$0xf]
    %v726 = vld [vmem:[%s3 + $0x120] sm:$0xf]
    %v727 = vld [vmem:[%s3 + $0x124] sm:$0xf]
    %v728 = vld [vmem:[%s3 + $0x128] sm:$0xf]
    %v729 = vld [vmem:[%s3 + $0x12c] sm:$0xf]
    %v730 = vld [vmem:[%s3 + $0x130] sm:$0xf]
    %v731 = vld [vmem:[%s3 + $0x134] sm:$0xf]
    %v732 = vld [vmem:[%s3 + $0x138] sm:$0xf]
    %v733 = vld [vmem:[%s3 + $0x13c] sm:$0xf]
    %v734 = vld [vmem:[%s3 + $0x140] sm:$0xf]
    %v735 = vld [vmem:[%s3 + $0x144] sm:$0xf]
    %v736 = vld [vmem:[%s3 + $0x148] sm:$0xf]
    %v737 = vld [vmem:[%s3 + $0x14c] sm:$0xf]
    %v738 = vld [vmem:[%s3 + $0x150] sm:$0xf]
    %v739 = vld [vmem:[%s3 + $0x154] sm:$0xf]
    %v740 = vld [vmem:[%s3 + $0x158] sm:$0xf]
    %v741 = vld [vmem:[%s3 + $0x15c] sm:$0xf]
    %v742 = vld [vmem:[%s3 + $0x160] sm:$0xf]
    %v743 = vld [vmem:[%s3 + $0x164] sm:$0xf]
    %v744 = vld [vmem:[%s3 + $0x168] sm:$0xf]
    %v745 = vld [vmem:[%s3 + $0x16c] sm:$0xf]
    %v746 = vld [vmem:[%s3 + $0x170] sm:$0xf]
    %v747 = vld [vmem:[%s3 + $0x174] sm:$0xf]
    %v748 = vld [vmem:[%s3 + $0x178] sm:$0xf]
    %v749 = vld [vmem:[%s3 + $0x17c] sm:$0xf]
    %v750 = vld [vmem:[%s3 + $0x180] sm:$0xf]
    %v751 = vld [vmem:[%s3 + $0x184] sm:$0xf]
    %v752 = vld [vmem:[%s3 + $0x188] sm:$0xf]
    %v753 = vld [vmem:[%s3 + $0x18c] sm:$0xf]
    %v754 = vld [vmem:[%s3 + $0x190] sm:$0xf]
    %v755 = vld [vmem:[%s3 + $0x194] sm:$0xf]
    %v756 = vld [vmem:[%s3 + $0x198] sm:$0xf]
    %v757 = vld [vmem:[%s3 + $0x19c] sm:$0xf]
    %v758 = vld [vmem:[%s3 + $0x1a0] sm:$0xf]
    %v759 = vld [vmem:[%s3 + $0x1a4] sm:$0xf]
    %v760 = vld [vmem:[%s3 + $0x1a8] sm:$0xf]
    %v761 = vld [vmem:[%s3 + $0x1ac] sm:$0xf]
    %v762 = vld [vmem:[%s3 + $0x1b0] sm:$0xf]
    %v763 = vld [vmem:[%s3 + $0x1b4] sm:$0xf]
    %v764 = vld [vmem:[%s3 + $0x1b8] sm:$0xf]
    %v765 = vld [vmem:[%s3 + $0x1bc] sm:$0xf]
    %v822 = vunpack.c.l.b16 %v710
    %v823 = vunpack.c.l.b16 %v711
    %v824 = vunpack.c.l.b16 %v712
    %v825 = vunpack.c.l.b16 %v713
    %v826 = vunpack.c.l.b16 %v714
    %v827 = vunpack.c.l.b16 %v715
    %v828 = vunpack.c.l.b16 %v716
    %v829 = vunpack.c.l.b16 %v717
    %v830 = vunpack.c.l.b16 %v718
    %v831 = vunpack.c.l.b16 %v719
    %v832 = vunpack.c.l.b16 %v720
    %v833 = vunpack.c.l.b16 %v721
    %v834 = vunpack.c.l.b16 %v722
    %v835 = vunpack.c.l.b16 %v723
    %v836 = vunpack.c.l.b16 %v724
    %v837 = vunpack.c.l.b16 %v725
    %v838 = vunpack.c.l.b16 %v726
    %v839 = vunpack.c.l.b16 %v727
    %v840 = vunpack.c.l.b16 %v728
    %v841 = vunpack.c.l.b16 %v729
    %v842 = vunpack.c.l.b16 %v730
    %v843 = vunpack.c.l.b16 %v731
    %v844 = vunpack.c.l.b16 %v732
    %v845 = vunpack.c.l.b16 %v733
    %v846 = vunpack.c.l.b16 %v734
    %v847 = vunpack.c.l.b16 %v735
    %v848 = vunpack.c.l.b16 %v736
    %v849 = vunpack.c.l.b16 %v737
    %v850 = vunpack.c.l.b16 %v738
    %v851 = vunpack.c.l.b16 %v739
    %v852 = vunpack.c.l.b16 %v740
    %v853 = vunpack.c.l.b16 %v741
    %v854 = vunpack.c.l.b16 %v742
    %v855 = vunpack.c.l.b16 %v743
    %v856 = vunpack.c.l.b16 %v744
    %v857 = vunpack.c.l.b16 %v745
    %v858 = vunpack.c.l.b16 %v746
    %v859 = vunpack.c.l.b16 %v747
    %v860 = vunpack.c.l.b16 %v748
    %v861 = vunpack.c.l.b16 %v749
    %v862 = vunpack.c.l.b16 %v750
    %v863 = vunpack.c.l.b16 %v751
    %v864 = vunpack.c.l.b16 %v752
    %v865 = vunpack.c.l.b16 %v753
    %v866 = vunpack.c.l.b16 %v754
    %v867 = vunpack.c.l.b16 %v755
    %v868 = vunpack.c.l.b16 %v756
    %v869 = vunpack.c.l.b16 %v757
    %v870 = vunpack.c.l.b16 %v758
    %v871 = vunpack.c.l.b16 %v759
    %v872 = vunpack.c.l.b16 %v760
    %v873 = vunpack.c.l.b16 %v761
    %v874 = vunpack.c.l.b16 %v762
    %v875 = vunpack.c.l.b16 %v763
    %v876 = vunpack.c.l.b16 %v764
    %v877 = vunpack.c.l.b16 %v765
    %v878 = vpack.c.b16 %v823, %v822
    %v879 = vpack.c.b16 %v825, %v824
    %v880 = vpack.c.b16 %v827, %v826
    %v881 = vpack.c.b16 %v829, %v828
    %v882 = vpack.c.b16 %v831, %v830
    %v883 = vpack.c.b16 %v833, %v832
    %v884 = vpack.c.b16 %v835, %v834
    %v885 = vpack.c.b16 %v837, %v836
    %v886 = vpack.c.b16 %v839, %v838
    %v887 = vpack.c.b16 %v841, %v840
    %v888 = vpack.c.b16 %v843, %v842
    %v889 = vpack.c.b16 %v845, %v844
    %v890 = vpack.c.b16 %v847, %v846
    %v891 = vpack.c.b16 %v849, %v848
    %v892 = vpack.c.b16 %v851, %v850
    %v893 = vpack.c.b16 %v853, %v852
    %v894 = vpack.c.b16 %v855, %v854
    %v895 = vpack.c.b16 %v857, %v856
    %v896 = vpack.c.b16 %v859, %v858
    %v897 = vpack.c.b16 %v861, %v860
    %v898 = vpack.c.b16 %v863, %v862
    %v899 = vpack.c.b16 %v865, %v864
    %v900 = vpack.c.b16 %v867, %v866
    %v901 = vpack.c.b16 %v869, %v868
    %v902 = vpack.c.b16 %v871, %v870
    %v903 = vpack.c.b16 %v873, %v872
    %v904 = vpack.c.b16 %v875, %v874
    %v905 = vpack.c.b16 %v877, %v876
    %vm934 = vcmask 523264
    %v936 = vsel %vm934, %v709, 0
    %938 = vmatprep.subr.bf16.mxu0 0
    %939 = vmatpush1.bf16.msra.mxu0 %v878
    %940 = vmatprep.subr.bf16.mxu0 0
    %941 = vmatpush1.bf16.msra.mxu0 %v879
    %942 = vmatprep.subr.bf16.mxu0 0
    %943 = vmatpush1.bf16.msra.mxu0 %v880
    %944 = vmatprep.subr.bf16.mxu0 0
    %945 = vmatpush1.bf16.msra.mxu0 %v881
    %946 = vmatprep.subr.bf16.mxu0 0
    %947 = vmatpush1.bf16.msra.mxu0 %v882
    %948 = vmatprep.subr.bf16.mxu0 0
    %949 = vmatpush1.bf16.msra.mxu0 %v883
    %950 = vmatprep.subr.bf16.mxu0 0
    %951 = vmatpush1.bf16.msra.mxu0 %v884
    %952 = vmatprep.subr.bf16.mxu0 0
    %953 = vmatpush1.bf16.msra.mxu0 %v885
    %954 = vmatprep.subr.bf16.mxu0 0
    %955 = vmatpush1.bf16.msra.mxu0 %v886
    %956 = vmatprep.subr.bf16.mxu0 0
    %957 = vmatpush1.bf16.msra.mxu0 %v887
    %958 = vmatprep.subr.bf16.mxu0 0
    %959 = vmatpush1.bf16.msra.mxu0 %v888
    %960 = vmatprep.subr.bf16.mxu0 0
    %961 = vmatpush1.bf16.msra.mxu0 %v889
    %962 = vmatprep.subr.bf16.mxu0 0
    %963 = vmatpush1.bf16.msra.mxu0 %v890
    %964 = vmatprep.subr.bf16.mxu0 0
    %965 = vmatpush1.bf16.msra.mxu0 %v891
    %966 = vmatprep.subr.bf16.mxu0 0
    %967 = vmatpush1.bf16.msra.mxu0 %v892
    %968 = vmatprep.subr.bf16.mxu0 0
    %969 = vmatpush1.bf16.msra.mxu0 %v893
    %970 = vmatprep.mubr.bf16.mxu0 %v707
    %971 = vmatmul.mubr.bf16.gmra.mrb[0].mxu0 %v706
    %v972 = vpop.f32.mrb[0].mxu0
    %v973 = vadd.f32 0.0, %v972
    %v974 = vpop.f32.mrb[0].mxu0
    %v975 = vpop.f32.mrb[0].mxu0
    %v976 = vpop.f32.mrb[0].mxu0
    %977 = vdwg.mxu0
    %978 = vmatprep.subr.bf16.mxu0 0
    %979 = vmatpush1.bf16.msra.mxu0 %v894
    %980 = vmatprep.subr.bf16.mxu0 0
    %981 = vmatpush1.bf16.msra.mxu0 %v895
    %982 = vmatprep.subr.bf16.mxu0 0
    %983 = vmatpush1.bf16.msra.mxu0 %v896
    %984 = vmatprep.subr.bf16.mxu0 0
    %985 = vmatpush1.bf16.msra.mxu0 %v897
    %986 = vmatprep.subr.bf16.mxu0 0
    %987 = vmatpush1.bf16.msra.mxu0 %v898
    %988 = vmatprep.subr.bf16.mxu0 0
    %989 = vmatpush1.bf16.msra.mxu0 %v899
    %990 = vmatprep.subr.bf16.mxu0 0
    %991 = vmatpush1.bf16.msra.mxu0 %v900
    %992 = vmatprep.subr.bf16.mxu0 0
    %993 = vmatpush1.bf16.msra.mxu0 %v901
    %994 = vmatprep.subr.bf16.mxu0 0
    %995 = vmatpush1.bf16.msra.mxu0 %v902
    %996 = vmatprep.subr.bf16.mxu0 0
    %997 = vmatpush1.bf16.msra.mxu0 %v903
    %998 = vmatprep.subr.bf16.mxu0 0
    %999 = vmatpush1.bf16.msra.mxu0 %v904
    %1000 = vmatprep.subr.bf16.mxu0 0
    %1001 = vmatpush1.bf16.msra.mxu0 %v905
    %1002 = vmatprep.subr.bf16.mxu0 0
    %1003 = vmatpush1.bf16.msra.mxu0 0
    %1004 = vmatprep.subr.bf16.mxu0 0
    %1005 = vmatpush1.bf16.msra.mxu0 0
    %1006 = vmatprep.subr.bf16.mxu0 0
    %1007 = vmatpush1.bf16.msra.mxu0 0
    %1008 = vmatprep.subr.bf16.mxu0 0
    %1009 = vmatpush1.bf16.msra.mxu0 0
    %1010 = vmatprep.mubr.bf16.mxu0 %v936
    %1011 = vmatmul.mubr.bf16.gmra.mrb[0].mxu0 %v708
    %v1012 = vpop.f32.mrb[0].mxu0
    %v1013 = vadd.f32 %v973, %v1012
    %v1014 = vpop.f32.mrb[0].mxu0
    %v1015 = vpop.f32.mrb[0].mxu0
    %v1016 = vpop.f32.mrb[0].mxu0
    %1017 = vdwg.mxu0
    %v1074 = vunpack.c.l.b16 %v556
    %v1075 = vunpack.c.l.b16 %v557
    %v1076 = vunpack.c.l.b16 %v558
    %v1077 = vunpack.c.l.b16 %v559
    %v1078 = vunpack.c.l.b16 %v560
    %v1079 = vunpack.c.l.b16 %v561
    %v1080 = vunpack.c.l.b16 %v562
    %v1081 = vunpack.c.l.b16 %v563
    %v1082 = vunpack.c.l.b16 %v564
    %v1083 = vunpack.c.l.b16 %v565
    %v1084 = vunpack.c.l.b16 %v566
    %v1085 = vunpack.c.l.b16 %v567
    %v1086 = vunpack.c.l.b16 %v568
    %v1087 = vunpack.c.l.b16 %v569
    %v1088 = vunpack.c.l.b16 %v570
    %v1089 = vunpack.c.l.b16 %v571
    %v1090 = vunpack.c.l.b16 %v572
    %v1091 = vunpack.c.l.b16 %v573
    %v1092 = vunpack.c.l.b16 %v574
    %v1093 = vunpack.c.l.b16 %v575
    %v1094 = vunpack.c.l.b16 %v576
    %v1095 = vunpack.c.l.b16 %v577
    %v1096 = vunpack.c.l.b16 %v578
    %v1097 = vunpack.c.l.b16 %v579
    %v1098 = vunpack.c.l.b16 %v580
    %v1099 = vunpack.c.l.b16 %v581
    %v1100 = vunpack.c.l.b16 %v582
    %v1101 = vunpack.c.l.b16 %v583
    %v1102 = vunpack.c.l.b16 %v584
    %v1103 = vunpack.c.l.b16 %v585
    %v1104 = vunpack.c.l.b16 %v586
    %v1105 = vunpack.c.l.b16 %v587
    %v1106 = vunpack.c.l.b16 %v588
    %v1107 = vunpack.c.l.b16 %v589
    %v1108 = vunpack.c.l.b16 %v590
    %v1109 = vunpack.c.l.b16 %v591
    %v1110 = vunpack.c.l.b16 %v592
    %v1111 = vunpack.c.l.b16 %v593
    %v1112 = vunpack.c.l.b16 %v594
    %v1113 = vunpack.c.l.b16 %v595
    %v1114 = vunpack.c.l.b16 %v596
    %v1115 = vunpack.c.l.b16 %v597
    %v1116 = vunpack.c.l.b16 %v598
    %v1117 = vunpack.c.l.b16 %v599
    %v1118 = vunpack.c.l.b16 %v600
    %v1119 = vunpack.c.l.b16 %v601
    %v1120 = vunpack.c.l.b16 %v602
    %v1121 = vunpack.c.l.b16 %v603
    %v1122 = vunpack.c.l.b16 %v604
    %v1123 = vunpack.c.l.b16 %v605
    %v1124 = vunpack.c.l.b16 %v606
    %v1125 = vunpack.c.l.b16 %v607
    %v1126 = vunpack.c.l.b16 %v608
    %v1127 = vunpack.c.l.b16 %v609
    %v1128 = vunpack.c.l.b16 %v610
    %v1129 = vunpack.c.l.b16 %v611
    %v1130 = vpack.c.b16 %v1075, %v1074
    %v1131 = vpack.c.b16 %v1077, %v1076
    %v1132 = vpack.c.b16 %v1079, %v1078
    %v1133 = vpack.c.b16 %v1081, %v1080
    %v1134 = vpack.c.b16 %v1083, %v1082
    %v1135 = vpack.c.b16 %v1085, %v1084
    %v1136 = vpack.c.b16 %v1087, %v1086
    %v1137 = vpack.c.b16 %v1089, %v1088
    %v1138 = vpack.c.b16 %v1091, %v1090
    %v1139 = vpack.c.b16 %v1093, %v1092
    %v1140 = vpack.c.b16 %v1095, %v1094
    %v1141 = vpack.c.b16 %v1097, %v1096
    %v1142 = vpack.c.b16 %v1099, %v1098
    %v1143 = vpack.c.b16 %v1101, %v1100
    %v1144 = vpack.c.b16 %v1103, %v1102
    %v1145 = vpack.c.b16 %v1105, %v1104
    %v1146 = vpack.c.b16 %v1107, %v1106
    %v1147 = vpack.c.b16 %v1109, %v1108
    %v1148 = vpack.c.b16 %v1111, %v1110
    %v1149 = vpack.c.b16 %v1113, %v1112
    %v1150 = vpack.c.b16 %v1115, %v1114
    %v1151 = vpack.c.b16 %v1117, %v1116
    %v1152 = vpack.c.b16 %v1119, %v1118
    %v1153 = vpack.c.b16 %v1121, %v1120
    %v1154 = vpack.c.b16 %v1123, %v1122
    %v1155 = vpack.c.b16 %v1125, %v1124
    %v1156 = vpack.c.b16 %v1127, %v1126
    %v1157 = vpack.c.b16 %v1129, %v1128
    %v1187 = vsel %vm934, %v555, 0
    %1189 = vmatprep.subr.bf16.mxu0 0
    %1190 = vmatpush1.bf16.msra.mxu0 %v1130
    %1191 = vmatprep.subr.bf16.mxu0 0
    %1192 = vmatpush1.bf16.msra.mxu0 %v1131
    %1193 = vmatprep.subr.bf16.mxu0 0
    %1194 = vmatpush1.bf16.msra.mxu0 %v1132
    %1195 = vmatprep.subr.bf16.mxu0 0
    %1196 = vmatpush1.bf16.msra.mxu0 %v1133
    %1197 = vmatprep.subr.bf16.mxu0 0
    %1198 = vmatpush1.bf16.msra.mxu0 %v1134
    %1199 = vmatprep.subr.bf16.mxu0 0
    %1200 = vmatpush1.bf16.msra.mxu0 %v1135
    %1201 = vmatprep.subr.bf16.mxu0 0
    %1202 = vmatpush1.bf16.msra.mxu0 %v1136
    %1203 = vmatprep.subr.bf16.mxu0 0
    %1204 = vmatpush1.bf16.msra.mxu0 %v1137
    %1205 = vmatprep.subr.bf16.mxu0 0
    %1206 = vmatpush1.bf16.msra.mxu0 %v1138
    %1207 = vmatprep.subr.bf16.mxu0 0
    %1208 = vmatpush1.bf16.msra.mxu0 %v1139
    %1209 = vmatprep.subr.bf16.mxu0 0
    %1210 = vmatpush1.bf16.msra.mxu0 %v1140
    %1211 = vmatprep.subr.bf16.mxu0 0
    %1212 = vmatpush1.bf16.msra.mxu0 %v1141
    %1213 = vmatprep.subr.bf16.mxu0 0
    %1214 = vmatpush1.bf16.msra.mxu0 %v1142
    %1215 = vmatprep.subr.bf16.mxu0 0
    %1216 = vmatpush1.bf16.msra.mxu0 %v1143
    %1217 = vmatprep.subr.bf16.mxu0 0
    %1218 = vmatpush1.bf16.msra.mxu0 %v1144
    %1219 = vmatprep.subr.bf16.mxu0 0
    %1220 = vmatpush1.bf16.msra.mxu0 %v1145
    %1221 = vmatprep.mubr.bf16.mxu0 %v553
    %1222 = vmatmul.mubr.bf16.gmra.mrb[0].mxu0 %v552
    %v1223 = vpop.f32.mrb[0].mxu0
    %v1224 = vadd.f32 %v1013, %v1223
    %v1225 = vpop.f32.mrb[0].mxu0
    %v1226 = vpop.f32.mrb[0].mxu0
    %v1227 = vpop.f32.mrb[0].mxu0
    %1228 = vdwg.mxu0
    %1229 = vmatprep.subr.bf16.mxu0 0
    %1230 = vmatpush1.bf16.msra.mxu0 %v1146
    %1231 = vmatprep.subr.bf16.mxu0 0
    %1232 = vmatpush1.bf16.msra.mxu0 %v1147
    %1233 = vmatprep.subr.bf16.mxu0 0
    %1234 = vmatpush1.bf16.msra.mxu0 %v1148
    %1235 = vmatprep.subr.bf16.mxu0 0
    %1236 = vmatpush1.bf16.msra.mxu0 %v1149
    %1237 = vmatprep.subr.bf16.mxu0 0
    %1238 = vmatpush1.bf16.msra.mxu0 %v1150
    %1239 = vmatprep.subr.bf16.mxu0 0
    %1240 = vmatpush1.bf16.msra.mxu0 %v1151
    %1241 = vmatprep.subr.bf16.mxu0 0
    %1242 = vmatpush1.bf16.msra.mxu0 %v1152
    %1243 = vmatprep.subr.bf16.mxu0 0
    %1244 = vmatpush1.bf16.msra.mxu0 %v1153
    %1245 = vmatprep.subr.bf16.mxu0 0
    %1246 = vmatpush1.bf16.msra.mxu0 %v1154
    %1247 = vmatprep.subr.bf16.mxu0 0
    %1248 = vmatpush1.bf16.msra.mxu0 %v1155
    %1249 = vmatprep.subr.bf16.mxu0 0
    %1250 = vmatpush1.bf16.msra.mxu0 %v1156
    %1251 = vmatprep.subr.bf16.mxu0 0
    %1252 = vmatpush1.bf16.msra.mxu0 %v1157
    %1253 = vmatprep.subr.bf16.mxu0 0
    %1254 = vmatpush1.bf16.msra.mxu0 0
    %1255 = vmatprep.subr.bf16.mxu0 0
    %1256 = vmatpush1.bf16.msra.mxu0 0
    %1257 = vmatprep.subr.bf16.mxu0 0
    %1258 = vmatpush1.bf16.msra.mxu0 0
    %1259 = vmatprep.subr.bf16.mxu0 0
    %1260 = vmatpush1.bf16.msra.mxu0 0
    %1261 = vmatprep.mubr.bf16.mxu0 %v1187
    %1262 = vmatmul.mubr.bf16.gmra.mrb[0].mxu0 %v554
    %v1263 = vpop.f32.mrb[0].mxu0
    %v1264 = vadd.f32 %v1224, %v1263
    %v1265 = vpop.f32.mrb[0].mxu0
    %v1266 = vpop.f32.mrb[0].mxu0
    %v1267 = vpop.f32.mrb[0].mxu0
    %1268 = vdwg.mxu0
    %v1269 = vld [vmem:[%s0 + $0x8] sm:$0xff]
    %v1271 = vunpack.c.l.b16 %v1269
    %v1272 = vunpack.c.h.b16 %v1269
    %v1273 = vpack.c.b16 %v1271, %v1271
    %v1274 = vpack.c.b16 %v1272, %v1272
    %1277 = vmatprep.subr.bf16.mxu0 %v339
    %1278 = vmatpush1.bf16.msra.mxu0 %v338
    %1279 = vmatprep.subr.bf16.mxu0 %v343
    %1280 = vmatpush1.bf16.msra.mxu0 %v342
    %1281 = vmatprep.subr.bf16.mxu0 %v347
    %1282 = vmatpush1.bf16.msra.mxu0 %v346
    %1283 = vmatprep.subr.bf16.mxu0 %v351
    %1284 = vmatpush1.bf16.msra.mxu0 %v350
    %1285 = vmatprep.subr.bf16.mxu0 %v355
    %1286 = vmatpush1.bf16.msra.mxu0 %v354
    %1287 = vmatprep.subr.bf16.mxu0 %v359
    %1288 = vmatpush1.bf16.msra.mxu0 %v358
    %1289 = vmatprep.subr.bf16.mxu0 %v363
    %1290 = vmatpush1.bf16.msra.mxu0 %v362
    %1291 = vmatprep.subr.bf16.mxu0 %v367
    %1292 = vmatpush1.bf16.msra.mxu0 %v366
    %1293 = vmatprep.subr.bf16.mxu0 %v371
    %1294 = vmatpush1.bf16.msra.mxu0 %v370
    %1295 = vmatprep.subr.bf16.mxu0 %v375
    %1296 = vmatpush1.bf16.msra.mxu0 %v374
    %1297 = vmatprep.subr.bf16.mxu0 %v379
    %1298 = vmatpush1.bf16.msra.mxu0 %v378
    %1299 = vmatprep.subr.bf16.mxu0 %v383
    %1300 = vmatpush1.bf16.msra.mxu0 %v382
    %1301 = vmatprep.subr.bf16.mxu0 %v387
    %1302 = vmatpush1.bf16.msra.mxu0 %v386
    %1303 = vmatprep.subr.bf16.mxu0 %v391
    %1304 = vmatpush1.bf16.msra.mxu0 %v390
    %1305 = vmatprep.subr.bf16.mxu0 %v395
    %1306 = vmatpush1.bf16.msra.mxu0 %v394
    %1307 = vmatprep.subr.bf16.mxu0 %v399
    %1308 = vmatpush1.bf16.msra.mxu0 %v398
    %1309 = vmatprep.mubr.bf16.mxu0 %v1274
    %1310 = vmatmul.mubr.bf16.gmra.mrb[0].mxu0 %v1273
    %v1311 = vpop.f32.mrb[0].mxu0
    %v1312 = vadd.f32 %v121, %v1311
    %v1313 = vpop.f32.mrb[0].mxu0
    %v1314 = vadd.f32 %v125, %v1313
    %v1315 = vpop.f32.mrb[0].mxu0
    %v1316 = vpop.f32.mrb[0].mxu0
    %1317 = vdwg.mxu0
    %1318 = vmatprep.subr.bf16.mxu0 %v341
    %1319 = vmatpush1.bf16.msra.mxu0 %v340
    %1320 = vmatprep.subr.bf16.mxu0 %v345
    %1321 = vmatpush1.bf16.msra.mxu0 %v344
    %1322 = vmatprep.subr.bf16.mxu0 %v349
    %1323 = vmatpush1.bf16.msra.mxu0 %v348
    %1324 = vmatprep.subr.bf16.mxu0 %v353
    %1325 = vmatpush1.bf16.msra.mxu0 %v352
    %1326 = vmatprep.subr.bf16.mxu0 %v357
    %1327 = vmatpush1.bf16.msra.mxu0 %v356
    %1328 = vmatprep.subr.bf16.mxu0 %v361
    %1329 = vmatpush1.bf16.msra.mxu0 %v360
    %1330 = vmatprep.subr.bf16.mxu0 %v365
    %1331 = vmatpush1.bf16.msra.mxu0 %v364
    %1332 = vmatprep.subr.bf16.mxu0 %v369
    %1333 = vmatpush1.bf16.msra.mxu0 %v368
    %1334 = vmatprep.subr.bf16.mxu0 %v373
    %1335 = vmatpush1.bf16.msra.mxu0 %v372
    %1336 = vmatprep.subr.bf16.mxu0 %v377
    %1337 = vmatpush1.bf16.msra.mxu0 %v376
    %1338 = vmatprep.subr.bf16.mxu0 %v381
    %1339 = vmatpush1.bf16.msra.mxu0 %v380
    %1340 = vmatprep.subr.bf16.mxu0 %v385
    %1341 = vmatpush1.bf16.msra.mxu0 %v384
    %1342 = vmatprep.subr.bf16.mxu0 %v389
    %1343 = vmatpush1.bf16.msra.mxu0 %v388
    %1344 = vmatprep.subr.bf16.mxu0 %v393
    %1345 = vmatpush1.bf16.msra.mxu0 %v392
    %1346 = vmatprep.subr.bf16.mxu0 %v397
    %1347 = vmatpush1.bf16.msra.mxu0 %v396
    %1348 = vmatprep.subr.bf16.mxu0 %v401
    %1349 = vmatpush1.bf16.msra.mxu0 %v400
    %1350 = vmatprep.mubr.bf16.mxu0 %v1274
    %1351 = vmatmul.mubr.bf16.gmra.mrb[0].mxu0 %v1273
    %v1352 = vpop.f32.mrb[0].mxu0
    %v1353 = vadd.f32 %v129, %v1352
    %v1354 = vpop.f32.mrb[0].mxu0
    %v1355 = vadd.f32 %v133, %v1354
    %v1356 = vpop.f32.mrb[0].mxu0
    %v1357 = vpop.f32.mrb[0].mxu0
    %1358 = vdwg.mxu0
    %v1359 = vmax.f32 %v1312, 0.0
    %v1360 = vmax.f32 %v1314, 0.0
    %v1361 = vmax.f32 %v1353, 0.0
    %v1362 = vmax.f32 %v1355, 0.0
    %v1363 = vpack.c.bf16 %v1359, %v1359
    %v1364 = vpack.c.bf16 %v1360, %v1360
    %v1365 = vpack.c.bf16 %v1361, %v1361
    %v1366 = vpack.c.bf16 %v1362, %v1362
    %v1367 = vld [vmem:[%s3 + $0x1c0] sm:$0xf]
    %v1368 = vld [vmem:[%s3 + $0x1c4] sm:$0xf]
    %v1369 = vld [vmem:[%s3 + $0x1c8] sm:$0xf]
    %v1370 = vld [vmem:[%s3 + $0x1cc] sm:$0xf]
    %v1371 = vld [vmem:[%s3 + $0x1d0] sm:$0xf]
    %v1372 = vld [vmem:[%s3 + $0x1d4] sm:$0xf]
    %v1373 = vld [vmem:[%s3 + $0x1d8] sm:$0xf]
    %v1374 = vld [vmem:[%s3 + $0x1dc] sm:$0xf]
    %v1375 = vld [vmem:[%s3 + $0x1e0] sm:$0xf]
    %v1376 = vld [vmem:[%s3 + $0x1e4] sm:$0xf]
    %v1377 = vld [vmem:[%s3 + $0x1e8] sm:$0xf]
    %v1378 = vld [vmem:[%s3 + $0x1ec] sm:$0xf]
    %v1379 = vld [vmem:[%s3 + $0x1f0] sm:$0xf]
    %v1380 = vld [vmem:[%s3 + $0x1f4] sm:$0xf]
    %v1381 = vld [vmem:[%s3 + $0x1f8] sm:$0xf]
    %v1382 = vld [vmem:[%s3 + $0x1fc] sm:$0xf]
    %v1383 = vld [vmem:[%s3 + $0x200] sm:$0xf]
    %v1384 = vld [vmem:[%s3 + $0x204] sm:$0xf]
    %v1385 = vld [vmem:[%s3 + $0x208] sm:$0xf]
    %v1386 = vld [vmem:[%s3 + $0x20c] sm:$0xf]
    %v1387 = vld [vmem:[%s3 + $0x210] sm:$0xf]
    %v1388 = vld [vmem:[%s3 + $0x214] sm:$0xf]
    %v1389 = vld [vmem:[%s3 + $0x218] sm:$0xf]
    %v1390 = vld [vmem:[%s3 + $0x21c] sm:$0xf]
    %v1391 = vld [vmem:[%s3 + $0x220] sm:$0xf]
    %v1392 = vld [vmem:[%s3 + $0x224] sm:$0xf]
    %v1393 = vld [vmem:[%s3 + $0x228] sm:$0xf]
    %v1394 = vld [vmem:[%s3 + $0x22c] sm:$0xf]
    %v1395 = vld [vmem:[%s3 + $0x230] sm:$0xf]
    %v1396 = vld [vmem:[%s3 + $0x234] sm:$0xf]
    %v1397 = vld [vmem:[%s3 + $0x238] sm:$0xf]
    %v1398 = vld [vmem:[%s3 + $0x23c] sm:$0xf]
    %v1399 = vld [vmem:[%s3 + $0x240] sm:$0xf]
    %v1400 = vld [vmem:[%s3 + $0x244] sm:$0xf]
    %v1401 = vld [vmem:[%s3 + $0x248] sm:$0xf]
    %v1402 = vld [vmem:[%s3 + $0x24c] sm:$0xf]
    %v1403 = vld [vmem:[%s3 + $0x250] sm:$0xf]
    %v1404 = vld [vmem:[%s3 + $0x254] sm:$0xf]
    %v1405 = vld [vmem:[%s3 + $0x258] sm:$0xf]
    %v1406 = vld [vmem:[%s3 + $0x25c] sm:$0xf]
    %v1407 = vld [vmem:[%s3 + $0x260] sm:$0xf]
    %v1408 = vld [vmem:[%s3 + $0x264] sm:$0xf]
    %v1409 = vld [vmem:[%s3 + $0x268] sm:$0xf]
    %v1410 = vld [vmem:[%s3 + $0x26c] sm:$0xf]
    %v1411 = vld [vmem:[%s3 + $0x270] sm:$0xf]
    %v1412 = vld [vmem:[%s3 + $0x274] sm:$0xf]
    %v1413 = vld [vmem:[%s3 + $0x278] sm:$0xf]
    %v1414 = vld [vmem:[%s3 + $0x27c] sm:$0xf]
    %v1415 = vld [vmem:[%s3 + $0x280] sm:$0xf]
    %v1416 = vld [vmem:[%s3 + $0x284] sm:$0xf]
    %v1417 = vld [vmem:[%s3 + $0x288] sm:$0xf]
    %v1418 = vld [vmem:[%s3 + $0x28c] sm:$0xf]
    %v1419 = vld [vmem:[%s3 + $0x290] sm:$0xf]
    %v1420 = vld [vmem:[%s3 + $0x294] sm:$0xf]
    %v1421 = vld [vmem:[%s3 + $0x298] sm:$0xf]
    %v1422 = vld [vmem:[%s3 + $0x29c] sm:$0xf]
    %v1479 = vunpack.c.l.b16 %v1367
    %v1480 = vunpack.c.l.b16 %v1368
    %v1481 = vunpack.c.l.b16 %v1369
    %v1482 = vunpack.c.l.b16 %v1370
    %v1483 = vunpack.c.l.b16 %v1371
    %v1484 = vunpack.c.l.b16 %v1372
    %v1485 = vunpack.c.l.b16 %v1373
    %v1486 = vunpack.c.l.b16 %v1374
    %v1487 = vunpack.c.l.b16 %v1375
    %v1488 = vunpack.c.l.b16 %v1376
    %v1489 = vunpack.c.l.b16 %v1377
    %v1490 = vunpack.c.l.b16 %v1378
    %v1491 = vunpack.c.l.b16 %v1379
    %v1492 = vunpack.c.l.b16 %v1380
    %v1493 = vunpack.c.l.b16 %v1381
    %v1494 = vunpack.c.l.b16 %v1382
    %v1495 = vunpack.c.l.b16 %v1383
    %v1496 = vunpack.c.l.b16 %v1384
    %v1497 = vunpack.c.l.b16 %v1385
    %v1498 = vunpack.c.l.b16 %v1386
    %v1499 = vunpack.c.l.b16 %v1387
    %v1500 = vunpack.c.l.b16 %v1388
    %v1501 = vunpack.c.l.b16 %v1389
    %v1502 = vunpack.c.l.b16 %v1390
    %v1503 = vunpack.c.l.b16 %v1391
    %v1504 = vunpack.c.l.b16 %v1392
    %v1505 = vunpack.c.l.b16 %v1393
    %v1506 = vunpack.c.l.b16 %v1394
    %v1507 = vunpack.c.l.b16 %v1395
    %v1508 = vunpack.c.l.b16 %v1396
    %v1509 = vunpack.c.l.b16 %v1397
    %v1510 = vunpack.c.l.b16 %v1398
    %v1511 = vunpack.c.l.b16 %v1399
    %v1512 = vunpack.c.l.b16 %v1400
    %v1513 = vunpack.c.l.b16 %v1401
    %v1514 = vunpack.c.l.b16 %v1402
    %v1515 = vunpack.c.l.b16 %v1403
    %v1516 = vunpack.c.l.b16 %v1404
    %v1517 = vunpack.c.l.b16 %v1405
    %v1518 = vunpack.c.l.b16 %v1406
    %v1519 = vunpack.c.l.b16 %v1407
    %v1520 = vunpack.c.l.b16 %v1408
    %v1521 = vunpack.c.l.b16 %v1409
    %v1522 = vunpack.c.l.b16 %v1410
    %v1523 = vunpack.c.l.b16 %v1411
    %v1524 = vunpack.c.l.b16 %v1412
    %v1525 = vunpack.c.l.b16 %v1413
    %v1526 = vunpack.c.l.b16 %v1414
    %v1527 = vunpack.c.l.b16 %v1415
    %v1528 = vunpack.c.l.b16 %v1416
    %v1529 = vunpack.c.l.b16 %v1417
    %v1530 = vunpack.c.l.b16 %v1418
    %v1531 = vunpack.c.l.b16 %v1419
    %v1532 = vunpack.c.l.b16 %v1420
    %v1533 = vunpack.c.l.b16 %v1421
    %v1534 = vunpack.c.l.b16 %v1422
    %v1535 = vpack.c.b16 %v1480, %v1479
    %v1536 = vpack.c.b16 %v1482, %v1481
    %v1537 = vpack.c.b16 %v1484, %v1483
    %v1538 = vpack.c.b16 %v1486, %v1485
    %v1539 = vpack.c.b16 %v1488, %v1487
    %v1540 = vpack.c.b16 %v1490, %v1489
    %v1541 = vpack.c.b16 %v1492, %v1491
    %v1542 = vpack.c.b16 %v1494, %v1493
    %v1543 = vpack.c.b16 %v1496, %v1495
    %v1544 = vpack.c.b16 %v1498, %v1497
    %v1545 = vpack.c.b16 %v1500, %v1499
    %v1546 = vpack.c.b16 %v1502, %v1501
    %v1547 = vpack.c.b16 %v1504, %v1503
    %v1548 = vpack.c.b16 %v1506, %v1505
    %v1549 = vpack.c.b16 %v1508, %v1507
    %v1550 = vpack.c.b16 %v1510, %v1509
    %v1551 = vpack.c.b16 %v1512, %v1511
    %v1552 = vpack.c.b16 %v1514, %v1513
    %v1553 = vpack.c.b16 %v1516, %v1515
    %v1554 = vpack.c.b16 %v1518, %v1517
    %v1555 = vpack.c.b16 %v1520, %v1519
    %v1556 = vpack.c.b16 %v1522, %v1521
    %v1557 = vpack.c.b16 %v1524, %v1523
    %v1558 = vpack.c.b16 %v1526, %v1525
    %v1559 = vpack.c.b16 %v1528, %v1527
    %v1560 = vpack.c.b16 %v1530, %v1529
    %v1561 = vpack.c.b16 %v1532, %v1531
    %v1562 = vpack.c.b16 %v1534, %v1533
    %v1592 = vsel %vm934, %v1366, 0
    %1594 = vmatprep.subr.bf16.mxu0 0
    %1595 = vmatpush1.bf16.msra.mxu0 %v1535
    %1596 = vmatprep.subr.bf16.mxu0 0
    %1597 = vmatpush1.bf16.msra.mxu0 %v1536
    %1598 = vmatprep.subr.bf16.mxu0 0
    %1599 = vmatpush1.bf16.msra.mxu0 %v1537
    %1600 = vmatprep.subr.bf16.mxu0 0
    %1601 = vmatpush1.bf16.msra.mxu0 %v1538
    %1602 = vmatprep.subr.bf16.mxu0 0
    %1603 = vmatpush1.bf16.msra.mxu0 %v1539
    %1604 = vmatprep.subr.bf16.mxu0 0
    %1605 = vmatpush1.bf16.msra.mxu0 %v1540
    %1606 = vmatprep.subr.bf16.mxu0 0
    %1607 = vmatpush1.bf16.msra.mxu0 %v1541
    %1608 = vmatprep.subr.bf16.mxu0 0
    %1609 = vmatpush1.bf16.msra.mxu0 %v1542
    %1610 = vmatprep.subr.bf16.mxu0 0
    %1611 = vmatpush1.bf16.msra.mxu0 %v1543
    %1612 = vmatprep.subr.bf16.mxu0 0
    %1613 = vmatpush1.bf16.msra.mxu0 %v1544
    %1614 = vmatprep.subr.bf16.mxu0 0
    %1615 = vmatpush1.bf16.msra.mxu0 %v1545
    %1616 = vmatprep.subr.bf16.mxu0 0
    %1617 = vmatpush1.bf16.msra.mxu0 %v1546
    %1618 = vmatprep.subr.bf16.mxu0 0
    %1619 = vmatpush1.bf16.msra.mxu0 %v1547
    %1620 = vmatprep.subr.bf16.mxu0 0
    %1621 = vmatpush1.bf16.msra.mxu0 %v1548
    %1622 = vmatprep.subr.bf16.mxu0 0
    %1623 = vmatpush1.bf16.msra.mxu0 %v1549
    %1624 = vmatprep.subr.bf16.mxu0 0
    %1625 = vmatpush1.bf16.msra.mxu0 %v1550
    %1626 = vmatprep.mubr.bf16.mxu0 %v1364
    %1627 = vmatmul.mubr.bf16.gmra.mrb[0].mxu0 %v1363
    %v1628 = vpop.f32.mrb[0].mxu0
    %v1629 = vadd.f32 0.0, %v1628
    %v1630 = vpop.f32.mrb[0].mxu0
    %v1631 = vpop.f32.mrb[0].mxu0
    %v1632 = vpop.f32.mrb[0].mxu0
    %1633 = vdwg.mxu0
    %1634 = vmatprep.subr.bf16.mxu0 0
    %1635 = vmatpush1.bf16.msra.mxu0 %v1551
    %1636 = vmatprep.subr.bf16.mxu0 0
    %1637 = vmatpush1.bf16.msra.mxu0 %v1552
    %1638 = vmatprep.subr.bf16.mxu0 0
    %1639 = vmatpush1.bf16.msra.mxu0 %v1553
    %1640 = vmatprep.subr.bf16.mxu0 0
    %1641 = vmatpush1.bf16.msra.mxu0 %v1554
    %1642 = vmatprep.subr.bf16.mxu0 0
    %1643 = vmatpush1.bf16.msra.mxu0 %v1555
    %1644 = vmatprep.subr.bf16.mxu0 0
    %1645 = vmatpush1.bf16.msra.mxu0 %v1556
    %1646 = vmatprep.subr.bf16.mxu0 0
    %1647 = vmatpush1.bf16.msra.mxu0 %v1557
    %1648 = vmatprep.subr.bf16.mxu0 0
    %1649 = vmatpush1.bf16.msra.mxu0 %v1558
    %1650 = vmatprep.subr.bf16.mxu0 0
    %1651 = vmatpush1.bf16.msra.mxu0 %v1559
    %1652 = vmatprep.subr.bf16.mxu0 0
    %1653 = vmatpush1.bf16.msra.mxu0 %v1560
    %1654 = vmatprep.subr.bf16.mxu0 0
    %1655 = vmatpush1.bf16.msra.mxu0 %v1561
    %1656 = vmatprep.subr.bf16.mxu0 0
    %1657 = vmatpush1.bf16.msra.mxu0 %v1562
    %1658 = vmatprep.subr.bf16.mxu0 0
    %1659 = vmatpush1.bf16.msra.mxu0 0
    %1660 = vmatprep.subr.bf16.mxu0 0
    %1661 = vmatpush1.bf16.msra.mxu0 0
    %1662 = vmatprep.subr.bf16.mxu0 0
    %1663 = vmatpush1.bf16.msra.mxu0 0
    %1664 = vmatprep.subr.bf16.mxu0 0
    %1665 = vmatpush1.bf16.msra.mxu0 0
    %1666 = vmatprep.mubr.bf16.mxu0 %v1592
    %1667 = vmatmul.mubr.bf16.gmra.mrb[0].mxu0 %v1365
    %v1668 = vpop.f32.mrb[0].mxu0
    %v1669 = vadd.f32 %v1629, %v1668
    %v1670 = vpop.f32.mrb[0].mxu0
    %v1671 = vpop.f32.mrb[0].mxu0
    %v1672 = vpop.f32.mrb[0].mxu0
    %1673 = vdwg.mxu0
    %v1674 = vadd.f32 %v1264, %v1669
    %v1675 = vld [vmem:[%s0 + $0xc] sm:$0xff]
    %v1677 = vunpack.c.l.b16 %v1675
    %v1678 = vunpack.c.h.b16 %v1675
    %v1679 = vpack.c.b16 %v1677, %v1677
    %v1680 = vpack.c.b16 %v1678, %v1678
    %1683 = vmatprep.subr.bf16.mxu0 %v339
    %1684 = vmatpush1.bf16.msra.mxu0 %v338
    %1685 = vmatprep.subr.bf16.mxu0 %v343
    %1686 = vmatpush1.bf16.msra.mxu0 %v342
    %1687 = vmatprep.subr.bf16.mxu0 %v347
    %1688 = vmatpush1.bf16.msra.mxu0 %v346
    %1689 = vmatprep.subr.bf16.mxu0 %v351
    %1690 = vmatpush1.bf16.msra.mxu0 %v350
    %1691 = vmatprep.subr.bf16.mxu0 %v355
    %1692 = vmatpush1.bf16.msra.mxu0 %v354
    %1693 = vmatprep.subr.bf16.mxu0 %v359
    %1694 = vmatpush1.bf16.msra.mxu0 %v358
    %1695 = vmatprep.subr.bf16.mxu0 %v363
    %1696 = vmatpush1.bf16.msra.mxu0 %v362
    %1697 = vmatprep.subr.bf16.mxu0 %v367
    %1698 = vmatpush1.bf16.msra.mxu0 %v366
    %1699 = vmatprep.subr.bf16.mxu0 %v371
    %1700 = vmatpush1.bf16.msra.mxu0 %v370
    %1701 = vmatprep.subr.bf16.mxu0 %v375
    %1702 = vmatpush1.bf16.msra.mxu0 %v374
    %1703 = vmatprep.subr.bf16.mxu0 %v379
    %1704 = vmatpush1.bf16.msra.mxu0 %v378
    %1705 = vmatprep.subr.bf16.mxu0 %v383
    %1706 = vmatpush1.bf16.msra.mxu0 %v382
    %1707 = vmatprep.subr.bf16.mxu0 %v387
    %1708 = vmatpush1.bf16.msra.mxu0 %v386
    %1709 = vmatprep.subr.bf16.mxu0 %v391
    %1710 = vmatpush1.bf16.msra.mxu0 %v390
    %1711 = vmatprep.subr.bf16.mxu0 %v395
    %1712 = vmatpush1.bf16.msra.mxu0 %v394
    %1713 = vmatprep.subr.bf16.mxu0 %v399
    %1714 = vmatpush1.bf16.msra.mxu0 %v398
    %1715 = vmatprep.mubr.bf16.mxu0 %v1680
    %1716 = vmatmul.mubr.bf16.gmra.mrb[0].mxu0 %v1679
    %v1717 = vpop.f32.mrb[0].mxu0
    %v1718 = vadd.f32 %v121, %v1717
    %v1719 = vpop.f32.mrb[0].mxu0
    %v1720 = vadd.f32 %v125, %v1719
    %v1721 = vpop.f32.mrb[0].mxu0
    %v1722 = vpop.f32.mrb[0].mxu0
    %1723 = vdwg.mxu0
    %1724 = vmatprep.subr.bf16.mxu0 %v341
    %1725 = vmatpush1.bf16.msra.mxu0 %v340
    %1726 = vmatprep.subr.bf16.mxu0 %v345
    %1727 = vmatpush1.bf16.msra.mxu0 %v344
    %1728 = vmatprep.subr.bf16.mxu0 %v349
    %1729 = vmatpush1.bf16.msra.mxu0 %v348
    %1730 = vmatprep.subr.bf16.mxu0 %v353
    %1731 = vmatpush1.bf16.msra.mxu0 %v352
    %1732 = vmatprep.subr.bf16.mxu0 %v357
    %1733 = vmatpush1.bf16.msra.mxu0 %v356
    %1734 = vmatprep.subr.bf16.mxu0 %v361
    %1735 = vmatpush1.bf16.msra.mxu0 %v360
    %1736 = vmatprep.subr.bf16.mxu0 %v365
    %1737 = vmatpush1.bf16.msra.mxu0 %v364
    %1738 = vmatprep.subr.bf16.mxu0 %v369
    %1739 = vmatpush1.bf16.msra.mxu0 %v368
    %1740 = vmatprep.subr.bf16.mxu0 %v373
    %1741 = vmatpush1.bf16.msra.mxu0 %v372
    %1742 = vmatprep.subr.bf16.mxu0 %v377
    %1743 = vmatpush1.bf16.msra.mxu0 %v376
    %1744 = vmatprep.subr.bf16.mxu0 %v381
    %1745 = vmatpush1.bf16.msra.mxu0 %v380
    %1746 = vmatprep.subr.bf16.mxu0 %v385
    %1747 = vmatpush1.bf16.msra.mxu0 %v384
    %1748 = vmatprep.subr.bf16.mxu0 %v389
    %1749 = vmatpush1.bf16.msra.mxu0 %v388
    %1750 = vmatprep.subr.bf16.mxu0 %v393
    %1751 = vmatpush1.bf16.msra.mxu0 %v392
    %1752 = vmatprep.subr.bf16.mxu0 %v397
    %1753 = vmatpush1.bf16.msra.mxu0 %v396
    %1754 = vmatprep.subr.bf16.mxu0 %v401
    %1755 = vmatpush1.bf16.msra.mxu0 %v400
    %1756 = vmatprep.mubr.bf16.mxu0 %v1680
    %1757 = vmatmul.mubr.bf16.gmra.mrb[0].mxu0 %v1679
    %v1758 = vpop.f32.mrb[0].mxu0
    %v1759 = vadd.f32 %v129, %v1758
    %v1760 = vpop.f32.mrb[0].mxu0
    %v1761 = vadd.f32 %v133, %v1760
    %v1762 = vpop.f32.mrb[0].mxu0
    %v1763 = vpop.f32.mrb[0].mxu0
    %1764 = vdwg.mxu0
    %v1765 = vmax.f32 %v1718, 0.0
    %v1766 = vmax.f32 %v1720, 0.0
    %v1767 = vmax.f32 %v1759, 0.0
    %v1768 = vmax.f32 %v1761, 0.0
    %v1769 = vpack.c.bf16 %v1765, %v1765
    %v1770 = vpack.c.bf16 %v1766, %v1766
    %v1771 = vpack.c.bf16 %v1767, %v1767
    %v1772 = vpack.c.bf16 %v1768, %v1768
    %v1773 = vld [vmem:[%s3 + $0x2a0] sm:$0xf]
    %v1774 = vld [vmem:[%s3 + $0x2a4] sm:$0xf]
    %v1775 = vld [vmem:[%s3 + $0x2a8] sm:$0xf]
    %v1776 = vld [vmem:[%s3 + $0x2ac] sm:$0xf]
    %v1777 = vld [vmem:[%s3 + $0x2b0] sm:$0xf]
    %v1778 = vld [vmem:[%s3 + $0x2b4] sm:$0xf]
    %v1779 = vld [vmem:[%s3 + $0x2b8] sm:$0xf]
    %v1780 = vld [vmem:[%s3 + $0x2bc] sm:$0xf]
    %v1781 = vld [vmem:[%s3 + $0x2c0] sm:$0xf]
    %v1782 = vld [vmem:[%s3 + $0x2c4] sm:$0xf]
    %v1783 = vld [vmem:[%s3 + $0x2c8] sm:$0xf]
    %v1784 = vld [vmem:[%s3 + $0x2cc] sm:$0xf]
    %v1785 = vld [vmem:[%s3 + $0x2d0] sm:$0xf]
    %v1786 = vld [vmem:[%s3 + $0x2d4] sm:$0xf]
    %v1787 = vld [vmem:[%s3 + $0x2d8] sm:$0xf]
    %v1788 = vld [vmem:[%s3 + $0x2dc] sm:$0xf]
    %v1789 = vld [vmem:[%s3 + $0x2e0] sm:$0xf]
    %v1790 = vld [vmem:[%s3 + $0x2e4] sm:$0xf]
    %v1791 = vld [vmem:[%s3 + $0x2e8] sm:$0xf]
    %v1792 = vld [vmem:[%s3 + $0x2ec] sm:$0xf]
    %v1793 = vld [vmem:[%s3 + $0x2f0] sm:$0xf]
    %v1794 = vld [vmem:[%s3 + $0x2f4] sm:$0xf]
    %v1795 = vld [vmem:[%s3 + $0x2f8] sm:$0xf]
    %v1796 = vld [vmem:[%s3 + $0x2fc] sm:$0xf]
    %v1797 = vld [vmem:[%s3 + $0x300] sm:$0xf]
    %v1798 = vld [vmem:[%s3 + $0x304] sm:$0xf]
    %v1799 = vld [vmem:[%s3 + $0x308] sm:$0xf]
    %v1800 = vld [vmem:[%s3 + $0x30c] sm:$0xf]
    %v1801 = vld [vmem:[%s3 + $0x310] sm:$0xf]
    %v1802 = vld [vmem:[%s3 + $0x314] sm:$0xf]
    %v1803 = vld [vmem:[%s3 + $0x318] sm:$0xf]
    %v1804 = vld [vmem:[%s3 + $0x31c] sm:$0xf]
    %v1805 = vld [vmem:[%s3 + $0x320] sm:$0xf]
    %v1806 = vld [vmem:[%s3 + $0x324] sm:$0xf]
    %v1807 = vld [vmem:[%s3 + $0x328] sm:$0xf]
    %v1808 = vld [vmem:[%s3 + $0x32c] sm:$0xf]
    %v1809 = vld [vmem:[%s3 + $0x330] sm:$0xf]
    %v1810 = vld [vmem:[%s3 + $0x334] sm:$0xf]
    %v1811 = vld [vmem:[%s3 + $0x338] sm:$0xf]
    %v1812 = vld [vmem:[%s3 + $0x33c] sm:$0xf]
    %v1813 = vld [vmem:[%s3 + $0x340] sm:$0xf]
    %v1814 = vld [vmem:[%s3 + $0x344] sm:$0xf]
    %v1815 = vld [vmem:[%s3 + $0x348] sm:$0xf]
    %v1816 = vld [vmem:[%s3 + $0x34c] sm:$0xf]
    %v1817 = vld [vmem:[%s3 + $0x350] sm:$0xf]
    %v1818 = vld [vmem:[%s3 + $0x354] sm:$0xf]
    %v1819 = vld [vmem:[%s3 + $0x358] sm:$0xf]
    %v1820 = vld [vmem:[%s3 + $0x35c] sm:$0xf]
    %v1821 = vld [vmem:[%s3 + $0x360] sm:$0xf]
    %v1822 = vld [vmem:[%s3 + $0x364] sm:$0xf]
    %v1823 = vld [vmem:[%s3 + $0x368] sm:$0xf]
    %v1824 = vld [vmem:[%s3 + $0x36c] sm:$0xf]
    %v1825 = vld [vmem:[%s3 + $0x370] sm:$0xf]
    %v1826 = vld [vmem:[%s3 + $0x374] sm:$0xf]
    %v1827 = vld [vmem:[%s3 + $0x378] sm:$0xf]
    %v1828 = vld [vmem:[%s3 + $0x37c] sm:$0xf]
    %v1885 = vunpack.c.l.b16 %v1773
    %v1886 = vunpack.c.l.b16 %v1774
    %v1887 = vunpack.c.l.b16 %v1775
    %v1888 = vunpack.c.l.b16 %v1776
    %v1889 = vunpack.c.l.b16 %v1777
    %v1890 = vunpack.c.l.b16 %v1778
    %v1891 = vunpack.c.l.b16 %v1779
    %v1892 = vunpack.c.l.b16 %v1780
    %v1893 = vunpack.c.l.b16 %v1781
    %v1894 = vunpack.c.l.b16 %v1782
    %v1895 = vunpack.c.l.b16 %v1783
    %v1896 = vunpack.c.l.b16 %v1784
    %v1897 = vunpack.c.l.b16 %v1785
    %v1898 = vunpack.c.l.b16 %v1786
    %v1899 = vunpack.c.l.b16 %v1787
    %v1900 = vunpack.c.l.b16 %v1788
    %v1901 = vunpack.c.l.b16 %v1789
    %v1902 = vunpack.c.l.b16 %v1790
    %v1903 = vunpack.c.l.b16 %v1791
    %v1904 = vunpack.c.l.b16 %v1792
    %v1905 = vunpack.c.l.b16 %v1793
    %v1906 = vunpack.c.l.b16 %v1794
    %v1907 = vunpack.c.l.b16 %v1795
    %v1908 = vunpack.c.l.b16 %v1796
    %v1909 = vunpack.c.l.b16 %v1797
    %v1910 = vunpack.c.l.b16 %v1798
    %v1911 = vunpack.c.l.b16 %v1799
    %v1912 = vunpack.c.l.b16 %v1800
    %v1913 = vunpack.c.l.b16 %v1801
    %v1914 = vunpack.c.l.b16 %v1802
    %v1915 = vunpack.c.l.b16 %v1803
    %v1916 = vunpack.c.l.b16 %v1804
    %v1917 = vunpack.c.l.b16 %v1805
    %v1918 = vunpack.c.l.b16 %v1806
    %v1919 = vunpack.c.l.b16 %v1807
    %v1920 = vunpack.c.l.b16 %v1808
    %v1921 = vunpack.c.l.b16 %v1809
    %v1922 = vunpack.c.l.b16 %v1810
    %v1923 = vunpack.c.l.b16 %v1811
    %v1924 = vunpack.c.l.b16 %v1812
    %v1925 = vunpack.c.l.b16 %v1813
    %v1926 = vunpack.c.l.b16 %v1814
    %v1927 = vunpack.c.l.b16 %v1815
    %v1928 = vunpack.c.l.b16 %v1816
    %v1929 = vunpack.c.l.b16 %v1817
    %v1930 = vunpack.c.l.b16 %v1818
    %v1931 = vunpack.c.l.b16 %v1819
    %v1932 = vunpack.c.l.b16 %v1820
    %v1933 = vunpack.c.l.b16 %v1821
    %v1934 = vunpack.c.l.b16 %v1822
    %v1935 = vunpack.c.l.b16 %v1823
    %v1936 = vunpack.c.l.b16 %v1824
    %v1937 = vunpack.c.l.b16 %v1825
    %v1938 = vunpack.c.l.b16 %v1826
    %v1939 = vunpack.c.l.b16 %v1827
    %v1940 = vunpack.c.l.b16 %v1828
    %v1941 = vpack.c.b16 %v1886, %v1885
    %v1942 = vpack.c.b16 %v1888, %v1887
    %v1943 = vpack.c.b16 %v1890, %v1889
    %v1944 = vpack.c.b16 %v1892, %v1891
    %v1945 = vpack.c.b16 %v1894, %v1893
    %v1946 = vpack.c.b16 %v1896, %v1895
    %v1947 = vpack.c.b16 %v1898, %v1897
    %v1948 = vpack.c.b16 %v1900, %v1899
    %v1949 = vpack.c.b16 %v1902, %v1901
    %v1950 = vpack.c.b16 %v1904, %v1903
    %v1951 = vpack.c.b16 %v1906, %v1905
    %v1952 = vpack.c.b16 %v1908, %v1907
    %v1953 = vpack.c.b16 %v1910, %v1909
    %v1954 = vpack.c.b16 %v1912, %v1911
    %v1955 = vpack.c.b16 %v1914, %v1913
    %v1956 = vpack.c.b16 %v1916, %v1915
    %v1957 = vpack.c.b16 %v1918, %v1917
    %v1958 = vpack.c.b16 %v1920, %v1919
    %v1959 = vpack.c.b16 %v1922, %v1921
    %v1960 = vpack.c.b16 %v1924, %v1923
    %v1961 = vpack.c.b16 %v1926, %v1925
    %v1962 = vpack.c.b16 %v1928, %v1927
    %v1963 = vpack.c.b16 %v1930, %v1929
    %v1964 = vpack.c.b16 %v1932, %v1931
    %v1965 = vpack.c.b16 %v1934, %v1933
    %v1966 = vpack.c.b16 %v1936, %v1935
    %v1967 = vpack.c.b16 %v1938, %v1937
    %v1968 = vpack.c.b16 %v1940, %v1939
    %v1998 = vsel %vm934, %v1772, 0
    %2000 = vmatprep.subr.bf16.mxu0 0
    %2001 = vmatpush1.bf16.msra.mxu0 %v1941
    %2002 = vmatprep.subr.bf16.mxu0 0
    %2003 = vmatpush1.bf16.msra.mxu0 %v1942
    %2004 = vmatprep.subr.bf16.mxu0 0
    %2005 = vmatpush1.bf16.msra.mxu0 %v1943
    %2006 = vmatprep.subr.bf16.mxu0 0
    %2007 = vmatpush1.bf16.msra.mxu0 %v1944
    %2008 = vmatprep.subr.bf16.mxu0 0
    %2009 = vmatpush1.bf16.msra.mxu0 %v1945
    %2010 = vmatprep.subr.bf16.mxu0 0
    %2011 = vmatpush1.bf16.msra.mxu0 %v1946
    %2012 = vmatprep.subr.bf16.mxu0 0
    %2013 = vmatpush1.bf16.msra.mxu0 %v1947
    %2014 = vmatprep.subr.bf16.mxu0 0
    %2015 = vmatpush1.bf16.msra.mxu0 %v1948
    %2016 = vmatprep.subr.bf16.mxu0 0
    %2017 = vmatpush1.bf16.msra.mxu0 %v1949
    %2018 = vmatprep.subr.bf16.mxu0 0
    %2019 = vmatpush1.bf16.msra.mxu0 %v1950
    %2020 = vmatprep.subr.bf16.mxu0 0
    %2021 = vmatpush1.bf16.msra.mxu0 %v1951
    %2022 = vmatprep.subr.bf16.mxu0 0
    %2023 = vmatpush1.bf16.msra.mxu0 %v1952
    %2024 = vmatprep.subr.bf16.mxu0 0
    %2025 = vmatpush1.bf16.msra.mxu0 %v1953
    %2026 = vmatprep.subr.bf16.mxu0 0
    %2027 = vmatpush1.bf16.msra.mxu0 %v1954
    %2028 = vmatprep.subr.bf16.mxu0 0
    %2029 = vmatpush1.bf16.msra.mxu0 %v1955
    %2030 = vmatprep.subr.bf16.mxu0 0
    %2031 = vmatpush1.bf16.msra.mxu0 %v1956
    %2032 = vmatprep.mubr.bf16.mxu0 %v1770
    %2033 = vmatmul.mubr.bf16.gmra.mrb[0].mxu0 %v1769
    %v2034 = vpop.f32.mrb[0].mxu0
    %v2035 = vadd.f32 0.0, %v2034
    %v2036 = vpop.f32.mrb[0].mxu0
    %v2037 = vpop.f32.mrb[0].mxu0
    %v2038 = vpop.f32.mrb[0].mxu0
    %2039 = vdwg.mxu0
    %2040 = vmatprep.subr.bf16.mxu0 0
    %2041 = vmatpush1.bf16.msra.mxu0 %v1957
    %2042 = vmatprep.subr.bf16.mxu0 0
    %2043 = vmatpush1.bf16.msra.mxu0 %v1958
    %2044 = vmatprep.subr.bf16.mxu0 0
    %2045 = vmatpush1.bf16.msra.mxu0 %v1959
    %2046 = vmatprep.subr.bf16.mxu0 0
    %2047 = vmatpush1.bf16.msra.mxu0 %v1960
    %2048 = vmatprep.subr.bf16.mxu0 0
    %2049 = vmatpush1.bf16.msra.mxu0 %v1961
    %2050 = vmatprep.subr.bf16.mxu0 0
    %2051 = vmatpush1.bf16.msra.mxu0 %v1962
    %2052 = vmatprep.subr.bf16.mxu0 0
    %2053 = vmatpush1.bf16.msra.mxu0 %v1963
    %2054 = vmatprep.subr.bf16.mxu0 0
    %2055 = vmatpush1.bf16.msra.mxu0 %v1964
    %2056 = vmatprep.subr.bf16.mxu0 0
    %2057 = vmatpush1.bf16.msra.mxu0 %v1965
    %2058 = vmatprep.subr.bf16.mxu0 0
    %2059 = vmatpush1.bf16.msra.mxu0 %v1966
    %2060 = vmatprep.subr.bf16.mxu0 0
    %2061 = vmatpush1.bf16.msra.mxu0 %v1967
    %2062 = vmatprep.subr.bf16.mxu0 0
    %2063 = vmatpush1.bf16.msra.mxu0 %v1968
    %2064 = vmatprep.subr.bf16.mxu0 0
    %2065 = vmatpush1.bf16.msra.mxu0 0
    %2066 = vmatprep.subr.bf16.mxu0 0
    %2067 = vmatpush1.bf16.msra.mxu0 0
    %2068 = vmatprep.subr.bf16.mxu0 0
    %2069 = vmatpush1.bf16.msra.mxu0 0
    %2070 = vmatprep.subr.bf16.mxu0 0
    %2071 = vmatpush1.bf16.msra.mxu0 0
    %2072 = vmatprep.mubr.bf16.mxu0 %v1998
    %2073 = vmatmul.mubr.bf16.gmra.mrb[0].mxu0 %v1771
    %v2074 = vpop.f32.mrb[0].mxu0
    %v2075 = vadd.f32 %v2035, %v2074
    %v2076 = vpop.f32.mrb[0].mxu0
    %v2077 = vpop.f32.mrb[0].mxu0
    %v2078 = vpop.f32.mrb[0].mxu0
    %2079 = vdwg.mxu0
    %v2080 = vadd.f32 %v1674, %v2075
    %v2081 = vld [vmem:[%s0 + $0x10] sm:$0xff]
    %v2083 = vunpack.c.l.b16 %v2081
    %v2084 = vunpack.c.h.b16 %v2081
    %v2085 = vpack.c.b16 %v2083, %v2083
    %v2086 = vpack.c.b16 %v2084, %v2084
    %2089 = vmatprep.subr.bf16.mxu0 %v339
    %2090 = vmatpush1.bf16.msra.mxu0 %v338
    %2091 = vmatprep.subr.bf16.mxu0 %v343
    %2092 = vmatpush1.bf16.msra.mxu0 %v342
    %2093 = vmatprep.subr.bf16.mxu0 %v347
    %2094 = vmatpush1.bf16.msra.mxu0 %v346
    %2095 = vmatprep.subr.bf16.mxu0 %v351
    %2096 = vmatpush1.bf16.msra.mxu0 %v350
    %2097 = vmatprep.subr.bf16.mxu0 %v355
    %2098 = vmatpush1.bf16.msra.mxu0 %v354
    %2099 = vmatprep.subr.bf16.mxu0 %v359
    %2100 = vmatpush1.bf16.msra.mxu0 %v358
    %2101 = vmatprep.subr.bf16.mxu0 %v363
    %2102 = vmatpush1.bf16.msra.mxu0 %v362
    %2103 = vmatprep.subr.bf16.mxu0 %v367
    %2104 = vmatpush1.bf16.msra.mxu0 %v366
    %2105 = vmatprep.subr.bf16.mxu0 %v371
    %2106 = vmatpush1.bf16.msra.mxu0 %v370
    %2107 = vmatprep.subr.bf16.mxu0 %v375
    %2108 = vmatpush1.bf16.msra.mxu0 %v374
    %2109 = vmatprep.subr.bf16.mxu0 %v379
    %2110 = vmatpush1.bf16.msra.mxu0 %v378
    %2111 = vmatprep.subr.bf16.mxu0 %v383
    %2112 = vmatpush1.bf16.msra.mxu0 %v382
    %2113 = vmatprep.subr.bf16.mxu0 %v387
    %2114 = vmatpush1.bf16.msra.mxu0 %v386
    %2115 = vmatprep.subr.bf16.mxu0 %v391
    %2116 = vmatpush1.bf16.msra.mxu0 %v390
    %2117 = vmatprep.subr.bf16.mxu0 %v395
    %2118 = vmatpush1.bf16.msra.mxu0 %v394
    %2119 = vmatprep.subr.bf16.mxu0 %v399
    %2120 = vmatpush1.bf16.msra.mxu0 %v398
    %2121 = vmatprep.mubr.bf16.mxu0 %v2086
    %2122 = vmatmul.mubr.bf16.gmra.mrb[0].mxu0 %v2085
    %v2123 = vpop.f32.mrb[0].mxu0
    %v2124 = vadd.f32 %v121, %v2123
    %v2125 = vpop.f32.mrb[0].mxu0
    %v2126 = vadd.f32 %v125, %v2125
    %v2127 = vpop.f32.mrb[0].mxu0
    %v2128 = vpop.f32.mrb[0].mxu0
    %2129 = vdwg.mxu0
    %2130 = vmatprep.subr.bf16.mxu0 %v341
    %2131 = vmatpush1.bf16.msra.mxu0 %v340
    %2132 = vmatprep.subr.bf16.mxu0 %v345
    %2133 = vmatpush1.bf16.msra.mxu0 %v344
    %2134 = vmatprep.subr.bf16.mxu0 %v349
    %2135 = vmatpush1.bf16.msra.mxu0 %v348
    %2136 = vmatprep.subr.bf16.mxu0 %v353
    %2137 = vmatpush1.bf16.msra.mxu0 %v352
    %2138 = vmatprep.subr.bf16.mxu0 %v357
    %2139 = vmatpush1.bf16.msra.mxu0 %v356
    %2140 = vmatprep.subr.bf16.mxu0 %v361
    %2141 = vmatpush1.bf16.msra.mxu0 %v360
    %2142 = vmatprep.subr.bf16.mxu0 %v365
    %2143 = vmatpush1.bf16.msra.mxu0 %v364
    %2144 = vmatprep.subr.bf16.mxu0 %v369
    %2145 = vmatpush1.bf16.msra.mxu0 %v368
    %2146 = vmatprep.subr.bf16.mxu0 %v373
    %2147 = vmatpush1.bf16.msra.mxu0 %v372
    %2148 = vmatprep.subr.bf16.mxu0 %v377
    %2149 = vmatpush1.bf16.msra.mxu0 %v376
    %2150 = vmatprep.subr.bf16.mxu0 %v381
    %2151 = vmatpush1.bf16.msra.mxu0 %v380
    %2152 = vmatprep.subr.bf16.mxu0 %v385
    %2153 = vmatpush1.bf16.msra.mxu0 %v384
    %2154 = vmatprep.subr.bf16.mxu0 %v389
    %2155 = vmatpush1.bf16.msra.mxu0 %v388
    %2156 = vmatprep.subr.bf16.mxu0 %v393
    %2157 = vmatpush1.bf16.msra.mxu0 %v392
    %2158 = vmatprep.subr.bf16.mxu0 %v397
    %2159 = vmatpush1.bf16.msra.mxu0 %v396
    %2160 = vmatprep.subr.bf16.mxu0 %v401
    %2161 = vmatpush1.bf16.msra.mxu0 %v400
    %2162 = vmatprep.mubr.bf16.mxu0 %v2086
    %2163 = vmatmul.mubr.bf16.gmra.mrb[0].mxu0 %v2085
    %v2164 = vpop.f32.mrb[0].mxu0
    %v2165 = vadd.f32 %v129, %v2164
    %v2166 = vpop.f32.mrb[0].mxu0
    %v2167 = vadd.f32 %v133, %v2166
    %v2168 = vpop.f32.mrb[0].mxu0
    %v2169 = vpop.f32.mrb[0].mxu0
    %2170 = vdwg.mxu0
    %v2171 = vmax.f32 %v2124, 0.0
    %v2172 = vmax.f32 %v2126, 0.0
    %v2173 = vmax.f32 %v2165, 0.0
    %v2174 = vmax.f32 %v2167, 0.0
    %v2175 = vpack.c.bf16 %v2171, %v2171
    %v2176 = vpack.c.bf16 %v2172, %v2172
    %v2177 = vpack.c.bf16 %v2173, %v2173
    %v2178 = vpack.c.bf16 %v2174, %v2174
    %v2179 = vld [vmem:[%s3 + $0x380] sm:$0xf]
    %v2180 = vld [vmem:[%s3 + $0x384] sm:$0xf]
    %v2181 = vld [vmem:[%s3 + $0x388] sm:$0xf]
    %v2182 = vld [vmem:[%s3 + $0x38c] sm:$0xf]
    %v2183 = vld [vmem:[%s3 + $0x390] sm:$0xf]
    %v2184 = vld [vmem:[%s3 + $0x394] sm:$0xf]
    %v2185 = vld [vmem:[%s3 + $0x398] sm:$0xf]
    %v2186 = vld [vmem:[%s3 + $0x39c] sm:$0xf]
    %v2187 = vld [vmem:[%s3 + $0x3a0] sm:$0xf]
    %v2188 = vld [vmem:[%s3 + $0x3a4] sm:$0xf]
    %v2189 = vld [vmem:[%s3 + $0x3a8] sm:$0xf]
    %v2190 = vld [vmem:[%s3 + $0x3ac] sm:$0xf]
    %v2191 = vld [vmem:[%s3 + $0x3b0] sm:$0xf]
    %v2192 = vld [vmem:[%s3 + $0x3b4] sm:$0xf]
    %v2193 = vld [vmem:[%s3 + $0x3b8] sm:$0xf]
    %v2194 = vld [vmem:[%s3 + $0x3bc] sm:$0xf]
    %v2195 = vld [vmem:[%s3 + $0x3c0] sm:$0xf]
    %v2196 = vld [vmem:[%s3 + $0x3c4] sm:$0xf]
    %v2197 = vld [vmem:[%s3 + $0x3c8] sm:$0xf]
    %v2198 = vld [vmem:[%s3 + $0x3cc] sm:$0xf]
    %v2199 = vld [vmem:[%s3 + $0x3d0] sm:$0xf]
    %v2200 = vld [vmem:[%s3 + $0x3d4] sm:$0xf]
    %v2201 = vld [vmem:[%s3 + $0x3d8] sm:$0xf]
    %v2202 = vld [vmem:[%s3 + $0x3dc] sm:$0xf]
    %v2203 = vld [vmem:[%s3 + $0x3e0] sm:$0xf]
    %v2204 = vld [vmem:[%s3 + $0x3e4] sm:$0xf]
    %v2205 = vld [vmem:[%s3 + $0x3e8] sm:$0xf]
    %v2206 = vld [vmem:[%s3 + $0x3ec] sm:$0xf]
    %v2207 = vld [vmem:[%s3 + $0x3f0] sm:$0xf]
    %v2208 = vld [vmem:[%s3 + $0x3f4] sm:$0xf]
    %v2209 = vld [vmem:[%s3 + $0x3f8] sm:$0xf]
    %v2210 = vld [vmem:[%s3 + $0x3fc] sm:$0xf]
    %v2211 = vld [vmem:[%s3 + $0x400] sm:$0xf]
    %v2212 = vld [vmem:[%s3 + $0x404] sm:$0xf]
    %v2213 = vld [vmem:[%s3 + $0x408] sm:$0xf]
    %v2214 = vld [vmem:[%s3 + $0x40c] sm:$0xf]
    %v2215 = vld [vmem:[%s3 + $0x410] sm:$0xf]
    %v2216 = vld [vmem:[%s3 + $0x414] sm:$0xf]
    %v2217 = vld [vmem:[%s3 + $0x418] sm:$0xf]
    %v2218 = vld [vmem:[%s3 + $0x41c] sm:$0xf]
    %v2219 = vld [vmem:[%s3 + $0x420] sm:$0xf]
    %v2220 = vld [vmem:[%s3 + $0x424] sm:$0xf]
    %v2221 = vld [vmem:[%s3 + $0x428] sm:$0xf]
    %v2222 = vld [vmem:[%s3 + $0x42c] sm:$0xf]
    %v2223 = vld [vmem:[%s3 + $0x430] sm:$0xf]
    %v2224 = vld [vmem:[%s3 + $0x434] sm:$0xf]
    %v2225 = vld [vmem:[%s3 + $0x438] sm:$0xf]
    %v2226 = vld [vmem:[%s3 + $0x43c] sm:$0xf]
    %v2227 = vld [vmem:[%s3 + $0x440] sm:$0xf]
    %v2228 = vld [vmem:[%s3 + $0x444] sm:$0xf]
    %v2229 = vld [vmem:[%s3 + $0x448] sm:$0xf]
    %v2230 = vld [vmem:[%s3 + $0x44c] sm:$0xf]
    %v2231 = vld [vmem:[%s3 + $0x450] sm:$0xf]
    %v2232 = vld [vmem:[%s3 + $0x454] sm:$0xf]
    %v2233 = vld [vmem:[%s3 + $0x458] sm:$0xf]
    %v2234 = vld [vmem:[%s3 + $0x45c] sm:$0xf]
    %v2291 = vunpack.c.l.b16 %v2179
    %v2292 = vunpack.c.l.b16 %v2180
    %v2293 = vunpack.c.l.b16 %v2181
    %v2294 = vunpack.c.l.b16 %v2182
    %v2295 = vunpack.c.l.b16 %v2183
    %v2296 = vunpack.c.l.b16 %v2184
    %v2297 = vunpack.c.l.b16 %v2185
    %v2298 = vunpack.c.l.b16 %v2186
    %v2299 = vunpack.c.l.b16 %v2187
    %v2300 = vunpack.c.l.b16 %v2188
    %v2301 = vunpack.c.l.b16 %v2189
    %v2302 = vunpack.c.l.b16 %v2190
    %v2303 = vunpack.c.l.b16 %v2191
    %v2304 = vunpack.c.l.b16 %v2192
    %v2305 = vunpack.c.l.b16 %v2193
    %v2306 = vunpack.c.l.b16 %v2194
    %v2307 = vunpack.c.l.b16 %v2195
    %v2308 = vunpack.c.l.b16 %v2196
    %v2309 = vunpack.c.l.b16 %v2197
    %v2310 = vunpack.c.l.b16 %v2198
    %v2311 = vunpack.c.l.b16 %v2199
    %v2312 = vunpack.c.l.b16 %v2200
    %v2313 = vunpack.c.l.b16 %v2201
    %v2314 = vunpack.c.l.b16 %v2202
    %v2315 = vunpack.c.l.b16 %v2203
    %v2316 = vunpack.c.l.b16 %v2204
    %v2317 = vunpack.c.l.b16 %v2205
    %v2318 = vunpack.c.l.b16 %v2206
    %v2319 = vunpack.c.l.b16 %v2207
    %v2320 = vunpack.c.l.b16 %v2208
    %v2321 = vunpack.c.l.b16 %v2209
    %v2322 = vunpack.c.l.b16 %v2210
    %v2323 = vunpack.c.l.b16 %v2211
    %v2324 = vunpack.c.l.b16 %v2212
    %v2325 = vunpack.c.l.b16 %v2213
    %v2326 = vunpack.c.l.b16 %v2214
    %v2327 = vunpack.c.l.b16 %v2215
    %v2328 = vunpack.c.l.b16 %v2216
    %v2329 = vunpack.c.l.b16 %v2217
    %v2330 = vunpack.c.l.b16 %v2218
    %v2331 = vunpack.c.l.b16 %v2219
    %v2332 = vunpack.c.l.b16 %v2220
    %v2333 = vunpack.c.l.b16 %v2221
    %v2334 = vunpack.c.l.b16 %v2222
    %v2335 = vunpack.c.l.b16 %v2223
    %v2336 = vunpack.c.l.b16 %v2224
    %v2337 = vunpack.c.l.b16 %v2225
    %v2338 = vunpack.c.l.b16 %v2226
    %v2339 = vunpack.c.l.b16 %v2227
    %v2340 = vunpack.c.l.b16 %v2228
    %v2341 = vunpack.c.l.b16 %v2229
    %v2342 = vunpack.c.l.b16 %v2230
    %v2343 = vunpack.c.l.b16 %v2231
    %v2344 = vunpack.c.l.b16 %v2232
    %v2345 = vunpack.c.l.b16 %v2233
    %v2346 = vunpack.c.l.b16 %v2234
    %v2347 = vpack.c.b16 %v2292, %v2291
    %v2348 = vpack.c.b16 %v2294, %v2293
    %v2349 = vpack.c.b16 %v2296, %v2295
    %v2350 = vpack.c.b16 %v2298, %v2297
    %v2351 = vpack.c.b16 %v2300, %v2299
    %v2352 = vpack.c.b16 %v2302, %v2301
    %v2353 = vpack.c.b16 %v2304, %v2303
    %v2354 = vpack.c.b16 %v2306, %v2305
    %v2355 = vpack.c.b16 %v2308, %v2307
    %v2356 = vpack.c.b16 %v2310, %v2309
    %v2357 = vpack.c.b16 %v2312, %v2311
    %v2358 = vpack.c.b16 %v2314, %v2313
    %v2359 = vpack.c.b16 %v2316, %v2315
    %v2360 = vpack.c.b16 %v2318, %v2317
    %v2361 = vpack.c.b16 %v2320, %v2319
    %v2362 = vpack.c.b16 %v2322, %v2321
    %v2363 = vpack.c.b16 %v2324, %v2323
    %v2364 = vpack.c.b16 %v2326, %v2325
    %v2365 = vpack.c.b16 %v2328, %v2327
    %v2366 = vpack.c.b16 %v2330, %v2329
    %v2367 = vpack.c.b16 %v2332, %v2331
    %v2368 = vpack.c.b16 %v2334, %v2333
    %v2369 = vpack.c.b16 %v2336, %v2335
    %v2370 = vpack.c.b16 %v2338, %v2337
    %v2371 = vpack.c.b16 %v2340, %v2339
    %v2372 = vpack.c.b16 %v2342, %v2341
    %v2373 = vpack.c.b16 %v2344, %v2343
    %v2374 = vpack.c.b16 %v2346, %v2345
    %v2404 = vsel %vm934, %v2178, 0
    %2406 = vmatprep.subr.bf16.mxu0 0
    %2407 = vmatpush1.bf16.msra.mxu0 %v2347
    %2408 = vmatprep.subr.bf16.mxu0 0
    %2409 = vmatpush1.bf16.msra.mxu0 %v2348
    %2410 = vmatprep.subr.bf16.mxu0 0
    %2411 = vmatpush1.bf16.msra.mxu0 %v2349
    %2412 = vmatprep.subr.bf16.mxu0 0
    %2413 = vmatpush1.bf16.msra.mxu0 %v2350
    %2414 = vmatprep.subr.bf16.mxu0 0
    %2415 = vmatpush1.bf16.msra.mxu0 %v2351
    %2416 = vmatprep.subr.bf16.mxu0 0
    %2417 = vmatpush1.bf16.msra.mxu0 %v2352
    %2418 = vmatprep.subr.bf16.mxu0 0
    %2419 = vmatpush1.bf16.msra.mxu0 %v2353
    %2420 = vmatprep.subr.bf16.mxu0 0
    %2421 = vmatpush1.bf16.msra.mxu0 %v2354
    %2422 = vmatprep.subr.bf16.mxu0 0
    %2423 = vmatpush1.bf16.msra.mxu0 %v2355
    %2424 = vmatprep.subr.bf16.mxu0 0
    %2425 = vmatpush1.bf16.msra.mxu0 %v2356
    %2426 = vmatprep.subr.bf16.mxu0 0
    %2427 = vmatpush1.bf16.msra.mxu0 %v2357
    %2428 = vmatprep.subr.bf16.mxu0 0
    %2429 = vmatpush1.bf16.msra.mxu0 %v2358
    %2430 = vmatprep.subr.bf16.mxu0 0
    %2431 = vmatpush1.bf16.msra.mxu0 %v2359
    %2432 = vmatprep.subr.bf16.mxu0 0
    %2433 = vmatpush1.bf16.msra.mxu0 %v2360
    %2434 = vmatprep.subr.bf16.mxu0 0
    %2435 = vmatpush1.bf16.msra.mxu0 %v2361
    %2436 = vmatprep.subr.bf16.mxu0 0
    %2437 = vmatpush1.bf16.msra.mxu0 %v2362
    %2438 = vmatprep.mubr.bf16.mxu0 %v2176
    %2439 = vmatmul.mubr.bf16.gmra.mrb[0].mxu0 %v2175
    %v2440 = vpop.f32.mrb[0].mxu0
    %v2441 = vadd.f32 0.0, %v2440
    %v2442 = vpop.f32.mrb[0].mxu0
    %v2443 = vpop.f32.mrb[0].mxu0
    %v2444 = vpop.f32.mrb[0].mxu0
    %2445 = vdwg.mxu0
    %2446 = vmatprep.subr.bf16.mxu0 0
    %2447 = vmatpush1.bf16.msra.mxu0 %v2363
    %2448 = vmatprep.subr.bf16.mxu0 0
    %2449 = vmatpush1.bf16.msra.mxu0 %v2364
    %2450 = vmatprep.subr.bf16.mxu0 0
    %2451 = vmatpush1.bf16.msra.mxu0 %v2365
    %2452 = vmatprep.subr.bf16.mxu0 0
    %2453 = vmatpush1.bf16.msra.mxu0 %v2366
    %2454 = vmatprep.subr.bf16.mxu0 0
    %2455 = vmatpush1.bf16.msra.mxu0 %v2367
    %2456 = vmatprep.subr.bf16.mxu0 0
    %2457 = vmatpush1.bf16.msra.mxu0 %v2368
    %2458 = vmatprep.subr.bf16.mxu0 0
    %2459 = vmatpush1.bf16.msra.mxu0 %v2369
    %2460 = vmatprep.subr.bf16.mxu0 0
    %2461 = vmatpush1.bf16.msra.mxu0 %v2370
    %2462 = vmatprep.subr.bf16.mxu0 0
    %2463 = vmatpush1.bf16.msra.mxu0 %v2371
    %2464 = vmatprep.subr.bf16.mxu0 0
    %2465 = vmatpush1.bf16.msra.mxu0 %v2372
    %2466 = vmatprep.subr.bf16.mxu0 0
    %2467 = vmatpush1.bf16.msra.mxu0 %v2373
    %2468 = vmatprep.subr.bf16.mxu0 0
    %2469 = vmatpush1.bf16.msra.mxu0 %v2374
    %2470 = vmatprep.subr.bf16.mxu0 0
    %2471 = vmatpush1.bf16.msra.mxu0 0
    %2472 = vmatprep.subr.bf16.mxu0 0
    %2473 = vmatpush1.bf16.msra.mxu0 0
    %2474 = vmatprep.subr.bf16.mxu0 0
    %2475 = vmatpush1.bf16.msra.mxu0 0
    %2476 = vmatprep.subr.bf16.mxu0 0
    %2477 = vmatpush1.bf16.msra.mxu0 0
    %2478 = vmatprep.mubr.bf16.mxu0 %v2404
    %2479 = vmatmul.mubr.bf16.gmra.mrb[0].mxu0 %v2177
    %v2480 = vpop.f32.mrb[0].mxu0
    %v2481 = vadd.f32 %v2441, %v2480
    %v2482 = vpop.f32.mrb[0].mxu0
    %v2483 = vpop.f32.mrb[0].mxu0
    %v2484 = vpop.f32.mrb[0].mxu0
    %2485 = vdwg.mxu0
    %v2486 = vadd.f32 %v2080, %v2481
    %v2487 = vld [vmem:[%s0 + $0x14] sm:$0xff]
    %v2489 = vunpack.c.l.b16 %v2487
    %v2490 = vunpack.c.h.b16 %v2487
    %v2491 = vpack.c.b16 %v2489, %v2489
    %v2492 = vpack.c.b16 %v2490, %v2490
    %2495 = vmatprep.subr.bf16.mxu0 %v339
    %2496 = vmatpush1.bf16.msra.mxu0 %v338
    %2497 = vmatprep.subr.bf16.mxu0 %v343
    %2498 = vmatpush1.bf16.msra.mxu0 %v342
    %2499 = vmatprep.subr.bf16.mxu0 %v347
    %2500 = vmatpush1.bf16.msra.mxu0 %v346
    %2501 = vmatprep.subr.bf16.mxu0 %v351
    %2502 = vmatpush1.bf16.msra.mxu0 %v350
    %2503 = vmatprep.subr.bf16.mxu0 %v355
    %2504 = vmatpush1.bf16.msra.mxu0 %v354
    %2505 = vmatprep.subr.bf16.mxu0 %v359
    %2506 = vmatpush1.bf16.msra.mxu0 %v358
    %2507 = vmatprep.subr.bf16.mxu0 %v363
    %2508 = vmatpush1.bf16.msra.mxu0 %v362
    %2509 = vmatprep.subr.bf16.mxu0 %v367
    %2510 = vmatpush1.bf16.msra.mxu0 %v366
    %2511 = vmatprep.subr.bf16.mxu0 %v371
    %2512 = vmatpush1.bf16.msra.mxu0 %v370
    %2513 = vmatprep.subr.bf16.mxu0 %v375
    %2514 = vmatpush1.bf16.msra.mxu0 %v374
    %2515 = vmatprep.subr.bf16.mxu0 %v379
    %2516 = vmatpush1.bf16.msra.mxu0 %v378
    %2517 = vmatprep.subr.bf16.mxu0 %v383
    %2518 = vmatpush1.bf16.msra.mxu0 %v382
    %2519 = vmatprep.subr.bf16.mxu0 %v387
    %2520 = vmatpush1.bf16.msra.mxu0 %v386
    %2521 = vmatprep.subr.bf16.mxu0 %v391
    %2522 = vmatpush1.bf16.msra.mxu0 %v390
    %2523 = vmatprep.subr.bf16.mxu0 %v395
    %2524 = vmatpush1.bf16.msra.mxu0 %v394
    %2525 = vmatprep.subr.bf16.mxu0 %v399
    %2526 = vmatpush1.bf16.msra.mxu0 %v398
    %2527 = vmatprep.mubr.bf16.mxu0 %v2492
    %2528 = vmatmul.mubr.bf16.gmra.mrb[0].mxu0 %v2491
    %v2529 = vpop.f32.mrb[0].mxu0
    %v2530 = vadd.f32 %v121, %v2529
    %v2531 = vpop.f32.mrb[0].mxu0
    %v2532 = vadd.f32 %v125, %v2531
    %v2533 = vpop.f32.mrb[0].mxu0
    %v2534 = vpop.f32.mrb[0].mxu0
    %2535 = vdwg.mxu0
    %2536 = vmatprep.subr.bf16.mxu0 %v341
    %2537 = vmatpush1.bf16.msra.mxu0 %v340
    %2538 = vmatprep.subr.bf16.mxu0 %v345
    %2539 = vmatpush1.bf16.msra.mxu0 %v344
    %2540 = vmatprep.subr.bf16.mxu0 %v349
    %2541 = vmatpush1.bf16.msra.mxu0 %v348
    %2542 = vmatprep.subr.bf16.mxu0 %v353
    %2543 = vmatpush1.bf16.msra.mxu0 %v352
    %2544 = vmatprep.subr.bf16.mxu0 %v357
    %2545 = vmatpush1.bf16.msra.mxu0 %v356
    %2546 = vmatprep.subr.bf16.mxu0 %v361
    %2547 = vmatpush1.bf16.msra.mxu0 %v360
    %2548 = vmatprep.subr.bf16.mxu0 %v365
    %2549 = vmatpush1.bf16.msra.mxu0 %v364
    %2550 = vmatprep.subr.bf16.mxu0 %v369
    %2551 = vmatpush1.bf16.msra.mxu0 %v368
    %2552 = vmatprep.subr.bf16.mxu0 %v373
    %2553 = vmatpush1.bf16.msra.mxu0 %v372
    %2554 = vmatprep.subr.bf16.mxu0 %v377
    %2555 = vmatpush1.bf16.msra.mxu0 %v376
    %2556 = vmatprep.subr.bf16.mxu0 %v381
    %2557 = vmatpush1.bf16.msra.mxu0 %v380
    %2558 = vmatprep.subr.bf16.mxu0 %v385
    %2559 = vmatpush1.bf16.msra.mxu0 %v384
    %2560 = vmatprep.subr.bf16.mxu0 %v389
    %2561 = vmatpush1.bf16.msra.mxu0 %v388
    %2562 = vmatprep.subr.bf16.mxu0 %v393
    %2563 = vmatpush1.bf16.msra.mxu0 %v392
    %2564 = vmatprep.subr.bf16.mxu0 %v397
    %2565 = vmatpush1.bf16.msra.mxu0 %v396
    %2566 = vmatprep.subr.bf16.mxu0 %v401
    %2567 = vmatpush1.bf16.msra.mxu0 %v400
    %2568 = vmatprep.mubr.bf16.mxu0 %v2492
    %2569 = vmatmul.mubr.bf16.gmra.mrb[0].mxu0 %v2491
    %v2570 = vpop.f32.mrb[0].mxu0
    %v2571 = vadd.f32 %v129, %v2570
    %v2572 = vpop.f32.mrb[0].mxu0
    %v2573 = vadd.f32 %v133, %v2572
    %v2574 = vpop.f32.mrb[0].mxu0
    %v2575 = vpop.f32.mrb[0].mxu0
    %2576 = vdwg.mxu0
    %v2577 = vmax.f32 %v2530, 0.0
    %v2578 = vmax.f32 %v2532, 0.0
    %v2579 = vmax.f32 %v2571, 0.0
    %v2580 = vmax.f32 %v2573, 0.0
    %v2581 = vpack.c.bf16 %v2577, %v2577
    %v2582 = vpack.c.bf16 %v2578, %v2578
    %v2583 = vpack.c.bf16 %v2579, %v2579
    %v2584 = vpack.c.bf16 %v2580, %v2580
    %v2585 = vld [vmem:[%s3 + $0x460] sm:$0xf]
    %v2586 = vld [vmem:[%s3 + $0x464] sm:$0xf]
    %v2587 = vld [vmem:[%s3 + $0x468] sm:$0xf]
    %v2588 = vld [vmem:[%s3 + $0x46c] sm:$0xf]
    %v2589 = vld [vmem:[%s3 + $0x470] sm:$0xf]
    %v2590 = vld [vmem:[%s3 + $0x474] sm:$0xf]
    %v2591 = vld [vmem:[%s3 + $0x478] sm:$0xf]
    %v2592 = vld [vmem:[%s3 + $0x47c] sm:$0xf]
    %v2593 = vld [vmem:[%s3 + $0x480] sm:$0xf]
    %v2594 = vld [vmem:[%s3 + $0x484] sm:$0xf]
    %v2595 = vld [vmem:[%s3 + $0x488] sm:$0xf]
    %v2596 = vld [vmem:[%s3 + $0x48c] sm:$0xf]
    %v2597 = vld [vmem:[%s3 + $0x490] sm:$0xf]
    %v2598 = vld [vmem:[%s3 + $0x494] sm:$0xf]
    %v2599 = vld [vmem:[%s3 + $0x498] sm:$0xf]
    %v2600 = vld [vmem:[%s3 + $0x49c] sm:$0xf]
    %v2601 = vld [vmem:[%s3 + $0x4a0] sm:$0xf]
    %v2602 = vld [vmem:[%s3 + $0x4a4] sm:$0xf]
    %v2603 = vld [vmem:[%s3 + $0x4a8] sm:$0xf]
    %v2604 = vld [vmem:[%s3 + $0x4ac] sm:$0xf]
    %v2605 = vld [vmem:[%s3 + $0x4b0] sm:$0xf]
    %v2606 = vld [vmem:[%s3 + $0x4b4] sm:$0xf]
    %v2607 = vld [vmem:[%s3 + $0x4b8] sm:$0xf]
    %v2608 = vld [vmem:[%s3 + $0x4bc] sm:$0xf]
    %v2609 = vld [vmem:[%s3 + $0x4c0] sm:$0xf]
    %v2610 = vld [vmem:[%s3 + $0x4c4] sm:$0xf]
    %v2611 = vld [vmem:[%s3 + $0x4c8] sm:$0xf]
    %v2612 = vld [vmem:[%s3 + $0x4cc] sm:$0xf]
    %v2613 = vld [vmem:[%s3 + $0x4d0] sm:$0xf]
    %v2614 = vld [vmem:[%s3 + $0x4d4] sm:$0xf]
    %v2615 = vld [vmem:[%s3 + $0x4d8] sm:$0xf]
    %v2616 = vld [vmem:[%s3 + $0x4dc] sm:$0xf]
    %v2617 = vld [vmem:[%s3 + $0x4e0] sm:$0xf]
    %v2618 = vld [vmem:[%s3 + $0x4e4] sm:$0xf]
    %v2619 = vld [vmem:[%s3 + $0x4e8] sm:$0xf]
    %v2620 = vld [vmem:[%s3 + $0x4ec] sm:$0xf]
    %v2621 = vld [vmem:[%s3 + $0x4f0] sm:$0xf]
    %v2622 = vld [vmem:[%s3 + $0x4f4] sm:$0xf]
    %v2623 = vld [vmem:[%s3 + $0x4f8] sm:$0xf]
    %v2624 = vld [vmem:[%s3 + $0x4fc] sm:$0xf]
    %v2625 = vld [vmem:[%s3 + $0x500] sm:$0xf]
    %v2626 = vld [vmem:[%s3 + $0x504] sm:$0xf]
    %v2627 = vld [vmem:[%s3 + $0x508] sm:$0xf]
    %v2628 = vld [vmem:[%s3 + $0x50c] sm:$0xf]
    %v2629 = vld [vmem:[%s3 + $0x510] sm:$0xf]
    %v2630 = vld [vmem:[%s3 + $0x514] sm:$0xf]
    %v2631 = vld [vmem:[%s3 + $0x518] sm:$0xf]
    %v2632 = vld [vmem:[%s3 + $0x51c] sm:$0xf]
    %v2633 = vld [vmem:[%s3 + $0x520] sm:$0xf]
    %v2634 = vld [vmem:[%s3 + $0x524] sm:$0xf]
    %v2635 = vld [vmem:[%s3 + $0x528] sm:$0xf]
    %v2636 = vld [vmem:[%s3 + $0x52c] sm:$0xf]
    %v2637 = vld [vmem:[%s3 + $0x530] sm:$0xf]
    %v2638 = vld [vmem:[%s3 + $0x534] sm:$0xf]
    %v2639 = vld [vmem:[%s3 + $0x538] sm:$0xf]
    %v2640 = vld [vmem:[%s3 + $0x53c] sm:$0xf]
    %v2697 = vunpack.c.l.b16 %v2585
    %v2698 = vunpack.c.l.b16 %v2586
    %v2699 = vunpack.c.l.b16 %v2587
    %v2700 = vunpack.c.l.b16 %v2588
    %v2701 = vunpack.c.l.b16 %v2589
    %v2702 = vunpack.c.l.b16 %v2590
    %v2703 = vunpack.c.l.b16 %v2591
    %v2704 = vunpack.c.l.b16 %v2592
    %v2705 = vunpack.c.l.b16 %v2593
    %v2706 = vunpack.c.l.b16 %v2594
    %v2707 = vunpack.c.l.b16 %v2595
    %v2708 = vunpack.c.l.b16 %v2596
    %v2709 = vunpack.c.l.b16 %v2597
    %v2710 = vunpack.c.l.b16 %v2598
    %v2711 = vunpack.c.l.b16 %v2599
    %v2712 = vunpack.c.l.b16 %v2600
    %v2713 = vunpack.c.l.b16 %v2601
    %v2714 = vunpack.c.l.b16 %v2602
    %v2715 = vunpack.c.l.b16 %v2603
    %v2716 = vunpack.c.l.b16 %v2604
    %v2717 = vunpack.c.l.b16 %v2605
    %v2718 = vunpack.c.l.b16 %v2606
    %v2719 = vunpack.c.l.b16 %v2607
    %v2720 = vunpack.c.l.b16 %v2608
    %v2721 = vunpack.c.l.b16 %v2609
    %v2722 = vunpack.c.l.b16 %v2610
    %v2723 = vunpack.c.l.b16 %v2611
    %v2724 = vunpack.c.l.b16 %v2612
    %v2725 = vunpack.c.l.b16 %v2613
    %v2726 = vunpack.c.l.b16 %v2614
    %v2727 = vunpack.c.l.b16 %v2615
    %v2728 = vunpack.c.l.b16 %v2616
    %v2729 = vunpack.c.l.b16 %v2617
    %v2730 = vunpack.c.l.b16 %v2618
    %v2731 = vunpack.c.l.b16 %v2619
    %v2732 = vunpack.c.l.b16 %v2620
    %v2733 = vunpack.c.l.b16 %v2621
    %v2734 = vunpack.c.l.b16 %v2622
    %v2735 = vunpack.c.l.b16 %v2623
    %v2736 = vunpack.c.l.b16 %v2624
    %v2737 = vunpack.c.l.b16 %v2625
    %v2738 = vunpack.c.l.b16 %v2626
    %v2739 = vunpack.c.l.b16 %v2627
    %v2740 = vunpack.c.l.b16 %v2628
    %v2741 = vunpack.c.l.b16 %v2629
    %v2742 = vunpack.c.l.b16 %v2630
    %v2743 = vunpack.c.l.b16 %v2631
    %v2744 = vunpack.c.l.b16 %v2632
    %v2745 = vunpack.c.l.b16 %v2633
    %v2746 = vunpack.c.l.b16 %v2634
    %v2747 = vunpack.c.l.b16 %v2635
    %v2748 = vunpack.c.l.b16 %v2636
    %v2749 = vunpack.c.l.b16 %v2637
    %v2750 = vunpack.c.l.b16 %v2638
    %v2751 = vunpack.c.l.b16 %v2639
    %v2752 = vunpack.c.l.b16 %v2640
    %v2753 = vpack.c.b16 %v2698, %v2697
    %v2754 = vpack.c.b16 %v2700, %v2699
    %v2755 = vpack.c.b16 %v2702, %v2701
    %v2756 = vpack.c.b16 %v2704, %v2703
    %v2757 = vpack.c.b16 %v2706, %v2705
    %v2758 = vpack.c.b16 %v2708, %v2707
    %v2759 = vpack.c.b16 %v2710, %v2709
    %v2760 = vpack.c.b16 %v2712, %v2711
    %v2761 = vpack.c.b16 %v2714, %v2713
    %v2762 = vpack.c.b16 %v2716, %v2715
    %v2763 = vpack.c.b16 %v2718, %v2717
    %v2764 = vpack.c.b16 %v2720, %v2719
    %v2765 = vpack.c.b16 %v2722, %v2721
    %v2766 = vpack.c.b16 %v2724, %v2723
    %v2767 = vpack.c.b16 %v2726, %v2725
    %v2768 = vpack.c.b16 %v2728, %v2727
    %v2769 = vpack.c.b16 %v2730, %v2729
    %v2770 = vpack.c.b16 %v2732, %v2731
    %v2771 = vpack.c.b16 %v2734, %v2733
    %v2772 = vpack.c.b16 %v2736, %v2735
    %v2773 = vpack.c.b16 %v2738, %v2737
    %v2774 = vpack.c.b16 %v2740, %v2739
    %v2775 = vpack.c.b16 %v2742, %v2741
    %v2776 = vpack.c.b16 %v2744, %v2743
    %v2777 = vpack.c.b16 %v2746, %v2745
    %v2778 = vpack.c.b16 %v2748, %v2747
    %v2779 = vpack.c.b16 %v2750, %v2749
    %v2780 = vpack.c.b16 %v2752, %v2751
    %v2810 = vsel %vm934, %v2584, 0
    %2812 = vmatprep.subr.bf16.mxu0 0
    %2813 = vmatpush1.bf16.msra.mxu0 %v2753
    %2814 = vmatprep.subr.bf16.mxu0 0
    %2815 = vmatpush1.bf16.msra.mxu0 %v2754
    %2816 = vmatprep.subr.bf16.mxu0 0
    %2817 = vmatpush1.bf16.msra.mxu0 %v2755
    %2818 = vmatprep.subr.bf16.mxu0 0
    %2819 = vmatpush1.bf16.msra.mxu0 %v2756
    %2820 = vmatprep.subr.bf16.mxu0 0
    %2821 = vmatpush1.bf16.msra.mxu0 %v2757
    %2822 = vmatprep.subr.bf16.mxu0 0
    %2823 = vmatpush1.bf16.msra.mxu0 %v2758
    %2824 = vmatprep.subr.bf16.mxu0 0
    %2825 = vmatpush1.bf16.msra.mxu0 %v2759
    %2826 = vmatprep.subr.bf16.mxu0 0
    %2827 = vmatpush1.bf16.msra.mxu0 %v2760
    %2828 = vmatprep.subr.bf16.mxu0 0
    %2829 = vmatpush1.bf16.msra.mxu0 %v2761
    %2830 = vmatprep.subr.bf16.mxu0 0
    %2831 = vmatpush1.bf16.msra.mxu0 %v2762
    %2832 = vmatprep.subr.bf16.mxu0 0
    %2833 = vmatpush1.bf16.msra.mxu0 %v2763
    %2834 = vmatprep.subr.bf16.mxu0 0
    %2835 = vmatpush1.bf16.msra.mxu0 %v2764
    %2836 = vmatprep.subr.bf16.mxu0 0
    %2837 = vmatpush1.bf16.msra.mxu0 %v2765
    %2838 = vmatprep.subr.bf16.mxu0 0
    %2839 = vmatpush1.bf16.msra.mxu0 %v2766
    %2840 = vmatprep.subr.bf16.mxu0 0
    %2841 = vmatpush1.bf16.msra.mxu0 %v2767
    %2842 = vmatprep.subr.bf16.mxu0 0
    %2843 = vmatpush1.bf16.msra.mxu0 %v2768
    %2844 = vmatprep.mubr.bf16.mxu0 %v2582
    %2845 = vmatmul.mubr.bf16.gmra.mrb[0].mxu0 %v2581
    %v2846 = vpop.f32.mrb[0].mxu0
    %v2847 = vadd.f32 0.0, %v2846
    %v2848 = vpop.f32.mrb[0].mxu0
    %v2849 = vpop.f32.mrb[0].mxu0
    %v2850 = vpop.f32.mrb[0].mxu0
    %2851 = vdwg.mxu0
    %2852 = vmatprep.subr.bf16.mxu0 0
    %2853 = vmatpush1.bf16.msra.mxu0 %v2769
    %2854 = vmatprep.subr.bf16.mxu0 0
    %2855 = vmatpush1.bf16.msra.mxu0 %v2770
    %2856 = vmatprep.subr.bf16.mxu0 0
    %2857 = vmatpush1.bf16.msra.mxu0 %v2771
    %2858 = vmatprep.subr.bf16.mxu0 0
    %2859 = vmatpush1.bf16.msra.mxu0 %v2772
    %2860 = vmatprep.subr.bf16.mxu0 0
    %2861 = vmatpush1.bf16.msra.mxu0 %v2773
    %2862 = vmatprep.subr.bf16.mxu0 0
    %2863 = vmatpush1.bf16.msra.mxu0 %v2774
    %2864 = vmatprep.subr.bf16.mxu0 0
    %2865 = vmatpush1.bf16.msra.mxu0 %v2775
    %2866 = vmatprep.subr.bf16.mxu0 0
    %2867 = vmatpush1.bf16.msra.mxu0 %v2776
    %2868 = vmatprep.subr.bf16.mxu0 0
    %2869 = vmatpush1.bf16.msra.mxu0 %v2777
    %2870 = vmatprep.subr.bf16.mxu0 0
    %2871 = vmatpush1.bf16.msra.mxu0 %v2778
    %2872 = vmatprep.subr.bf16.mxu0 0
    %2873 = vmatpush1.bf16.msra.mxu0 %v2779
    %2874 = vmatprep.subr.bf16.mxu0 0
    %2875 = vmatpush1.bf16.msra.mxu0 %v2780
    %2876 = vmatprep.subr.bf16.mxu0 0
    %2877 = vmatpush1.bf16.msra.mxu0 0
    %2878 = vmatprep.subr.bf16.mxu0 0
    %2879 = vmatpush1.bf16.msra.mxu0 0
    %2880 = vmatprep.subr.bf16.mxu0 0
    %2881 = vmatpush1.bf16.msra.mxu0 0
    %2882 = vmatprep.subr.bf16.mxu0 0
    %2883 = vmatpush1.bf16.msra.mxu0 0
    %2884 = vmatprep.mubr.bf16.mxu0 %v2810
    %2885 = vmatmul.mubr.bf16.gmra.mrb[0].mxu0 %v2583
    %v2886 = vpop.f32.mrb[0].mxu0
    %v2887 = vadd.f32 %v2847, %v2886
    %v2888 = vpop.f32.mrb[0].mxu0
    %v2889 = vpop.f32.mrb[0].mxu0
    %v2890 = vpop.f32.mrb[0].mxu0
    %2891 = vdwg.mxu0
    %v2892 = vadd.f32 %v2486, %v2887
    %v2893 = vld [vmem:[%s0 + $0x18] sm:$0xff]
    %v2895 = vunpack.c.l.b16 %v2893
    %v2896 = vunpack.c.h.b16 %v2893
    %v2897 = vpack.c.b16 %v2895, %v2895
    %v2898 = vpack.c.b16 %v2896, %v2896
    %2901 = vmatprep.subr.bf16.mxu0 %v339
    %2902 = vmatpush1.bf16.msra.mxu0 %v338
    %2903 = vmatprep.subr.bf16.mxu0 %v343
    %2904 = vmatpush1.bf16.msra.mxu0 %v342
    %2905 = vmatprep.subr.bf16.mxu0 %v347
    %2906 = vmatpush1.bf16.msra.mxu0 %v346
    %2907 = vmatprep.subr.bf16.mxu0 %v351
    %2908 = vmatpush1.bf16.msra.mxu0 %v350
    %2909 = vmatprep.subr.bf16.mxu0 %v355
    %2910 = vmatpush1.bf16.msra.mxu0 %v354
    %2911 = vmatprep.subr.bf16.mxu0 %v359
    %2912 = vmatpush1.bf16.msra.mxu0 %v358
    %2913 = vmatprep.subr.bf16.mxu0 %v363
    %2914 = vmatpush1.bf16.msra.mxu0 %v362
    %2915 = vmatprep.subr.bf16.mxu0 %v367
    %2916 = vmatpush1.bf16.msra.mxu0 %v366
    %2917 = vmatprep.subr.bf16.mxu0 %v371
    %2918 = vmatpush1.bf16.msra.mxu0 %v370
    %2919 = vmatprep.subr.bf16.mxu0 %v375
    %2920 = vmatpush1.bf16.msra.mxu0 %v374
    %2921 = vmatprep.subr.bf16.mxu0 %v379
    %2922 = vmatpush1.bf16.msra.mxu0 %v378
    %2923 = vmatprep.subr.bf16.mxu0 %v383
    %2924 = vmatpush1.bf16.msra.mxu0 %v382
    %2925 = vmatprep.subr.bf16.mxu0 %v387
    %2926 = vmatpush1.bf16.msra.mxu0 %v386
    %2927 = vmatprep.subr.bf16.mxu0 %v391
    %2928 = vmatpush1.bf16.msra.mxu0 %v390
    %2929 = vmatprep.subr.bf16.mxu0 %v395
    %2930 = vmatpush1.bf16.msra.mxu0 %v394
    %2931 = vmatprep.subr.bf16.mxu0 %v399
    %2932 = vmatpush1.bf16.msra.mxu0 %v398
    %2933 = vmatprep.mubr.bf16.mxu0 %v2898
    %2934 = vmatmul.mubr.bf16.gmra.mrb[0].mxu0 %v2897
    %v2935 = vpop.f32.mrb[0].mxu0
    %v2936 = vadd.f32 %v121, %v2935
    %v2937 = vpop.f32.mrb[0].mxu0
    %v2938 = vadd.f32 %v125, %v2937
    %v2939 = vpop.f32.mrb[0].mxu0
    %v2940 = vpop.f32.mrb[0].mxu0
    %2941 = vdwg.mxu0
    %2942 = vmatprep.subr.bf16.mxu0 %v341
    %2943 = vmatpush1.bf16.msra.mxu0 %v340
    %2944 = vmatprep.subr.bf16.mxu0 %v345
    %2945 = vmatpush1.bf16.msra.mxu0 %v344
    %2946 = vmatprep.subr.bf16.mxu0 %v349
    %2947 = vmatpush1.bf16.msra.mxu0 %v348
    %2948 = vmatprep.subr.bf16.mxu0 %v353
    %2949 = vmatpush1.bf16.msra.mxu0 %v352
    %2950 = vmatprep.subr.bf16.mxu0 %v357
    %2951 = vmatpush1.bf16.msra.mxu0 %v356
    %2952 = vmatprep.subr.bf16.mxu0 %v361
    %2953 = vmatpush1.bf16.msra.mxu0 %v360
    %2954 = vmatprep.subr.bf16.mxu0 %v365
    %2955 = vmatpush1.bf16.msra.mxu0 %v364
    %2956 = vmatprep.subr.bf16.mxu0 %v369
    %2957 = vmatpush1.bf16.msra.mxu0 %v368
    %2958 = vmatprep.subr.bf16.mxu0 %v373
    %2959 = vmatpush1.bf16.msra.mxu0 %v372
    %2960 = vmatprep.subr.bf16.mxu0 %v377
    %2961 = vmatpush1.bf16.msra.mxu0 %v376
    %2962 = vmatprep.subr.bf16.mxu0 %v381
    %2963 = vmatpush1.bf16.msra.mxu0 %v380
    %2964 = vmatprep.subr.bf16.mxu0 %v385
    %2965 = vmatpush1.bf16.msra.mxu0 %v384
    %2966 = vmatprep.subr.bf16.mxu0 %v389
    %2967 = vmatpush1.bf16.msra.mxu0 %v388
    %2968 = vmatprep.subr.bf16.mxu0 %v393
    %2969 = vmatpush1.bf16.msra.mxu0 %v392
    %2970 = vmatprep.subr.bf16.mxu0 %v397
    %2971 = vmatpush1.bf16.msra.mxu0 %v396
    %2972 = vmatprep.subr.bf16.mxu0 %v401
    %2973 = vmatpush1.bf16.msra.mxu0 %v400
    %2974 = vmatprep.mubr.bf16.mxu0 %v2898
    %2975 = vmatmul.mubr.bf16.gmra.mrb[0].mxu0 %v2897
    %v2976 = vpop.f32.mrb[0].mxu0
    %v2977 = vadd.f32 %v129, %v2976
    %v2978 = vpop.f32.mrb[0].mxu0
    %v2979 = vadd.f32 %v133, %v2978
    %v2980 = vpop.f32.mrb[0].mxu0
    %v2981 = vpop.f32.mrb[0].mxu0
    %2982 = vdwg.mxu0
    %v2983 = vmax.f32 %v2936, 0.0
    %v2984 = vmax.f32 %v2938, 0.0
    %v2985 = vmax.f32 %v2977, 0.0
    %v2986 = vmax.f32 %v2979, 0.0
    %v2987 = vpack.c.bf16 %v2983, %v2983
    %v2988 = vpack.c.bf16 %v2984, %v2984
    %v2989 = vpack.c.bf16 %v2985, %v2985
    %v2990 = vpack.c.bf16 %v2986, %v2986
    %v2991 = vld [vmem:[%s3 + $0x540] sm:$0xf]
    %v2992 = vld [vmem:[%s3 + $0x544] sm:$0xf]
    %v2993 = vld [vmem:[%s3 + $0x548] sm:$0xf]
    %v2994 = vld [vmem:[%s3 + $0x54c] sm:$0xf]
    %v2995 = vld [vmem:[%s3 + $0x550] sm:$0xf]
    %v2996 = vld [vmem:[%s3 + $0x554] sm:$0xf]
    %v2997 = vld [vmem:[%s3 + $0x558] sm:$0xf]
    %v2998 = vld [vmem:[%s3 + $0x55c] sm:$0xf]
    %v2999 = vld [vmem:[%s3 + $0x560] sm:$0xf]
    %v3000 = vld [vmem:[%s3 + $0x564] sm:$0xf]
    %v3001 = vld [vmem:[%s3 + $0x568] sm:$0xf]
    %v3002 = vld [vmem:[%s3 + $0x56c] sm:$0xf]
    %v3003 = vld [vmem:[%s3 + $0x570] sm:$0xf]
    %v3004 = vld [vmem:[%s3 + $0x574] sm:$0xf]
    %v3005 = vld [vmem:[%s3 + $0x578] sm:$0xf]
    %v3006 = vld [vmem:[%s3 + $0x57c] sm:$0xf]
    %v3007 = vld [vmem:[%s3 + $0x580] sm:$0xf]
    %v3008 = vld [vmem:[%s3 + $0x584] sm:$0xf]
    %v3009 = vld [vmem:[%s3 + $0x588] sm:$0xf]
    %v3010 = vld [vmem:[%s3 + $0x58c] sm:$0xf]
    %v3011 = vld [vmem:[%s3 + $0x590] sm:$0xf]
    %v3012 = vld [vmem:[%s3 + $0x594] sm:$0xf]
    %v3013 = vld [vmem:[%s3 + $0x598] sm:$0xf]
    %v3014 = vld [vmem:[%s3 + $0x59c] sm:$0xf]
    %v3015 = vld [vmem:[%s3 + $0x5a0] sm:$0xf]
    %v3016 = vld [vmem:[%s3 + $0x5a4] sm:$0xf]
    %v3017 = vld [vmem:[%s3 + $0x5a8] sm:$0xf]
    %v3018 = vld [vmem:[%s3 + $0x5ac] sm:$0xf]
    %v3019 = vld [vmem:[%s3 + $0x5b0] sm:$0xf]
    %v3020 = vld [vmem:[%s3 + $0x5b4] sm:$0xf]
    %v3021 = vld [vmem:[%s3 + $0x5b8] sm:$0xf]
    %v3022 = vld [vmem:[%s3 + $0x5bc] sm:$0xf]
    %v3023 = vld [vmem:[%s3 + $0x5c0] sm:$0xf]
    %v3024 = vld [vmem:[%s3 + $0x5c4] sm:$0xf]
    %v3025 = vld [vmem:[%s3 + $0x5c8] sm:$0xf]
    %v3026 = vld [vmem:[%s3 + $0x5cc] sm:$0xf]
    %v3027 = vld [vmem:[%s3 + $0x5d0] sm:$0xf]
    %v3028 = vld [vmem:[%s3 + $0x5d4] sm:$0xf]
    %v3029 = vld [vmem:[%s3 + $0x5d8] sm:$0xf]
    %v3030 = vld [vmem:[%s3 + $0x5dc] sm:$0xf]
    %v3031 = vld [vmem:[%s3 + $0x5e0] sm:$0xf]
    %v3032 = vld [vmem:[%s3 + $0x5e4] sm:$0xf]
    %v3033 = vld [vmem:[%s3 + $0x5e8] sm:$0xf]
    %v3034 = vld [vmem:[%s3 + $0x5ec] sm:$0xf]
    %v3035 = vld [vmem:[%s3 + $0x5f0] sm:$0xf]
    %v3036 = vld [vmem:[%s3 + $0x5f4] sm:$0xf]
    %v3037 = vld [vmem:[%s3 + $0x5f8] sm:$0xf]
    %v3038 = vld [vmem:[%s3 + $0x5fc] sm:$0xf]
    %v3039 = vld [vmem:[%s3 + $0x600] sm:$0xf]
    %v3040 = vld [vmem:[%s3 + $0x604] sm:$0xf]
    %v3041 = vld [vmem:[%s3 + $0x608] sm:$0xf]
    %v3042 = vld [vmem:[%s3 + $0x60c] sm:$0xf]
    %v3043 = vld [vmem:[%s3 + $0x610] sm:$0xf]
    %v3044 = vld [vmem:[%s3 + $0x614] sm:$0xf]
    %v3045 = vld [vmem:[%s3 + $0x618] sm:$0xf]
    %v3046 = vld [vmem:[%s3 + $0x61c] sm:$0xf]
    %v3103 = vunpack.c.l.b16 %v2991
    %v3104 = vunpack.c.l.b16 %v2992
    %v3105 = vunpack.c.l.b16 %v2993
    %v3106 = vunpack.c.l.b16 %v2994
    %v3107 = vunpack.c.l.b16 %v2995
    %v3108 = vunpack.c.l.b16 %v2996
    %v3109 = vunpack.c.l.b16 %v2997
    %v3110 = vunpack.c.l.b16 %v2998
    %v3111 = vunpack.c.l.b16 %v2999
    %v3112 = vunpack.c.l.b16 %v3000
    %v3113 = vunpack.c.l.b16 %v3001
    %v3114 = vunpack.c.l.b16 %v3002
    %v3115 = vunpack.c.l.b16 %v3003
    %v3116 = vunpack.c.l.b16 %v3004
    %v3117 = vunpack.c.l.b16 %v3005
    %v3118 = vunpack.c.l.b16 %v3006
    %v3119 = vunpack.c.l.b16 %v3007
    %v3120 = vunpack.c.l.b16 %v3008
    %v3121 = vunpack.c.l.b16 %v3009
    %v3122 = vunpack.c.l.b16 %v3010
    %v3123 = vunpack.c.l.b16 %v3011
    %v3124 = vunpack.c.l.b16 %v3012
    %v3125 = vunpack.c.l.b16 %v3013
    %v3126 = vunpack.c.l.b16 %v3014
    %v3127 = vunpack.c.l.b16 %v3015
    %v3128 = vunpack.c.l.b16 %v3016
    %v3129 = vunpack.c.l.b16 %v3017
    %v3130 = vunpack.c.l.b16 %v3018
    %v3131 = vunpack.c.l.b16 %v3019
    %v3132 = vunpack.c.l.b16 %v3020
    %v3133 = vunpack.c.l.b16 %v3021
    %v3134 = vunpack.c.l.b16 %v3022
    %v3135 = vunpack.c.l.b16 %v3023
    %v3136 = vunpack.c.l.b16 %v3024
    %v3137 = vunpack.c.l.b16 %v3025
    %v3138 = vunpack.c.l.b16 %v3026
    %v3139 = vunpack.c.l.b16 %v3027
    %v3140 = vunpack.c.l.b16 %v3028
    %v3141 = vunpack.c.l.b16 %v3029
    %v3142 = vunpack.c.l.b16 %v3030
    %v3143 = vunpack.c.l.b16 %v3031
    %v3144 = vunpack.c.l.b16 %v3032
    %v3145 = vunpack.c.l.b16 %v3033
    %v3146 = vunpack.c.l.b16 %v3034
    %v3147 = vunpack.c.l.b16 %v3035
    %v3148 = vunpack.c.l.b16 %v3036
    %v3149 = vunpack.c.l.b16 %v3037
    %v3150 = vunpack.c.l.b16 %v3038
    %v3151 = vunpack.c.l.b16 %v3039
    %v3152 = vunpack.c.l.b16 %v3040
    %v3153 = vunpack.c.l.b16 %v3041
    %v3154 = vunpack.c.l.b16 %v3042
    %v3155 = vunpack.c.l.b16 %v3043
    %v3156 = vunpack.c.l.b16 %v3044
    %v3157 = vunpack.c.l.b16 %v3045
    %v3158 = vunpack.c.l.b16 %v3046
    %v3159 = vpack.c.b16 %v3104, %v3103
    %v3160 = vpack.c.b16 %v3106, %v3105
    %v3161 = vpack.c.b16 %v3108, %v3107
    %v3162 = vpack.c.b16 %v3110, %v3109
    %v3163 = vpack.c.b16 %v3112, %v3111
    %v3164 = vpack.c.b16 %v3114, %v3113
    %v3165 = vpack.c.b16 %v3116, %v3115
    %v3166 = vpack.c.b16 %v3118, %v3117
    %v3167 = vpack.c.b16 %v3120, %v3119
    %v3168 = vpack.c.b16 %v3122, %v3121
    %v3169 = vpack.c.b16 %v3124, %v3123
    %v3170 = vpack.c.b16 %v3126, %v3125
    %v3171 = vpack.c.b16 %v3128, %v3127
    %v3172 = vpack.c.b16 %v3130, %v3129
    %v3173 = vpack.c.b16 %v3132, %v3131
    %v3174 = vpack.c.b16 %v3134, %v3133
    %v3175 = vpack.c.b16 %v3136, %v3135
    %v3176 = vpack.c.b16 %v3138, %v3137
    %v3177 = vpack.c.b16 %v3140, %v3139
    %v3178 = vpack.c.b16 %v3142, %v3141
    %v3179 = vpack.c.b16 %v3144, %v3143
    %v3180 = vpack.c.b16 %v3146, %v3145
    %v3181 = vpack.c.b16 %v3148, %v3147
    %v3182 = vpack.c.b16 %v3150, %v3149
    %v3183 = vpack.c.b16 %v3152, %v3151
    %v3184 = vpack.c.b16 %v3154, %v3153
    %v3185 = vpack.c.b16 %v3156, %v3155
    %v3186 = vpack.c.b16 %v3158, %v3157
    %v3216 = vsel %vm934, %v2990, 0
    %3218 = vmatprep.subr.bf16.mxu0 0
    %3219 = vmatpush1.bf16.msra.mxu0 %v3159
    %3220 = vmatprep.subr.bf16.mxu0 0
    %3221 = vmatpush1.bf16.msra.mxu0 %v3160
    %3222 = vmatprep.subr.bf16.mxu0 0
    %3223 = vmatpush1.bf16.msra.mxu0 %v3161
    %3224 = vmatprep.subr.bf16.mxu0 0
    %3225 = vmatpush1.bf16.msra.mxu0 %v3162
    %3226 = vmatprep.subr.bf16.mxu0 0
    %3227 = vmatpush1.bf16.msra.mxu0 %v3163
    %3228 = vmatprep.subr.bf16.mxu0 0
    %3229 = vmatpush1.bf16.msra.mxu0 %v3164
    %3230 = vmatprep.subr.bf16.mxu0 0
    %3231 = vmatpush1.bf16.msra.mxu0 %v3165
    %3232 = vmatprep.subr.bf16.mxu0 0
    %3233 = vmatpush1.bf16.msra.mxu0 %v3166
    %3234 = vmatprep.subr.bf16.mxu0 0
    %3235 = vmatpush1.bf16.msra.mxu0 %v3167
    %3236 = vmatprep.subr.bf16.mxu0 0
    %3237 = vmatpush1.bf16.msra.mxu0 %v3168
    %3238 = vmatprep.subr.bf16.mxu0 0
    %3239 = vmatpush1.bf16.msra.mxu0 %v3169
    %3240 = vmatprep.subr.bf16.mxu0 0
    %3241 = vmatpush1.bf16.msra.mxu0 %v3170
    %3242 = vmatprep.subr.bf16.mxu0 0
    %3243 = vmatpush1.bf16.msra.mxu0 %v3171
    %3244 = vmatprep.subr.bf16.mxu0 0
    %3245 = vmatpush1.bf16.msra.mxu0 %v3172
    %3246 = vmatprep.subr.bf16.mxu0 0
    %3247 = vmatpush1.bf16.msra.mxu0 %v3173
    %3248 = vmatprep.subr.bf16.mxu0 0
    %3249 = vmatpush1.bf16.msra.mxu0 %v3174
    %3250 = vmatprep.mubr.bf16.mxu0 %v2988
    %3251 = vmatmul.mubr.bf16.gmra.mrb[0].mxu0 %v2987
    %v3252 = vpop.f32.mrb[0].mxu0
    %v3253 = vadd.f32 0.0, %v3252
    %v3254 = vpop.f32.mrb[0].mxu0
    %v3255 = vpop.f32.mrb[0].mxu0
    %v3256 = vpop.f32.mrb[0].mxu0
    %3257 = vdwg.mxu0
    %3258 = vmatprep.subr.bf16.mxu0 0
    %3259 = vmatpush1.bf16.msra.mxu0 %v3175
    %3260 = vmatprep.subr.bf16.mxu0 0
    %3261 = vmatpush1.bf16.msra.mxu0 %v3176
    %3262 = vmatprep.subr.bf16.mxu0 0
    %3263 = vmatpush1.bf16.msra.mxu0 %v3177
    %3264 = vmatprep.subr.bf16.mxu0 0
    %3265 = vmatpush1.bf16.msra.mxu0 %v3178
    %3266 = vmatprep.subr.bf16.mxu0 0
    %3267 = vmatpush1.bf16.msra.mxu0 %v3179
    %3268 = vmatprep.subr.bf16.mxu0 0
    %3269 = vmatpush1.bf16.msra.mxu0 %v3180
    %3270 = vmatprep.subr.bf16.mxu0 0
    %3271 = vmatpush1.bf16.msra.mxu0 %v3181
    %3272 = vmatprep.subr.bf16.mxu0 0
    %3273 = vmatpush1.bf16.msra.mxu0 %v3182
    %3274 = vmatprep.subr.bf16.mxu0 0
    %3275 = vmatpush1.bf16.msra.mxu0 %v3183
    %3276 = vmatprep.subr.bf16.mxu0 0
    %3277 = vmatpush1.bf16.msra.mxu0 %v3184
    %3278 = vmatprep.subr.bf16.mxu0 0
    %3279 = vmatpush1.bf16.msra.mxu0 %v3185
    %3280 = vmatprep.subr.bf16.mxu0 0
    %3281 = vmatpush1.bf16.msra.mxu0 %v3186
    %3282 = vmatprep.subr.bf16.mxu0 0
    %3283 = vmatpush1.bf16.msra.mxu0 0
    %3284 = vmatprep.subr.bf16.mxu0 0
    %3285 = vmatpush1.bf16.msra.mxu0 0
    %3286 = vmatprep.subr.bf16.mxu0 0
    %3287 = vmatpush1.bf16.msra.mxu0 0
    %3288 = vmatprep.subr.bf16.mxu0 0
    %3289 = vmatpush1.bf16.msra.mxu0 0
    %3290 = vmatprep.mubr.bf16.mxu0 %v3216
    %3291 = vmatmul.mubr.bf16.gmra.mrb[0].mxu0 %v2989
    %v3292 = vpop.f32.mrb[0].mxu0
    %v3293 = vadd.f32 %v3253, %v3292
    %v3294 = vpop.f32.mrb[0].mxu0
    %v3295 = vpop.f32.mrb[0].mxu0
    %v3296 = vpop.f32.mrb[0].mxu0
    %3297 = vdwg.mxu0
    %v3298 = vadd.f32 %v2892, %v3293
    %v3299 = vld [vmem:[%s4] sm:$0x1]
    %v3301 = vlaneseq
    %v3302 = vshrl.u32 %v3301, 7
    %v3303 = vsub.s32 0, %v3302
    %v3304 = vrot.slane %v3299, %v3303
    %v3306 = vadd.f32 %v3298, %v3304
    %v3307 = vmax.f32 %v3306, 0.0
    %v3308 = vpack.c.bf16 %v3307, %v3307
    %v3309 = vld [vmem:[%s5] sm:$0xf]
    %v3310 = vld [vmem:[%s5 + $0x4] sm:$0xf]
    %v3311 = vld [vmem:[%s5 + $0x8] sm:$0xf]
    %v3312 = vld [vmem:[%s5 + $0xc] sm:$0xf]
    %v3313 = vld [vmem:[%s6] sm:$0x1]
    %v3315 = vlaneseq
    %v3316 = vshrl.u32 %v3315, 7
    %v3317 = vsub.s32 0, %v3316
    %v3318 = vrot.slane %v3313, %v3317
    %v3324 = vunpack.c.l.b16 %v3309
    %v3325 = vunpack.c.l.b16 %v3310
    %v3326 = vunpack.c.l.b16 %v3311
    %v3327 = vunpack.c.l.b16 %v3312
    %v3328 = vpack.c.b16 %v3325, %v3324
    %v3329 = vpack.c.b16 %v3327, %v3326
    %vm3332 = vcmask 261120
    %v3334 = vsel %vm3332, %v3308, 0
    %3336 = vmatprep.subr.bf16.mxu0 0
    %3337 = vmatpush1.bf16.msra.mxu0 %v3328
    %3338 = vmatprep.subr.bf16.mxu0 0
    %3339 = vmatpush1.bf16.msra.mxu0 %v3329
    %3340 = vmatprep.subr.bf16.mxu0 0
    %3341 = vmatpush1.bf16.msra.mxu0 0
    %3342 = vmatprep.subr.bf16.mxu0 0
    %3343 = vmatpush1.bf16.msra.mxu0 0
    %3344 = vmatprep.subr.bf16.mxu0 0
    %3345 = vmatpush1.bf16.msra.mxu0 0
    %3346 = vmatprep.subr.bf16.mxu0 0
    %3347 = vmatpush1.bf16.msra.mxu0 0
    %3348 = vmatprep.subr.bf16.mxu0 0
    %3349 = vmatpush1.bf16.msra.mxu0 0
    %3350 = vmatprep.subr.bf16.mxu0 0
    %3351 = vmatpush1.bf16.msra.mxu0 0
    %3352 = vmatprep.subr.bf16.mxu0 0
    %3353 = vmatpush1.bf16.msra.mxu0 0
    %3354 = vmatprep.subr.bf16.mxu0 0
    %3355 = vmatpush1.bf16.msra.mxu0 0
    %3356 = vmatprep.subr.bf16.mxu0 0
    %3357 = vmatpush1.bf16.msra.mxu0 0
    %3358 = vmatprep.subr.bf16.mxu0 0
    %3359 = vmatpush1.bf16.msra.mxu0 0
    %3360 = vmatprep.subr.bf16.mxu0 0
    %3361 = vmatpush1.bf16.msra.mxu0 0
    %3362 = vmatprep.subr.bf16.mxu0 0
    %3363 = vmatpush1.bf16.msra.mxu0 0
    %3364 = vmatprep.subr.bf16.mxu0 0
    %3365 = vmatpush1.bf16.msra.mxu0 0
    %3366 = vmatprep.subr.bf16.mxu0 0
    %3367 = vmatpush1.bf16.msra.mxu0 0
    %3368 = vmatprep.mubr.bf16.mxu0 0
    %3369 = vmatmul.mubr.bf16.gmra.mrb[0].mxu0 %v3334
    %v3370 = vpop.f32.mrb[0].mxu0
    %v3371 = vadd.f32 %v3318, %v3370
    %v3372 = vpop.f32.mrb[0].mxu0
    %v3373 = vpop.f32.mrb[0].mxu0
    %v3374 = vpop.f32.mrb[0].mxu0
    %3375 = vdwg.mxu0
    %v3376 = vmax.f32 %v3371, 0.0
    %v3377 = vld [vmem:[%s9] sm:$0xff]
    %v3378 = vld [vmem:[%s10] sm:$0xff]
    %3380 = vset.pattern.permute.xlu0 0
    %3381 = vperm.xlu0 %3380, %v3378
    %v3382 = vpop.permute.xlu0 %3381
    %v3384 = vmul.f32 %v3377, %v3382
    %v3385 = vpack.c.bf16 %v3376, %v3376
    %v3386 = vpack.c.bf16 %v3384, %v3384
    %3388 = vrot.lane.b32.xlu0 %v3386, 32
    %v3389 = vpop.permute.xlu0 %3388
    %v3392 = vsel %vm3332, %v3385, %v3389
    %v3393 = vld [vmem:[%s7] sm:$0xf]
    %v3394 = vld [vmem:[%s7 + $0x4] sm:$0xf]
    %v3395 = vld [vmem:[%s7 + $0x8] sm:$0xf]
    %v3396 = vld [vmem:[%s7 + $0xc] sm:$0xf]
    %v3397 = vld [vmem:[%s7 + $0x10] sm:$0xf]
    %v3398 = vld [vmem:[%s7 + $0x14] sm:$0xf]
    %v3399 = vld [vmem:[%s7 + $0x18] sm:$0xf]
    %v3400 = vld [vmem:[%s7 + $0x1c] sm:$0xf]
    %v3401 = vld [vmem:[%s8] sm:$0x1]
    %v3403 = vlaneseq
    %v3404 = vshrl.u32 %v3403, 7
    %v3405 = vsub.s32 0, %v3404
    %v3406 = vrot.slane %v3401, %v3405
    %v3416 = vunpack.c.l.b16 %v3393
    %v3417 = vunpack.c.l.b16 %v3394
    %v3418 = vunpack.c.l.b16 %v3395
    %v3419 = vunpack.c.l.b16 %v3396
    %v3420 = vunpack.c.l.b16 %v3397
    %v3421 = vunpack.c.l.b16 %v3398
    %v3422 = vunpack.c.l.b16 %v3399
    %v3423 = vunpack.c.l.b16 %v3400
    %v3424 = vpack.c.b16 %v3417, %v3416
    %v3425 = vpack.c.b16 %v3419, %v3418
    %v3426 = vpack.c.b16 %v3421, %v3420
    %v3427 = vpack.c.b16 %v3423, %v3422
    %v3432 = vsel %vm934, %v3392, 0
    %3434 = vmatprep.subr.bf16.mxu0 0
    %3435 = vmatpush1.bf16.msra.mxu0 %v3424
    %3436 = vmatprep.subr.bf16.mxu0 0
    %3437 = vmatpush1.bf16.msra.mxu0 %v3425
    %3438 = vmatprep.subr.bf16.mxu0 0
    %3439 = vmatpush1.bf16.msra.mxu0 %v3426
    %3440 = vmatprep.subr.bf16.mxu0 0
    %3441 = vmatpush1.bf16.msra.mxu0 %v3427
    %3442 = vmatprep.subr.bf16.mxu0 0
    %3443 = vmatpush1.bf16.msra.mxu0 0
    %3444 = vmatprep.subr.bf16.mxu0 0
    %3445 = vmatpush1.bf16.msra.mxu0 0
    %3446 = vmatprep.subr.bf16.mxu0 0
    %3447 = vmatpush1.bf16.msra.mxu0 0
    %3448 = vmatprep.subr.bf16.mxu0 0
    %3449 = vmatpush1.bf16.msra.mxu0 0
    %3450 = vmatprep.subr.bf16.mxu0 0
    %3451 = vmatpush1.bf16.msra.mxu0 0
    %3452 = vmatprep.subr.bf16.mxu0 0
    %3453 = vmatpush1.bf16.msra.mxu0 0
    %3454 = vmatprep.subr.bf16.mxu0 0
    %3455 = vmatpush1.bf16.msra.mxu0 0
    %3456 = vmatprep.subr.bf16.mxu0 0
    %3457 = vmatpush1.bf16.msra.mxu0 0
    %3458 = vmatprep.subr.bf16.mxu0 0
    %3459 = vmatpush1.bf16.msra.mxu0 0
    %3460 = vmatprep.subr.bf16.mxu0 0
    %3461 = vmatpush1.bf16.msra.mxu0 0
    %3462 = vmatprep.subr.bf16.mxu0 0
    %3463 = vmatpush1.bf16.msra.mxu0 0
    %3464 = vmatprep.subr.bf16.mxu0 0
    %3465 = vmatpush1.bf16.msra.mxu0 0
    %3466 = vmatprep.mubr.bf16.mxu0 0
    %3467 = vmatmul.mubr.bf16.gmra.mrb[0].mxu0 %v3432
    %v3468 = vpop.f32.mrb[0].mxu0
    %v3469 = vadd.f32 %v3406, %v3468
    %v3470 = vpop.f32.mrb[0].mxu0
    %v3471 = vpop.f32.mrb[0].mxu0
    %v3472 = vpop.f32.mrb[0].mxu0
    %3473 = vdwg.mxu0
    %v3474 = vxor.u32 %v3469, 2147483648
    %v3475 = vmul.f32 %v3474, 1.442695
    %v3476 = vpow.pop %v3475
    %v3477 = vadd.f32 %v3476, 1.0
    %v3478 = vrcp.pop %v3477
    %v3479 = vmul.f32 1.0, %v3478
    %3481 = vrot.lane.b32.xlu0 %v3469, 32
    %v3482 = vpop.permute.xlu0 %3481
    %v3484 = vmul.f32 %v3479, %v3482
    %3486 = vrot.lane.b32.xlu0 %v3484, 64
    %v3487 = vpop.permute.xlu0 %3486
    %v3489 = vadd.f32 %v3469, %v3487
    %v3490 = vtanh.pop %v3489
    %v3491 = vsub.f32 1.0, %v3479
    %3493 = vrot.lane.b32.xlu0 %v3490, 96
    %v3494 = vpop.permute.xlu0 %3493
    %v3496 = vmul.f32 %v3491, %v3494
    %3498 = vrot.lane.b32.xlu0 %v3384, 32
    %v3499 = vpop.permute.xlu0 %3498
    %v3501 = vmul.f32 %v3479, %v3499
    %v3502 = vadd.f32 %v3496, %v3501
    %3504 = vrot.lane.b32.xlu0 %v3502, 96
    %v3505 = vpop.permute.xlu0 %3504
    %v3507 = vsel %vm3332, %v3505, 0.0
    %3508 = vadd.xlane.f32.xlu0 %v3507
    %v3509 = vpop.xlane.xlu0 %3508
    %v3510 = vrcp.pop 32.0
    %v3511 = vmul.f32 %v3509, %v3510
    %v3512 = vsub.f32 %v3502, %v3511
    %v3513 = vmul.f32 %v3512, %v3512
    %3515 = vrot.lane.b32.xlu0 %v3513, 96
    %v3516 = vpop.permute.xlu0 %3515
    %v3518 = vsel %vm3332, %v3516, 0.0
    %3519 = vadd.xlane.f32.xlu0 %v3518
    %v3520 = vpop.xlane.xlu0 %3519
    %v3521 = vmul.f32 %v3520, %v3510
    %v3522 = vadd.f32 %v3521, 1e-05
    %v3523 = vrsqrt.pop %v3522
    %v3524 = vmul.f32 %v3512, %v3523
    %v3525 = vld [vmem:[%s11] sm:$0x1]
    %v3527 = vlaneseq
    %v3528 = vshrl.u32 %v3527, 7
    %v3529 = vsub.s32 0, %v3528
    %v3530 = vrot.slane %v3525, %v3529
    %3531 = vrot.lane.b32.xlu0 %v3530, 32
    %v3532 = vpop.permute.xlu0 %3531
    %v3534 = vmul.f32 %v3524, %v3532
    %v3535 = vld [vmem:[%s12] sm:$0x1]
    %v3537 = vlaneseq
    %v3538 = vshrl.u32 %v3537, 7
    %v3539 = vsub.s32 0, %v3538
    %v3540 = vrot.slane %v3535, %v3539
    %3541 = vrot.lane.b32.xlu0 %v3540, 32
    %v3542 = vpop.permute.xlu0 %3541
    %v3544 = vadd.f32 %v3534, %v3542
    %v3545 = vpack.c.bf16 %v3544, %v3544
    %v3546 = vld [vmem:[%s13] sm:$0xf]
    %v3547 = vld [vmem:[%s13 + $0x4] sm:$0xf]
    %v3548 = vld [vmem:[%s13 + $0x8] sm:$0xf]
    %v3549 = vld [vmem:[%s13 + $0xc] sm:$0xf]
    %v3550 = vld [vmem:[%s14] sm:$0x1]
    %v3552 = vlaneseq
    %v3553 = vshrl.u32 %v3552, 7
    %v3554 = vsub.s32 0, %v3553
    %v3555 = vrot.slane %v3550, %v3554
    %3558 = vrot.lane.b32.xlu0 %v3545, 96
    %v3559 = vpop.permute.xlu0 %3558
    %v3564 = vunpack.c.l.b16 %v3546
    %v3565 = vunpack.c.l.b16 %v3547
    %v3566 = vunpack.c.l.b16 %v3548
    %v3567 = vunpack.c.l.b16 %v3549
    %v3568 = vpack.c.b16 %v3565, %v3564
    %v3569 = vpack.c.b16 %v3567, %v3566
    %v3573 = vsel %vm3332, %v3559, 0
    %3575 = vmatprep.subr.bf16.mxu0 0
    %3576 = vmatpush1.bf16.msra.mxu0 %v3568
    %3577 = vmatprep.subr.bf16.mxu0 0
    %3578 = vmatpush1.bf16.msra.mxu0 %v3569
    %3579 = vmatprep.subr.bf16.mxu0 0
    %3580 = vmatpush1.bf16.msra.mxu0 0
    %3581 = vmatprep.subr.bf16.mxu0 0
    %3582 = vmatpush1.bf16.msra.mxu0 0
    %3583 = vmatprep.subr.bf16.mxu0 0
    %3584 = vmatpush1.bf16.msra.mxu0 0
    %3585 = vmatprep.subr.bf16.mxu0 0
    %3586 = vmatpush1.bf16.msra.mxu0 0
    %3587 = vmatprep.subr.bf16.mxu0 0
    %3588 = vmatpush1.bf16.msra.mxu0 0
    %3589 = vmatprep.subr.bf16.mxu0 0
    %3590 = vmatpush1.bf16.msra.mxu0 0
    %3591 = vmatprep.subr.bf16.mxu0 0
    %3592 = vmatpush1.bf16.msra.mxu0 0
    %3593 = vmatprep.subr.bf16.mxu0 0
    %3594 = vmatpush1.bf16.msra.mxu0 0
    %3595 = vmatprep.subr.bf16.mxu0 0
    %3596 = vmatpush1.bf16.msra.mxu0 0
    %3597 = vmatprep.subr.bf16.mxu0 0
    %3598 = vmatpush1.bf16.msra.mxu0 0
    %3599 = vmatprep.subr.bf16.mxu0 0
    %3600 = vmatpush1.bf16.msra.mxu0 0
    %3601 = vmatprep.subr.bf16.mxu0 0
    %3602 = vmatpush1.bf16.msra.mxu0 0
    %3603 = vmatprep.subr.bf16.mxu0 0
    %3604 = vmatpush1.bf16.msra.mxu0 0
    %3605 = vmatprep.subr.bf16.mxu0 0
    %3606 = vmatpush1.bf16.msra.mxu0 0
    %3607 = vmatprep.mubr.bf16.mxu0 0
    %3608 = vmatmul.mubr.bf16.gmra.mrb[0].mxu0 %v3573
    %v3609 = vpop.f32.mrb[0].mxu0
    %v3610 = vadd.f32 %v3555, %v3609
    %v3611 = vpop.f32.mrb[0].mxu0
    %v3612 = vpop.f32.mrb[0].mxu0
    %v3613 = vpop.f32.mrb[0].mxu0
    %3614 = vdwg.mxu0
    %vm3615 = vcmask 39936
    %v3616 = vsel %vm3615, %v3610, -inf
    %3617 = vmax.xlane.f32.xlu0 %v3616
    %v3618 = vpop.xlane.xlu0 %3617
    %v3619 = vsub.f32 %v3610, %v3618
    %v3620 = vmul.f32 %v3619, 1.442695
    %v3621 = vpow.pop %v3620
    %v3622 = vsel %vm3615, %v3621, 0.0
    %3623 = vadd.xlane.f32.xlu0 %v3622
    %v3624 = vpop.xlane.xlu0 %3623
    %v3625 = vlog2.pop %v3624
    %v3626 = vmul.f32 %v3625, 0.6931472
    %v3627 = vadd.f32 %v3626, %v3618
    %v3628 = vsub.f32 %v3610, %v3627
    %v3629 = vlaneseq
    %v3630 = vand.u32 %v3629, 127
    %vm3631 = vcmp.eq.f32.partialorder %v3610, %v3618
    %v3632 = vsel %vm3631, %v3630, 5
    %v3633 = vsel %vm3615, %v3632, 2147483647
    %v3634 = vand.u32 %v3633, 65535
    %v3635 = vshra.s32 %v3633, 16
    %v3636 = vcvt.s32.f32 %v3634
    %v3637 = vcvt.s32.f32 %v3635
    %3638 = vmin.xlane.f32.xlu0 %v3637
    %v3639 = vpop.xlane.xlu0 %3638
    %vm3640 = vcmp.eq.f32.partialorder %v3637, %v3639
    %v3641 = vsel %vm3640, %v3636, inf
    %3642 = vmin.xlane.f32.xlu0 %v3641
    %v3643 = vpop.xlane.xlu0 %3642
    %v3644 = vcvt.f32.s32 %v3643
    %v3645 = vcvt.f32.s32 %v3639
    %v3646 = vshll.u32 %v3645, 16
    %v3647 = vadd.s32 %v3646, %v3644
    %vm3648 = vcmp.eq.s32.totalorder %v3630, %v3647
    %v3649 = vsel %vm3648, %v3628, 0.0
    %v3650 = vsel %vm3615, %v3649, 0.0
    %3651 = vadd.xlane.f32.xlu0 %v3650
    %v3652 = vpop.xlane.xlu0 %3651
    %v3653 = vcvt.s32.f32 %v3647
    %v3654 = vsel %vm3332, %v3505, %v3652
    %vm3655 = vcmask 269312
    %v3656 = vsel %vm3655, %v3654, %v3653
    %vm3657 = vcmask 277504
    %v3658 = vsel %vm3657, %v3656, 0.0
    %3659 = vst [vmem:[#allocation2] sm:$0xff] %v3658
    // Predicated region
    $region62: #{tpu_custom_call.1} parent=1 // pred_check
      _
    $region63: #{tpu_custom_call.1} parent=1 // pred_check_branch
      %3661 = sbr.rel (0) target = $region65
    $region64: #{tpu_custom_call.1} parent=1 // pred_region
      %s3663 = ssub.s32 128, 128
      %3664 = vsyncadd [#allocation3], %s3663
      %s3666 = sshll.u32 [#allocation2], 4
      %s3667 = int_to_ptr.vmem [resolvable:$true] %s3666
      %3669 = dma.vmem_to_hbm [thread:$0]  %s3667, 128, %s15, [#allocation3]
    $region65: #{tpu_custom_call.1} parent=1 // pred_fallthru
      _
    // Predicated region
    $region66: #{tpu_custom_call.1} parent=1 // pred_check
      _
    $region67: #{tpu_custom_call.1} parent=1 // pred_check_branch
      %3671 = sbr.rel (0) target = $region69
    $region68: #{tpu_custom_call.1} parent=1 // pred_region
      %3672 = dma.done [#allocation3], 128
    $region69: #{tpu_custom_call.1} parent=1 // pred_fallthru
      _
    %3673 = vsyncpa [#allocation3], 1

</llo_original>
